<compile_context>
chip_gen: v5e
topology: v5e:2x2
jax: 0.10.0
libtpu: 0.0.40
codegen_flags: <defaults>
</compile_context>

<pallas_src>
import jax
import jax.numpy as jnp
import numpy as np
from jax.experimental import pallas as pl
from jax.experimental.pallas import tpu as pltpu

K = 25      # kernel_size
ST = 25     # stride
DIL = 25    # dilation
N = 2       # batch
H = 4       # input spatial (C = 1 as the module requires)
W = 4

H_OUT = (H - 1) * ST + DIL * (K - 1) + 1        # 676
W_OUT = (W - 1) * ST + DIL * (K - 1) + 1        # 676
BH = H + K - 1                                  # 28 non-zero output rows
BW = W + K - 1                                  # 28 non-zero output cols
NTAP = H * W                                    # 16 taps


def convt_tanh_kernel(x_ref, wstk_ref, rsc_ref, csc_ref, o_ref):
    # x_ref   : (N, 16)        f32 SMEM  (scalar taps, no HBM slab DMA)
    # wstk_ref: (16, 28, 28)   f32 VMEM  pre-shifted weight slices (grid-invariant)
    # rsc_ref : (676, 28)      f32 VMEM  one-hot sublane scatter  (grid-invariant)
    # csc_ref : (28, 676)      f32 VMEM  one-hot lane scatter     (grid-invariant)
    # o_ref   : (1, 676, 676)  f32 output block for batch n
    n = pl.program_id(0)

    # 28x28 full-correlation block, accumulated in registers (16 aligned taps):
    # blk[a, b] = sum_{i,j} x[i,j] * w[a-i, b-j]
    blk = jnp.zeros((BH, BW), jnp.float32)
    for t in range(NTAP):
        blk = blk + x_ref[n, t] * wstk_ref[t]
    tb = jnp.tanh(blk)                                                   # (28, 28)

    # Two-sided one-hot scatter on the MXU; zeros come for free and the whole
    # (676, 676) block is emitted in a single full-width store pass.
    rows = jnp.dot(tb, csc_ref[...], preferred_element_type=jnp.float32)          # (28, 676)
    o_ref[0] = jnp.dot(rsc_ref[...], rows, preferred_element_type=jnp.float32)    # (676, 676)


@jax.jit
def conv_transpose_tanh(x_nchw, weight):
    # x_nchw: (N, 1, H, W) f32 ; weight: (1, 1, K, K) f32 (PyTorch layout)
    x = x_nchw[:, 0, :, :].reshape(N, H * W).astype(jnp.float32)
    w = weight[0, 0].astype(jnp.float32)

    # zero-padded weight slab: w_big[H-1+r, W-1+c] = w[r, c]
    w_big = jnp.zeros((K + 2 * (H - 1), K + 2 * (W - 1)), jnp.float32)
    w_big = w_big.at[H - 1:H - 1 + K, W - 1:W - 1 + K].set(w)

    # pre-shifted taps (built once, static slices):
    #   wstk[i*W+j][a, b] = w_big[(H-1-i)+a, (W-1-j)+b] = w[a-i, b-j] (0 if OOB)
    wstk = jnp.stack(
        [w_big[(H - 1) - i:(H - 1) - i + BH, (W - 1) - j:(W - 1) - j + BW]
         for i in range(H) for j in range(W)], axis=0)                  # (16, 28, 28)

    # grid-invariant one-hot scatter matrices (exact 0.0 / 1.0, keep f32)
    rsc = (jnp.arange(H_OUT)[:, None] == jnp.arange(BH)[None, :] * ST
           ).astype(jnp.float32)                                        # (676, 28)
    csc = (jnp.arange(W_OUT)[None, :] == jnp.arange(BW)[:, None] * ST
           ).astype(jnp.float32)                                        # (28, 676)

    out = pl.pallas_call(
        convt_tanh_kernel,
        out_shape=jax.ShapeDtypeStruct((N, H_OUT, W_OUT), jnp.float32),
        grid=(N,),
        in_specs=[
            pl.BlockSpec(memory_space=pltpu.MemorySpace.SMEM),          # x scalars
            pl.BlockSpec((NTAP, BH, BW), lambda n: (0, 0, 0)),          # weight taps
            pl.BlockSpec((H_OUT, BH), lambda n: (0, 0)),                # row scatter
            pl.BlockSpec((BW, W_OUT), lambda n: (0, 0)),                # col scatter
        ],
        out_specs=pl.BlockSpec((1, H_OUT, W_OUT), lambda n: (n, 0, 0)),
        compiler_params=pltpu.CompilerParams(
            dimension_semantics=("parallel",),
            vmem_limit_bytes=16 * 1024 * 1024,
        ),
    )(x, wstk, rsc, csc)
    return out[:, None, :, :]                    # back to NCHW


if __name__ == "__main__":
    key = jax.random.PRNGKey(0)
    kw_key, kx_key = jax.random.split(key)

    # deterministic weight init (PyTorch-style uniform bound 1/sqrt(C_in*K*K))
    bound = 1.0 / (1 * K * K) ** 0.5
    weight = jax.random.uniform(kw_key, (1, 1, K, K), jnp.float32, -bound, bound)
    x1 = jax.random.normal(kx_key, (N, 1, H, W), jnp.float32)

    out = jax.block_until_ready(conv_transpose_tanh(x1, weight))

    # numpy reference: direct scatter definition of ConvTranspose2d + tanh
    xn = np.asarray(x1)
    wn = np.asarray(weight)[0, 0]
    ref = np.zeros((N, H_OUT, W_OUT), np.float32)
    for kh in range(K):
        for kwid in range(K):
            ref[:, kh * DIL: kh * DIL + (H - 1) * ST + 1: ST,
                   kwid * DIL: kwid * DIL + (W - 1) * ST + 1: ST] += xn[:, 0] * wn[kh, kwid]
    ref = np.tanh(ref)

    assert out.shape == (N, 1, H_OUT, W_OUT)
    np.testing.assert_allclose(np.asarray(out)[:, 0], ref, atol=1e-5, rtol=1e-5)
    print("KERNEL_OK")
</pallas_src>

<mosaic_0001>
module attributes {stable_mosaic.version = 11 : i64} {
  func.func @convt_tanh_kernel(%arg0: i32, %arg1: memref<2x16xf32, #tpu.memory_space<smem>>, %arg2: memref<16x28x28xf32, #tpu.memory_space<vmem>>, %arg3: memref<676x28xf32, #tpu.memory_space<vmem>>, %arg4: memref<28x676xf32, #tpu.memory_space<vmem>>, %arg5: memref<1x676x676xf32, #tpu.memory_space<vmem>>) attributes {dimension_semantics = [#tpu.dimension_semantics<parallel>], iteration_bounds = array<i64: 2>, scalar_prefetch = 0 : i64, scratch_operands = 0 : i64, tpu.core_type = #tpu.core_type<tc>, window_params = [{transform_indices = @transform_0, window_bounds = array<i64: 2, 16>}, {pipeline_mode = #tpu.pipeline_mode<synchronous>, transform_indices = @transform_1, window_bounds = array<i64: 16, 28, 28>}, {pipeline_mode = #tpu.pipeline_mode<synchronous>, transform_indices = @transform_2, window_bounds = array<i64: 676, 28>}, {pipeline_mode = #tpu.pipeline_mode<synchronous>, transform_indices = @transform_3, window_bounds = array<i64: 28, 676>}, {transform_indices = @transform_4, window_bounds = array<i64: 1, 676, 676>}]} {
    %cst = arith.constant 0.000000e+00 : f32
    %0 = vector.broadcast %cst : f32 to vector<28x28xf32>
    %1 = arith.index_cast %arg0 : i32 to index
    %c0 = arith.constant 0 : index
    %2 = memref.load %arg1[%1, %c0] : memref<2x16xf32, #tpu.memory_space<smem>>
    %c0_0 = arith.constant 0 : index
    %c0_1 = arith.constant 0 : index
    %c0_2 = arith.constant 0 : index
    %3 = vector.load %arg2[%c0_0, %c0_1, %c0_2] : memref<16x28x28xf32, #tpu.memory_space<vmem>>, vector<1x28x28xf32>
    %4 = vector.shape_cast %3 : vector<1x28x28xf32> to vector<28x28xf32>
    %5 = vector.broadcast %2 : f32 to vector<28x28xf32>
    %6 = arith.mulf %5, %4 : vector<28x28xf32>
    %7 = arith.addf %0, %6 : vector<28x28xf32>
    %8 = arith.index_cast %arg0 : i32 to index
    %c1 = arith.constant 1 : index
    %9 = memref.load %arg1[%8, %c1] : memref<2x16xf32, #tpu.memory_space<smem>>
    %c1_3 = arith.constant 1 : index
    %c0_4 = arith.constant 0 : index
    %c0_5 = arith.constant 0 : index
    %10 = vector.load %arg2[%c1_3, %c0_4, %c0_5] : memref<16x28x28xf32, #tpu.memory_space<vmem>>, vector<1x28x28xf32>
    %11 = vector.shape_cast %10 : vector<1x28x28xf32> to vector<28x28xf32>
    %12 = vector.broadcast %9 : f32 to vector<28x28xf32>
    %13 = arith.mulf %12, %11 : vector<28x28xf32>
    %14 = arith.addf %7, %13 : vector<28x28xf32>
    %15 = arith.index_cast %arg0 : i32 to index
    %c2 = arith.constant 2 : index
    %16 = memref.load %arg1[%15, %c2] : memref<2x16xf32, #tpu.memory_space<smem>>
    %c2_6 = arith.constant 2 : index
    %c0_7 = arith.constant 0 : index
    %c0_8 = arith.constant 0 : index
    %17 = vector.load %arg2[%c2_6, %c0_7, %c0_8] : memref<16x28x28xf32, #tpu.memory_space<vmem>>, vector<1x28x28xf32>
    %18 = vector.shape_cast %17 : vector<1x28x28xf32> to vector<28x28xf32>
    %19 = vector.broadcast %16 : f32 to vector<28x28xf32>
    %20 = arith.mulf %19, %18 : vector<28x28xf32>
    %21 = arith.addf %14, %20 : vector<28x28xf32>
    %22 = arith.index_cast %arg0 : i32 to index
    %c3 = arith.constant 3 : index
    %23 = memref.load %arg1[%22, %c3] : memref<2x16xf32, #tpu.memory_space<smem>>
    %c3_9 = arith.constant 3 : index
    %c0_10 = arith.constant 0 : index
    %c0_11 = arith.constant 0 : index
    %24 = vector.load %arg2[%c3_9, %c0_10, %c0_11] : memref<16x28x28xf32, #tpu.memory_space<vmem>>, vector<1x28x28xf32>
    %25 = vector.shape_cast %24 : vector<1x28x28xf32> to vector<28x28xf32>
    %26 = vector.broadcast %23 : f32 to vector<28x28xf32>
    %27 = arith.mulf %26, %25 : vector<28x28xf32>
    %28 = arith.addf %21, %27 : vector<28x28xf32>
    %29 = arith.index_cast %arg0 : i32 to index
    %c4 = arith.constant 4 : index
    %30 = memref.load %arg1[%29, %c4] : memref<2x16xf32, #tpu.memory_space<smem>>
    %c4_12 = arith.constant 4 : index
    %c0_13 = arith.constant 0 : index
    %c0_14 = arith.constant 0 : index
    %31 = vector.load %arg2[%c4_12, %c0_13, %c0_14] : memref<16x28x28xf32, #tpu.memory_space<vmem>>, vector<1x28x28xf32>
    %32 = vector.shape_cast %31 : vector<1x28x28xf32> to vector<28x28xf32>
    %33 = vector.broadcast %30 : f32 to vector<28x28xf32>
    %34 = arith.mulf %33, %32 : vector<28x28xf32>
    %35 = arith.addf %28, %34 : vector<28x28xf32>
    %36 = arith.index_cast %arg0 : i32 to index
    %c5 = arith.constant 5 : index
    %37 = memref.load %arg1[%36, %c5] : memref<2x16xf32, #tpu.memory_space<smem>>
    %c5_15 = arith.constant 5 : index
    %c0_16 = arith.constant 0 : index
    %c0_17 = arith.constant 0 : index
    %38 = vector.load %arg2[%c5_15, %c0_16, %c0_17] : memref<16x28x28xf32, #tpu.memory_space<vmem>>, vector<1x28x28xf32>
    %39 = vector.shape_cast %38 : vector<1x28x28xf32> to vector<28x28xf32>
    %40 = vector.broadcast %37 : f32 to vector<28x28xf32>
    %41 = arith.mulf %40, %39 : vector<28x28xf32>
    %42 = arith.addf %35, %41 : vector<28x28xf32>
    %43 = arith.index_cast %arg0 : i32 to index
    %c6 = arith.constant 6 : index
    %44 = memref.load %arg1[%43, %c6] : memref<2x16xf32, #tpu.memory_space<smem>>
    %c6_18 = arith.constant 6 : index
    %c0_19 = arith.constant 0 : index
    %c0_20 = arith.constant 0 : index
    %45 = vector.load %arg2[%c6_18, %c0_19, %c0_20] : memref<16x28x28xf32, #tpu.memory_space<vmem>>, vector<1x28x28xf32>
    %46 = vector.shape_cast %45 : vector<1x28x28xf32> to vector<28x28xf32>
    %47 = vector.broadcast %44 : f32 to vector<28x28xf32>
    %48 = arith.mulf %47, %46 : vector<28x28xf32>
    %49 = arith.addf %42, %48 : vector<28x28xf32>
    %50 = arith.index_cast %arg0 : i32 to index
    %c7 = arith.constant 7 : index
    %51 = memref.load %arg1[%50, %c7] : memref<2x16xf32, #tpu.memory_space<smem>>
    %c7_21 = arith.constant 7 : index
    %c0_22 = arith.constant 0 : index
    %c0_23 = arith.constant 0 : index
    %52 = vector.load %arg2[%c7_21, %c0_22, %c0_23] : memref<16x28x28xf32, #tpu.memory_space<vmem>>, vector<1x28x28xf32>
    %53 = vector.shape_cast %52 : vector<1x28x28xf32> to vector<28x28xf32>
    %54 = vector.broadcast %51 : f32 to vector<28x28xf32>
    %55 = arith.mulf %54, %53 : vector<28x28xf32>
    %56 = arith.addf %49, %55 : vector<28x28xf32>
    %57 = arith.index_cast %arg0 : i32 to index
    %c8 = arith.constant 8 : index
    %58 = memref.load %arg1[%57, %c8] : memref<2x16xf32, #tpu.memory_space<smem>>
    %c8_24 = arith.constant 8 : index
    %c0_25 = arith.constant 0 : index
    %c0_26 = arith.constant 0 : index
    %59 = vector.load %arg2[%c8_24, %c0_25, %c0_26] : memref<16x28x28xf32, #tpu.memory_space<vmem>>, vector<1x28x28xf32>
    %60 = vector.shape_cast %59 : vector<1x28x28xf32> to vector<28x28xf32>
    %61 = vector.broadcast %58 : f32 to vector<28x28xf32>
    %62 = arith.mulf %61, %60 : vector<28x28xf32>
    %63 = arith.addf %56, %62 : vector<28x28xf32>
    %64 = arith.index_cast %arg0 : i32 to index
    %c9 = arith.constant 9 : index
    %65 = memref.load %arg1[%64, %c9] : memref<2x16xf32, #tpu.memory_space<smem>>
    %c9_27 = arith.constant 9 : index
    %c0_28 = arith.constant 0 : index
    %c0_29 = arith.constant 0 : index
    %66 = vector.load %arg2[%c9_27, %c0_28, %c0_29] : memref<16x28x28xf32, #tpu.memory_space<vmem>>, vector<1x28x28xf32>
    %67 = vector.shape_cast %66 : vector<1x28x28xf32> to vector<28x28xf32>
    %68 = vector.broadcast %65 : f32 to vector<28x28xf32>
    %69 = arith.mulf %68, %67 : vector<28x28xf32>
    %70 = arith.addf %63, %69 : vector<28x28xf32>
    %71 = arith.index_cast %arg0 : i32 to index
    %c10 = arith.constant 10 : index
    %72 = memref.load %arg1[%71, %c10] : memref<2x16xf32, #tpu.memory_space<smem>>
    %c10_30 = arith.constant 10 : index
    %c0_31 = arith.constant 0 : index
    %c0_32 = arith.constant 0 : index
    %73 = vector.load %arg2[%c10_30, %c0_31, %c0_32] : memref<16x28x28xf32, #tpu.memory_space<vmem>>, vector<1x28x28xf32>
    %74 = vector.shape_cast %73 : vector<1x28x28xf32> to vector<28x28xf32>
    %75 = vector.broadcast %72 : f32 to vector<28x28xf32>
    %76 = arith.mulf %75, %74 : vector<28x28xf32>
    %77 = arith.addf %70, %76 : vector<28x28xf32>
    %78 = arith.index_cast %arg0 : i32 to index
    %c11 = arith.constant 11 : index
    %79 = memref.load %arg1[%78, %c11] : memref<2x16xf32, #tpu.memory_space<smem>>
    %c11_33 = arith.constant 11 : index
    %c0_34 = arith.constant 0 : index
    %c0_35 = arith.constant 0 : index
    %80 = vector.load %arg2[%c11_33, %c0_34, %c0_35] : memref<16x28x28xf32, #tpu.memory_space<vmem>>, vector<1x28x28xf32>
    %81 = vector.shape_cast %80 : vector<1x28x28xf32> to vector<28x28xf32>
    %82 = vector.broadcast %79 : f32 to vector<28x28xf32>
    %83 = arith.mulf %82, %81 : vector<28x28xf32>
    %84 = arith.addf %77, %83 : vector<28x28xf32>
    %85 = arith.index_cast %arg0 : i32 to index
    %c12 = arith.constant 12 : index
    %86 = memref.load %arg1[%85, %c12] : memref<2x16xf32, #tpu.memory_space<smem>>
    %c12_36 = arith.constant 12 : index
    %c0_37 = arith.constant 0 : index
    %c0_38 = arith.constant 0 : index
    %87 = vector.load %arg2[%c12_36, %c0_37, %c0_38] : memref<16x28x28xf32, #tpu.memory_space<vmem>>, vector<1x28x28xf32>
    %88 = vector.shape_cast %87 : vector<1x28x28xf32> to vector<28x28xf32>
    %89 = vector.broadcast %86 : f32 to vector<28x28xf32>
    %90 = arith.mulf %89, %88 : vector<28x28xf32>
    %91 = arith.addf %84, %90 : vector<28x28xf32>
    %92 = arith.index_cast %arg0 : i32 to index
    %c13 = arith.constant 13 : index
    %93 = memref.load %arg1[%92, %c13] : memref<2x16xf32, #tpu.memory_space<smem>>
    %c13_39 = arith.constant 13 : index
    %c0_40 = arith.constant 0 : index
    %c0_41 = arith.constant 0 : index
    %94 = vector.load %arg2[%c13_39, %c0_40, %c0_41] : memref<16x28x28xf32, #tpu.memory_space<vmem>>, vector<1x28x28xf32>
    %95 = vector.shape_cast %94 : vector<1x28x28xf32> to vector<28x28xf32>
    %96 = vector.broadcast %93 : f32 to vector<28x28xf32>
    %97 = arith.mulf %96, %95 : vector<28x28xf32>
    %98 = arith.addf %91, %97 : vector<28x28xf32>
    %99 = arith.index_cast %arg0 : i32 to index
    %c14 = arith.constant 14 : index
    %100 = memref.load %arg1[%99, %c14] : memref<2x16xf32, #tpu.memory_space<smem>>
    %c14_42 = arith.constant 14 : index
    %c0_43 = arith.constant 0 : index
    %c0_44 = arith.constant 0 : index
    %101 = vector.load %arg2[%c14_42, %c0_43, %c0_44] : memref<16x28x28xf32, #tpu.memory_space<vmem>>, vector<1x28x28xf32>
    %102 = vector.shape_cast %101 : vector<1x28x28xf32> to vector<28x28xf32>
    %103 = vector.broadcast %100 : f32 to vector<28x28xf32>
    %104 = arith.mulf %103, %102 : vector<28x28xf32>
    %105 = arith.addf %98, %104 : vector<28x28xf32>
    %106 = arith.index_cast %arg0 : i32 to index
    %c15 = arith.constant 15 : index
    %107 = memref.load %arg1[%106, %c15] : memref<2x16xf32, #tpu.memory_space<smem>>
    %c15_45 = arith.constant 15 : index
    %c0_46 = arith.constant 0 : index
    %c0_47 = arith.constant 0 : index
    %108 = vector.load %arg2[%c15_45, %c0_46, %c0_47] : memref<16x28x28xf32, #tpu.memory_space<vmem>>, vector<1x28x28xf32>
    %109 = vector.shape_cast %108 : vector<1x28x28xf32> to vector<28x28xf32>
    %110 = vector.broadcast %107 : f32 to vector<28x28xf32>
    %111 = arith.mulf %110, %109 : vector<28x28xf32>
    %112 = arith.addf %105, %111 : vector<28x28xf32>
    %113 = math.tanh %112 : vector<28x28xf32>
    %c0_48 = arith.constant 0 : index
    %c0_49 = arith.constant 0 : index
    %114 = vector.load %arg4[%c0_48, %c0_49] : memref<28x676xf32, #tpu.memory_space<vmem>>, vector<28x676xf32>
    %cst_50 = arith.constant dense<0.000000e+00> : vector<28x676xf32>
    %115 = tpu.matmul %113, %114, %cst_50 {dimension_numbers = #tpu.dot_dimension_numbers<[1], [0], [0], [1], [0, 0, 1, 1], [], []>} : vector<28x28xf32>, vector<28x676xf32>, vector<28x676xf32> -> vector<28x676xf32>
    %c0_51 = arith.constant 0 : index
    %c0_52 = arith.constant 0 : index
    %116 = vector.load %arg3[%c0_51, %c0_52] : memref<676x28xf32, #tpu.memory_space<vmem>>, vector<676x28xf32>
    %cst_53 = arith.constant dense<0.000000e+00> : vector<676x676xf32>
    %117 = tpu.matmul %116, %115, %cst_53 {dimension_numbers = #tpu.dot_dimension_numbers<[1], [0], [0], [1], [0, 0, 1, 1], [], []>} : vector<676x28xf32>, vector<28x676xf32>, vector<676x676xf32> -> vector<676x676xf32>
    %c0_54 = arith.constant 0 : index
    %c0_55 = arith.constant 0 : index
    %c0_56 = arith.constant 0 : index
    %118 = vector.load %arg5[%c0_54, %c0_55, %c0_56] : memref<1x676x676xf32, #tpu.memory_space<vmem>>, vector<1x676x676xf32>
    %119 = vector.shape_cast %118 : vector<1x676x676xf32> to vector<676x676xf32>
    %120 = vector.shape_cast %117 : vector<676x676xf32> to vector<1x676x676xf32>
    tpu.vector_store %arg5[%c0_54, %c0_55, %c0_56], %120 {strides = array<i32>} : memref<1x676x676xf32, #tpu.memory_space<vmem>>, vector<1x676x676xf32>,
    return
  }
  func.func @transform_0(%arg0: i32) -> (i32, i32) {
    %c0_i32 = arith.constant 0 : i32
    %c0_i32_0 = arith.constant 0 : i32
    %c0_i32_1 = arith.constant 0 : i32
    return %c0_i32, %c0_i32_0 : i32, i32
  }
  func.func @transform_1(%arg0: i32) -> (i32, i32, i32) {
    %c0_i32 = arith.constant 0 : i32
    %c0_i32_0 = arith.constant 0 : i32
    %c0_i32_1 = arith.constant 0 : i32
    %c0_i32_2 = arith.constant 0 : i32
    return %c0_i32, %c0_i32_0, %c0_i32_1 : i32, i32, i32
  }
  func.func @transform_2(%arg0: i32) -> (i32, i32) {
    %c0_i32 = arith.constant 0 : i32
    %c0_i32_0 = arith.constant 0 : i32
    %c0_i32_1 = arith.constant 0 : i32
    return %c0_i32, %c0_i32_0 : i32, i32
  }
  func.func @transform_3(%arg0: i32) -> (i32, i32) {
    %c0_i32 = arith.constant 0 : i32
    %c0_i32_0 = arith.constant 0 : i32
    %c0_i32_1 = arith.constant 0 : i32
    return %c0_i32, %c0_i32_0 : i32, i32
  }
  func.func @transform_4(%arg0: i32) -> (i32, i32, i32) {
    %c0_i32 = arith.constant 0 : i32
    %c0_i32_0 = arith.constant 0 : i32
    %c0_i32_1 = arith.constant 0 : i32
    return %arg0, %c0_i32, %c0_i32_0 : i32, i32, i32
  }
}

</mosaic_0001>

<llo_original>
// kernel: squeeze.2
$region0: #{squeeze.2}
  %s0 = inlined_call_operand.hbm [shape: f32[2,1,4,4], index: 0, kind: input, shape index: {}]
  %s1 = inlined_call_operand.vmem [shape: f32[2,16], index: 1, kind: output, shape index: {}]
  $region1: #{squeeze.2} parent=0
    #allocation0 [shape = 'u8[4096]{0}', space=vmem, size = 0x1000, scoped, tag = 'operand span for operand 0']
    #allocation1 [shape = 's32[1]{0}', space=sflag, size = 0x4, scoped, tag = 'scoped memory for squeeze.2']
    #allocation2 [shape = 'u8[4096]{0}', space=vmem, size = 0x1000, scoped, tag = 'scoped mem for output reshape']
    #allocation3 [shape = 'u8[8192]{0}', space=vmem, size = 0x2000, scoped, tag = 'scoped mem for input reshape']
    %2 = vsyncpa [#allocation1], 0
    %4 = vsyncadd [#allocation1], 0
    %s6 = sshll.u32 %s0, 4
    %s7 = int_to_ptr.hbm [resolvable:$true] %s6
    %s8 = sshll.u32 [#allocation0], 4
    %s9 = int_to_ptr.vmem [resolvable:$true] %s8
    %11 = dma.hbm_to_vmem [thread:$0]  %s7, 128, %s9, [#allocation1]
    %13 = dma.done [#allocation1], 128
    %s15 = ssub.s32 16, 1
    %s16 = scalar_lea.vmem [#allocation0], 4
    %v17 = vld [vmem:[%s16] sm:%s15]
    %s18 = scalar_lea.vmem [#allocation3], 8
    %19 = vst [vmem:[%s18] sm:%s15] %v17
    %v20 = vld [vmem:[#allocation0] sm:%s15]
    %21 = vst [vmem:[#allocation3] sm:%s15] %v20
    %s22 = smov 3
    %v23 = vld [vmem:[#allocation3] ss:$8 sm:%s22]
    %vm24 = vcmask 31744
    %25 = vst.msk [vmem:[#allocation2] sm:$0x3] %vm24, %v23
    %s26 = scalar_lea.vmem [#allocation3], 3
    %s27 = smov 3
    %v28 = vld [vmem:[%s26] ss:$8 sm:%s27]
    %29 = vrot.lane.b32.xlu0 %v28, 12
    %v30 = vpop.permute.xlu0 %29
    %vm31 = vcmask 130144
    %32 = vst.msk [vmem:[#allocation2] sm:$0x3] %vm31, %v30
    %s33 = scalar_lea.vmem [#allocation3], 2
    %s34 = smov 3
    %v35 = vld [vmem:[%s33] ss:$8 sm:%s34]
    %36 = vrot.lane.b32.xlu0 %v35, 8
    %v37 = vpop.permute.xlu0 %36
    %vm38 = vcmask 97344
    %39 = vst.msk [vmem:[#allocation2] sm:$0x3] %vm38, %v37
    %s40 = scalar_lea.vmem [#allocation3], 1
    %s41 = smov 3
    %v42 = vld [vmem:[%s40] ss:$8 sm:%s41]
    %43 = vrot.lane.b32.xlu0 %v42, 4
    %v44 = vpop.permute.xlu0 %43
    %vm45 = vcmask 64544
    %46 = vst.msk [vmem:[#allocation2] sm:$0x3] %vm45, %v44
    %s48 = ssub.s32 4, 1
    %v49 = vld [vmem:[#allocation2] sm:%s48]
    %s51 = ssub.s32 4, 1
    %52 = vst [vmem:[%s1] sm:%s51] %v49
    %53 = vsyncpa [#allocation1], 1

// kernel: conv_transpose_tanh.1
$region0: #{conv_transpose_tanh.1}
  #allocation0 [shape = 'u32[]', space=smem, size = 0x4, offset = 0x4, fixed_abs, tag = 'smem constant byte address 0x4 - core index']
  #allocation1 [shape = 'u32[72,128]{1,0:T(1,128)}', space=vmem, size = 0x9000, scoped, tag = 'internal scratch']
  %s0 = inlined_call_operand.vmem [shape: f32[2,16], index: 0, kind: input, shape index: {}]
  %s1 = inlined_call_operand.vmem [shape: f32[16,28,28], index: 1, kind: input, shape index: {}]
  %s2 = inlined_call_operand.vmem [shape: f32[676,28], index: 2, kind: input, shape index: {}]
  %s3 = inlined_call_operand.vmem [shape: f32[28,676], index: 3, kind: input, shape index: {}]
  %s4 = inlined_call_operand.vmem [shape: f32[2,676,676], index: 4, kind: output, shape index: {}]
  %s5 = sld [smem:[#allocation0]]
  $region53: #{conv_transpose_tanh.1} parent=0
    _
  %s7 = ssub.s32 1, %s5
  %s8 = scalar_select 0, %s7, %s5
  $region1: #{conv_transpose_tanh.1} parent=0
    #allocation2 [shape = 'u8[1024]{0}', space=smem, size = 0x400, scoped, tag = 'input window, operand 0, single buffered']
    #allocation3 [shape = 's32[2]{0}', space=sflag, size = 0x8, scoped, tag = 'scoped memory for conv_transpose_tanh.1']
    %9 = vsyncpa [#allocation3], 0
    loop: start=0, step=1, limit=4
    $region2: #{conv_transpose_tanh.1} parent=1 // loop_pre_header
      _
    $region3: #{conv_transpose_tanh.1} parent=1 // loop_header
      %s11 = sphi 0, %s15
      %p12 = scmp.ge.s32.totalorder %s11, 4
      %s19 = sphi 0, %s19
      %s21 = sphi 0, %s19
      %s22 = sphi 0, %s21
      %s36 = sphi 0, %s22
      %s40 = sphi 0, %s40
      %s42 = sphi 0, %s40
      %s43 = sphi 0, %s42
      %s57 = sphi 0, %s43
      %s61 = sphi 0, %s61
      %s63 = sphi 0, %s61
      %s64 = sphi 0, %s63
      %s78 = sphi 0, %s64
      %s82 = sphi 0, %s82
      %s84 = sphi 0, %s82
      %s85 = sphi 0, %s84
      %s99 = sphi 0, %s85
      %s105 = sphi 0, %s107
      %s108 = sphi 0, %s105
      %s109 = sphi 0, %s108
      %s125 = sphi 0, %s109
    $region4: #{conv_transpose_tanh.1} parent=1 // loop_header_branch
      %14 = sbr.rel (%p12) target = $region8
    $region5: #{conv_transpose_tanh.1} parent=1 // loop_body
      %s16 = ssub.s32 %s11, 1
      %s17 = ssub.s32 %s11, 2
      %s18 = sadd.s32 %s11, 1
      %s20 = sadd.s32 %s19, 1
      %p23 = scmp.eq.s32.totalorder %s11, 1
      %p24 = scmp.ne.s32.totalorder %s19, %s21
      %p25 = scmp.eq.s32.totalorder %s11, 0
      %p26 = por %p24, %p25
      %p27 = scmp.ne.s32.totalorder %s19, %s21
      %p28 = scmp.eq.s32.totalorder %s16, 1
      %p29 = por %p27, %p28
      %p30 = scmp.ne.s32.totalorder %s21, %s22
      %p31 = scmp.eq.s32.totalorder %s16, 0
      %p32 = por %p30, %p31
      %p33 = scmp.ne.s32.totalorder %s21, %s22
      %p34 = scmp.eq.s32.totalorder %s17, 1
      %p35 = por %p33, %p34
      %p37 = scmp.ne.s32.totalorder %s22, %s36
      %p38 = scmp.eq.s32.totalorder %s17, 0
      %p39 = por %p37, %p38
      %s41 = sadd.s32 %s40, 1
      %p44 = scmp.eq.s32.totalorder %s11, 1
      %p45 = scmp.ne.s32.totalorder %s40, %s42
      %p46 = scmp.eq.s32.totalorder %s11, 0
      %p47 = por %p45, %p46
      %p48 = scmp.ne.s32.totalorder %s40, %s42
      %p49 = scmp.eq.s32.totalorder %s16, 1
      %p50 = por %p48, %p49
      %p51 = scmp.ne.s32.totalorder %s42, %s43
      %p52 = scmp.eq.s32.totalorder %s16, 0
      %p53 = por %p51, %p52
      %p54 = scmp.ne.s32.totalorder %s42, %s43
      %p55 = scmp.eq.s32.totalorder %s17, 1
      %p56 = por %p54, %p55
      %p58 = scmp.ne.s32.totalorder %s43, %s57
      %p59 = scmp.eq.s32.totalorder %s17, 0
      %p60 = por %p58, %p59
      %s62 = sadd.s32 %s61, 1
      %p65 = scmp.eq.s32.totalorder %s11, 1
      %p66 = scmp.ne.s32.totalorder %s61, %s63
      %p67 = scmp.eq.s32.totalorder %s11, 0
      %p68 = por %p66, %p67
      %p69 = scmp.ne.s32.totalorder %s61, %s63
      %p70 = scmp.eq.s32.totalorder %s16, 1
      %p71 = por %p69, %p70
      %p72 = scmp.ne.s32.totalorder %s63, %s64
      %p73 = scmp.eq.s32.totalorder %s16, 0
      %p74 = por %p72, %p73
      %p75 = scmp.ne.s32.totalorder %s63, %s64
      %p76 = scmp.eq.s32.totalorder %s17, 1
      %p77 = por %p75, %p76
      %p79 = scmp.ne.s32.totalorder %s64, %s78
      %p80 = scmp.eq.s32.totalorder %s17, 0
      %p81 = por %p79, %p80
      %s83 = sadd.s32 %s82, 1
      %p86 = scmp.eq.s32.totalorder %s11, 1
      %p87 = scmp.ne.s32.totalorder %s82, %s84
      %p88 = scmp.eq.s32.totalorder %s11, 0
      %p89 = por %p87, %p88
      %p90 = scmp.ne.s32.totalorder %s82, %s84
      %p91 = scmp.eq.s32.totalorder %s16, 1
      %p92 = por %p90, %p91
      %p93 = scmp.ne.s32.totalorder %s84, %s85
      %p94 = scmp.eq.s32.totalorder %s16, 0
      %p95 = por %p93, %p94
      %p96 = scmp.ne.s32.totalorder %s84, %s85
      %p97 = scmp.eq.s32.totalorder %s17, 1
      %p98 = por %p96, %p97
      %p100 = scmp.ne.s32.totalorder %s85, %s99
      %p101 = scmp.eq.s32.totalorder %s17, 0
      %p102 = por %p100, %p101
      %s103 = ssub.s32 %s11, %s18
      %p104 = scmp.eq.s32.totalorder %s103, 0
      %s106 = sadd.s32 %s105, 1
      %s107 = scalar_select %p104, %s105, %s106
      %p110 = pneg %p104
      %p111 = scmp.eq.s32.totalorder %s11, 1
      %p112 = por %p110, %p111
      %p113 = scmp.ne.s32.totalorder %s105, %s108
      %p114 = scmp.eq.s32.totalorder %s11, 0
      %p115 = por %p113, %p114
      %p116 = scmp.ne.s32.totalorder %s105, %s108
      %p117 = scmp.eq.s32.totalorder %s16, 1
      %p118 = por %p116, %p117
      %p119 = scmp.ne.s32.totalorder %s108, %s109
      %p120 = scmp.eq.s32.totalorder %s16, 0
      %p121 = por %p119, %p120
      %p122 = scmp.ne.s32.totalorder %s108, %s109
      %p123 = scmp.eq.s32.totalorder %s17, 1
      %p124 = por %p122, %p123
      %p126 = scmp.ne.s32.totalorder %s109, %s125
      %p127 = scmp.eq.s32.totalorder %s17, 0
      %p128 = por %p126, %p127
      %p129 = scmp.le.s32.totalorder 1, %s11
      %p130 = scmp.lt.s32.totalorder %s11, 3
      %p131 = pnand %p129, %p130
      %p132 = pneg %p131
      // Predicated region
      $region9: #{conv_transpose_tanh.1} parent=5 // pred_check
        _
      $region10: #{conv_transpose_tanh.1} parent=5 // pred_check_branch
        %134 = sbr.rel (%p131) target = $region12
      $region11: #{conv_transpose_tanh.1} parent=5 // pred_region
        %s135 = ssub.s32 %s11, 1
        // Predicated region
        $region13: #{conv_transpose_tanh.1} parent=11 // pred_check
          %p136 = pneg %p32
        $region14: #{conv_transpose_tanh.1} parent=11 // pred_check_branch
          %138 = sbr.rel (%p136) target = $region16
        $region15: #{conv_transpose_tanh.1} parent=11 // pred_region
          %140 = vsyncadd [#allocation3], 0
          %s142 = sshll.u32 %s0, 4
          %s143 = int_to_ptr.vmem [resolvable:$true] %s142
          %145 = dma.vmem_to_smem %s143, 32, [#allocation2], [#allocation3]
        $region16: #{conv_transpose_tanh.1} parent=11 // pred_fallthru
          _
        // Predicated region
        $region17: #{conv_transpose_tanh.1} parent=11 // pred_check
          %p146 = pneg %p53
        $region18: #{conv_transpose_tanh.1} parent=11 // pred_check_branch
          %148 = sbr.rel (%p146) target = $region20
        $region19: #{conv_transpose_tanh.1} parent=11 // pred_region
          _
        $region20: #{conv_transpose_tanh.1} parent=11 // pred_fallthru
          _
        // Predicated region
        $region21: #{conv_transpose_tanh.1} parent=11 // pred_check
          %p149 = pneg %p74
        $region22: #{conv_transpose_tanh.1} parent=11 // pred_check_branch
          %151 = sbr.rel (%p149) target = $region24
        $region23: #{conv_transpose_tanh.1} parent=11 // pred_region
          _
        $region24: #{conv_transpose_tanh.1} parent=11 // pred_fallthru
          _
        // Predicated region
        $region25: #{conv_transpose_tanh.1} parent=11 // pred_check
          %p152 = pneg %p95
        $region26: #{conv_transpose_tanh.1} parent=11 // pred_check_branch
          %154 = sbr.rel (%p152) target = $region28
        $region27: #{conv_transpose_tanh.1} parent=11 // pred_region
          _
        $region28: #{conv_transpose_tanh.1} parent=11 // pred_fallthru
          _
      $region12: #{conv_transpose_tanh.1} parent=5 // pred_fallthru
        _
      %p155 = scmp.lt.s32.totalorder %s11, 2
      // Predicated region
      $region29: #{conv_transpose_tanh.1} parent=5 // pred_check
        %p156 = pneg %p155
      $region30: #{conv_transpose_tanh.1} parent=5 // pred_check_branch
        %158 = sbr.rel (%p156) target = $region32
      $region31: #{conv_transpose_tanh.1} parent=5 // pred_region
        _
      $region32: #{conv_transpose_tanh.1} parent=5 // pred_fallthru
        _
      %p159 = scmp.le.s32.totalorder 1, %s11
      %p160 = scmp.lt.s32.totalorder %s11, 3
      %p161 = pnand %p159, %p160
      %p162 = pneg %p161
      // Predicated region
      $region33: #{conv_transpose_tanh.1} parent=5 // pred_check
        _
      $region34: #{conv_transpose_tanh.1} parent=5 // pred_check_branch
        %164 = sbr.rel (%p161) target = $region36
      $region35: #{conv_transpose_tanh.1} parent=5 // pred_region
        %s165 = ssub.s32 %s11, 1
        // Predicated region
        $region37: #{conv_transpose_tanh.1} parent=35 // pred_check
          %p166 = pneg %p32
        $region38: #{conv_transpose_tanh.1} parent=35 // pred_check_branch
          %168 = sbr.rel (%p166) target = $region40
        $region39: #{conv_transpose_tanh.1} parent=35 // pred_region
          %170 = dma.done [#allocation3], 32
        $region40: #{conv_transpose_tanh.1} parent=35 // pred_fallthru
          _
        %171 = sfence
        %p172 = pneg %p32
        %p173 = pneg %p29
        %p174 = pneg %p53
        %p175 = pneg %p50
        %p176 = pneg %p74
        %p177 = pneg %p71
        %p178 = pneg %p95
        %p179 = pneg %p92
        %p180 = pneg %p121
        %p181 = pneg %p118
        %p182 = scmp.lt.s32.totalorder %s16, 1
        %s183 = scalar_select %p182, %s16, 1
        %s184 = smul.addr %s183, 510
        %s185 = smul.addr %s184, 8
        %s186 = scalar_lea.vmem %s4, %s185
        %p187 = scmp.lt.s32.totalorder %s16, 1
        %s188 = scalar_select %p187, %s16, 1
        %s189 = smul.addr %s188, 510
        %s190 = smul.addr %s189, 8
        %s191 = scalar_lea.vmem %s4, %s190
        %s192 = smul.u32 %s16, 128
        %s193 = sld [smem:[#allocation2 + %s192]]
        %v194 = vld [vmem:[%s1] sm:$0xff]
        %v195 = vld [vmem:[%s1 + $0x8] sm:$0xff]
        %v196 = vld [vmem:[%s1 + $0x10] sm:$0xff]
        %v197 = vld [vmem:[%s1 + $0x18] sm:$0xf]
        %v198 = vstv %s193
        %v199 = vmul.f32 %v198, %v194
        %v200 = vmul.f32 %v198, %v195
        %v201 = vmul.f32 %v198, %v196
        %v202 = vmul.f32 %v198, %v197
        %v203 = vadd.f32 %v199, 0.0
        %v204 = vadd.f32 %v200, 0.0
        %v205 = vadd.f32 %v201, 0.0
        %v206 = vadd.f32 %v202, 0.0
        %s207 = sadd.s32 %s192, 1
        %s208 = sld [smem:[#allocation2 + %s207]]
        %s209 = scalar_lea.vmem %s1, 32
        %v210 = vld [vmem:[%s209] sm:$0xff]
        %v211 = vld [vmem:[%s209 + $0x8] sm:$0xff]
        %v212 = vld [vmem:[%s209 + $0x10] sm:$0xff]
        %v213 = vld [vmem:[%s209 + $0x18] sm:$0xf]
        %v214 = vstv %s208
        %v215 = vmul.f32 %v214, %v210
        %v216 = vmul.f32 %v214, %v211
        %v217 = vmul.f32 %v214, %v212
        %v218 = vmul.f32 %v214, %v213
        %v219 = vadd.f32 %v203, %v215
        %v220 = vadd.f32 %v204, %v216
        %v221 = vadd.f32 %v205, %v217
        %v222 = vadd.f32 %v206, %v218
        %s223 = sadd.s32 %s192, 2
        %s224 = sld [smem:[#allocation2 + %s223]]
        %s225 = scalar_lea.vmem %s1, 64
        %v226 = vld [vmem:[%s225] sm:$0xff]
        %v227 = vld [vmem:[%s225 + $0x8] sm:$0xff]
        %v228 = vld [vmem:[%s225 + $0x10] sm:$0xff]
        %v229 = vld [vmem:[%s225 + $0x18] sm:$0xf]
        %v230 = vstv %s224
        %v231 = vmul.f32 %v230, %v226
        %v232 = vmul.f32 %v230, %v227
        %v233 = vmul.f32 %v230, %v228
        %v234 = vmul.f32 %v230, %v229
        %v235 = vadd.f32 %v219, %v231
        %v236 = vadd.f32 %v220, %v232
        %v237 = vadd.f32 %v221, %v233
        %v238 = vadd.f32 %v222, %v234
        %s239 = sadd.s32 %s192, 3
        %s240 = sld [smem:[#allocation2 + %s239]]
        %s241 = scalar_lea.vmem %s1, 96
        %v242 = vld [vmem:[%s241] sm:$0xff]
        %v243 = vld [vmem:[%s241 + $0x8] sm:$0xff]
        %v244 = vld [vmem:[%s241 + $0x10] sm:$0xff]
        %v245 = vld [vmem:[%s241 + $0x18] sm:$0xf]
        %v246 = vstv %s240
        %v247 = vmul.f32 %v246, %v242
        %v248 = vmul.f32 %v246, %v243
        %v249 = vmul.f32 %v246, %v244
        %v250 = vmul.f32 %v246, %v245
        %v251 = vadd.f32 %v235, %v247
        %v252 = vadd.f32 %v236, %v248
        %v253 = vadd.f32 %v237, %v249
        %v254 = vadd.f32 %v238, %v250
        %s255 = sadd.s32 %s192, 4
        %s256 = sld [smem:[#allocation2 + %s255]]
        %s257 = scalar_lea.vmem %s1, 128
        %v258 = vld [vmem:[%s257] sm:$0xff]
        %v259 = vld [vmem:[%s257 + $0x8] sm:$0xff]
        %v260 = vld [vmem:[%s257 + $0x10] sm:$0xff]
        %v261 = vld [vmem:[%s257 + $0x18] sm:$0xf]
        %v262 = vstv %s256
        %v263 = vmul.f32 %v262, %v258
        %v264 = vmul.f32 %v262, %v259
        %v265 = vmul.f32 %v262, %v260
        %v266 = vmul.f32 %v262, %v261
        %v267 = vadd.f32 %v251, %v263
        %v268 = vadd.f32 %v252, %v264
        %v269 = vadd.f32 %v253, %v265
        %v270 = vadd.f32 %v254, %v266
        %s271 = sadd.s32 %s192, 5
        %s272 = sld [smem:[#allocation2 + %s271]]
        %s273 = scalar_lea.vmem %s1, 160
        %v274 = vld [vmem:[%s273] sm:$0xff]
        %v275 = vld [vmem:[%s273 + $0x8] sm:$0xff]
        %v276 = vld [vmem:[%s273 + $0x10] sm:$0xff]
        %v277 = vld [vmem:[%s273 + $0x18] sm:$0xf]
        %v278 = vstv %s272
        %v279 = vmul.f32 %v278, %v274
        %v280 = vmul.f32 %v278, %v275
        %v281 = vmul.f32 %v278, %v276
        %v282 = vmul.f32 %v278, %v277
        %v283 = vadd.f32 %v267, %v279
        %v284 = vadd.f32 %v268, %v280
        %v285 = vadd.f32 %v269, %v281
        %v286 = vadd.f32 %v270, %v282
        %s287 = sadd.s32 %s192, 6
        %s288 = sld [smem:[#allocation2 + %s287]]
        %s289 = scalar_lea.vmem %s1, 192
        %v290 = vld [vmem:[%s289] sm:$0xff]
        %v291 = vld [vmem:[%s289 + $0x8] sm:$0xff]
        %v292 = vld [vmem:[%s289 + $0x10] sm:$0xff]
        %v293 = vld [vmem:[%s289 + $0x18] sm:$0xf]
        %v294 = vstv %s288
        %v295 = vmul.f32 %v294, %v290
        %v296 = vmul.f32 %v294, %v291
        %v297 = vmul.f32 %v294, %v292
        %v298 = vmul.f32 %v294, %v293
        %v299 = vadd.f32 %v283, %v295
        %v300 = vadd.f32 %v284, %v296
        %v301 = vadd.f32 %v285, %v297
        %v302 = vadd.f32 %v286, %v298
        %s303 = sadd.s32 %s192, 7
        %s304 = sld [smem:[#allocation2 + %s303]]
        %s305 = scalar_lea.vmem %s1, 224
        %v306 = vld [vmem:[%s305] sm:$0xff]
        %v307 = vld [vmem:[%s305 + $0x8] sm:$0xff]
        %v308 = vld [vmem:[%s305 + $0x10] sm:$0xff]
        %v309 = vld [vmem:[%s305 + $0x18] sm:$0xf]
        %v310 = vstv %s304
        %v311 = vmul.f32 %v310, %v306
        %v312 = vmul.f32 %v310, %v307
        %v313 = vmul.f32 %v310, %v308
        %v314 = vmul.f32 %v310, %v309
        %v315 = vadd.f32 %v299, %v311
        %v316 = vadd.f32 %v300, %v312
        %v317 = vadd.f32 %v301, %v313
        %v318 = vadd.f32 %v302, %v314
        %s319 = sadd.s32 %s192, 8
        %s320 = sld [smem:[#allocation2 + %s319]]
        %s321 = scalar_lea.vmem %s1, 256
        %v322 = vld [vmem:[%s321] sm:$0xff]
        %v323 = vld [vmem:[%s321 + $0x8] sm:$0xff]
        %v324 = vld [vmem:[%s321 + $0x10] sm:$0xff]
        %v325 = vld [vmem:[%s321 + $0x18] sm:$0xf]
        %v326 = vstv %s320
        %v327 = vmul.f32 %v326, %v322
        %v328 = vmul.f32 %v326, %v323
        %v329 = vmul.f32 %v326, %v324
        %v330 = vmul.f32 %v326, %v325
        %v331 = vadd.f32 %v315, %v327
        %v332 = vadd.f32 %v316, %v328
        %v333 = vadd.f32 %v317, %v329
        %v334 = vadd.f32 %v318, %v330
        %s335 = sadd.s32 %s192, 9
        %s336 = sld [smem:[#allocation2 + %s335]]
        %s337 = scalar_lea.vmem %s1, 288
        %v338 = vld [vmem:[%s337] sm:$0xff]
        %v339 = vld [vmem:[%s337 + $0x8] sm:$0xff]
        %v340 = vld [vmem:[%s337 + $0x10] sm:$0xff]
        %v341 = vld [vmem:[%s337 + $0x18] sm:$0xf]
        %v342 = vstv %s336
        %v343 = vmul.f32 %v342, %v338
        %v344 = vmul.f32 %v342, %v339
        %v345 = vmul.f32 %v342, %v340
        %v346 = vmul.f32 %v342, %v341
        %v347 = vadd.f32 %v331, %v343
        %v348 = vadd.f32 %v332, %v344
        %v349 = vadd.f32 %v333, %v345
        %v350 = vadd.f32 %v334, %v346
        %s351 = sadd.s32 %s192, 10
        %s352 = sld [smem:[#allocation2 + %s351]]
        %s353 = scalar_lea.vmem %s1, 320
        %v354 = vld [vmem:[%s353] sm:$0xff]
        %v355 = vld [vmem:[%s353 + $0x8] sm:$0xff]
        %v356 = vld [vmem:[%s353 + $0x10] sm:$0xff]
        %v357 = vld [vmem:[%s353 + $0x18] sm:$0xf]
        %v358 = vstv %s352
        %v359 = vmul.f32 %v358, %v354
        %v360 = vmul.f32 %v358, %v355
        %v361 = vmul.f32 %v358, %v356
        %v362 = vmul.f32 %v358, %v357
        %v363 = vadd.f32 %v347, %v359
        %v364 = vadd.f32 %v348, %v360
        %v365 = vadd.f32 %v349, %v361
        %v366 = vadd.f32 %v350, %v362
        %s367 = sadd.s32 %s192, 11
        %s368 = sld [smem:[#allocation2 + %s367]]
        %s369 = scalar_lea.vmem %s1, 352
        %v370 = vld [vmem:[%s369] sm:$0xff]
        %v371 = vld [vmem:[%s369 + $0x8] sm:$0xff]
        %v372 = vld [vmem:[%s369 + $0x10] sm:$0xff]
        %v373 = vld [vmem:[%s369 + $0x18] sm:$0xf]
        %v374 = vstv %s368
        %v375 = vmul.f32 %v374, %v370
        %v376 = vmul.f32 %v374, %v371
        %v377 = vmul.f32 %v374, %v372
        %v378 = vmul.f32 %v374, %v373
        %v379 = vadd.f32 %v363, %v375
        %v380 = vadd.f32 %v364, %v376
        %v381 = vadd.f32 %v365, %v377
        %v382 = vadd.f32 %v366, %v378
        %s383 = sadd.s32 %s192, 12
        %s384 = sld [smem:[#allocation2 + %s383]]
        %s385 = scalar_lea.vmem %s1, 384
        %v386 = vld [vmem:[%s385] sm:$0xff]
        %v387 = vld [vmem:[%s385 + $0x8] sm:$0xff]
        %v388 = vld [vmem:[%s385 + $0x10] sm:$0xff]
        %v389 = vld [vmem:[%s385 + $0x18] sm:$0xf]
        %v390 = vstv %s384
        %v391 = vmul.f32 %v390, %v386
        %v392 = vmul.f32 %v390, %v387
        %v393 = vmul.f32 %v390, %v388
        %v394 = vmul.f32 %v390, %v389
        %v395 = vadd.f32 %v379, %v391
        %v396 = vadd.f32 %v380, %v392
        %v397 = vadd.f32 %v381, %v393
        %v398 = vadd.f32 %v382, %v394
        %s399 = sadd.s32 %s192, 13
        %s400 = sld [smem:[#allocation2 + %s399]]
        %s401 = scalar_lea.vmem %s1, 416
        %v402 = vld [vmem:[%s401] sm:$0xff]
        %v403 = vld [vmem:[%s401 + $0x8] sm:$0xff]
        %v404 = vld [vmem:[%s401 + $0x10] sm:$0xff]
        %v405 = vld [vmem:[%s401 + $0x18] sm:$0xf]
        %v406 = vstv %s400
        %v407 = vmul.f32 %v406, %v402
        %v408 = vmul.f32 %v406, %v403
        %v409 = vmul.f32 %v406, %v404
        %v410 = vmul.f32 %v406, %v405
        %v411 = vadd.f32 %v395, %v407
        %v412 = vadd.f32 %v396, %v408
        %v413 = vadd.f32 %v397, %v409
        %v414 = vadd.f32 %v398, %v410
        %s415 = sadd.s32 %s192, 14
        %s416 = sld [smem:[#allocation2 + %s415]]
        %s417 = scalar_lea.vmem %s1, 448
        %v418 = vld [vmem:[%s417] sm:$0xff]
        %v419 = vld [vmem:[%s417 + $0x8] sm:$0xff]
        %v420 = vld [vmem:[%s417 + $0x10] sm:$0xff]
        %v421 = vld [vmem:[%s417 + $0x18] sm:$0xf]
        %v422 = vstv %s416
        %v423 = vmul.f32 %v422, %v418
        %v424 = vmul.f32 %v422, %v419
        %v425 = vmul.f32 %v422, %v420
        %v426 = vmul.f32 %v422, %v421
        %v427 = vadd.f32 %v411, %v423
        %v428 = vadd.f32 %v412, %v424
        %v429 = vadd.f32 %v413, %v425
        %v430 = vadd.f32 %v414, %v426
        %s431 = sadd.s32 %s192, 15
        %s432 = sld [smem:[#allocation2 + %s431]]
        %s433 = scalar_lea.vmem %s1, 480
        %v434 = vld [vmem:[%s433] sm:$0xff]
        %v435 = vld [vmem:[%s433 + $0x8] sm:$0xff]
        %v436 = vld [vmem:[%s433 + $0x10] sm:$0xff]
        %v437 = vld [vmem:[%s433 + $0x18] sm:$0xf]
        %v438 = vstv %s432
        %v439 = vmul.f32 %v438, %v434
        %v440 = vmul.f32 %v438, %v435
        %v441 = vmul.f32 %v438, %v436
        %v442 = vmul.f32 %v438, %v437
        %v443 = vadd.f32 %v427, %v439
        %v444 = vadd.f32 %v428, %v440
        %v445 = vadd.f32 %v429, %v441
        %v446 = vadd.f32 %v430, %v442
        %v447 = vtanh.pop %v443
        %v448 = vtanh.pop %v444
        %v449 = vtanh.pop %v445
        %v450 = vtanh.pop %v446
        %v451 = vld [vmem:[%s3] sm:$0xff]
        %v452 = vld [vmem:[%s3 + $0x8] sm:$0xff]
        %v453 = vld [vmem:[%s3 + $0x10] sm:$0xff]
        %v454 = vld [vmem:[%s3 + $0x18] sm:$0xff]
        %v455 = vld [vmem:[%s3 + $0x20] sm:$0xff]
        %v456 = vld [vmem:[%s3 + $0x28] sm:$0xff]
        %v457 = vld [vmem:[%s3 + $0x30] sm:$0xff]
        %v458 = vld [vmem:[%s3 + $0x38] sm:$0xff]
        %v459 = vld [vmem:[%s3 + $0x40] sm:$0xff]
        %v460 = vld [vmem:[%s3 + $0x48] sm:$0xff]
        %v461 = vld [vmem:[%s3 + $0x50] sm:$0xff]
        %v462 = vld [vmem:[%s3 + $0x58] sm:$0xff]
        %v463 = vld [vmem:[%s3 + $0x60] sm:$0xff]
        %v464 = vld [vmem:[%s3 + $0x68] sm:$0xff]
        %v465 = vld [vmem:[%s3 + $0x70] sm:$0xff]
        %v466 = vld [vmem:[%s3 + $0x78] sm:$0xff]
        %v467 = vld [vmem:[%s3 + $0x80] sm:$0xff]
        %v468 = vld [vmem:[%s3 + $0x88] sm:$0xff]
        %v469 = vld [vmem:[%s3 + $0x90] sm:$0xf]
        %v470 = vld [vmem:[%s3 + $0x98] sm:$0xf]
        %v471 = vld [vmem:[%s3 + $0xa0] sm:$0xf]
        %v472 = vld [vmem:[%s3 + $0xa8] sm:$0xf]
        %v473 = vld [vmem:[%s3 + $0xb0] sm:$0xf]
        %v474 = vld [vmem:[%s3 + $0xb8] sm:$0xf]
        %vm475 = vcmask 228352
        %v477 = vsel %vm475, %v447, 0
        %v480 = vsel %vm475, %v448, 0
        %v483 = vsel %vm475, %v449, 0
        %v486 = vsel %vm475, %v450, 0
        %vm488 = vcmask 1043456
        %v490 = vsel %vm488, %v469, 0
        %v493 = vsel %vm488, %v470, 0
        %v496 = vsel %vm488, %v471, 0
        %v499 = vsel %vm488, %v472, 0
        %v502 = vsel %vm488, %v473, 0
        %v505 = vsel %vm488, %v474, 0
        %507 = vmatpush.msra.mxu0 0.0
        %508 = vmatpush.msra.mxu0 0.0
        %509 = vmatpush.msra.mxu0 0.0
        %510 = vmatpush.msra.mxu0 0.0
        %511 = vmatpush.msra.mxu0 0.0
        %512 = vmatpush.msra.mxu0 0.0
        %513 = vmatpush.msra.mxu0 0.0
        %514 = vmatpush.msra.mxu0 0.0
        %515 = vmatpush.msra.mxu0 0.0
        %516 = vmatpush.msra.mxu0 0.0
        %517 = vmatpush.msra.mxu0 0.0
        %518 = vmatpush.msra.mxu0 0.0
        %519 = vmatpush.msra.mxu0 %v490
        %520 = vmatpush.msra.mxu0 %v463
        %521 = vmatpush.msra.mxu0 %v457
        %522 = vmatpush.msra.mxu0 %v451
        %523 = vmatmul.f32.gmra.mxu0 %v477
        %v524 = vpop.f32.mrf.mxu0
        %v525 = vadd.f32 0.0, %v524
        %526 = vmatmul.f32.gmra.mxu0 %v480
        %v527 = vpop.f32.mrf.mxu0
        %v528 = vadd.f32 0.0, %v527
        %529 = vmatmul.f32.gmra.mxu0 %v483
        %v530 = vpop.f32.mrf.mxu0
        %v531 = vadd.f32 0.0, %v530
        %532 = vmatmul.f32.gmra.mxu0 %v486
        %v533 = vpop.f32.mrf.mxu0
        %v534 = vadd.f32 0.0, %v533
        %535 = vdwg.mxu0
        %536 = vmatpush.msra.mxu0 0.0
        %537 = vmatpush.msra.mxu0 0.0
        %538 = vmatpush.msra.mxu0 0.0
        %539 = vmatpush.msra.mxu0 0.0
        %540 = vmatpush.msra.mxu0 0.0
        %541 = vmatpush.msra.mxu0 0.0
        %542 = vmatpush.msra.mxu0 0.0
        %543 = vmatpush.msra.mxu0 0.0
        %544 = vmatpush.msra.mxu0 0.0
        %545 = vmatpush.msra.mxu0 0.0
        %546 = vmatpush.msra.mxu0 0.0
        %547 = vmatpush.msra.mxu0 0.0
        %548 = vmatpush.msra.mxu0 %v493
        %549 = vmatpush.msra.mxu0 %v464
        %550 = vmatpush.msra.mxu0 %v458
        %551 = vmatpush.msra.mxu0 %v452
        %552 = vmatmul.f32.gmra.mxu0 %v477
        %v553 = vpop.f32.mrf.mxu0
        %v554 = vadd.f32 0.0, %v553
        %555 = vmatmul.f32.gmra.mxu0 %v480
        %v556 = vpop.f32.mrf.mxu0
        %v557 = vadd.f32 0.0, %v556
        %558 = vmatmul.f32.gmra.mxu0 %v483
        %v559 = vpop.f32.mrf.mxu0
        %v560 = vadd.f32 0.0, %v559
        %561 = vmatmul.f32.gmra.mxu0 %v486
        %v562 = vpop.f32.mrf.mxu0
        %v563 = vadd.f32 0.0, %v562
        %564 = vdwg.mxu0
        %565 = vmatpush.msra.mxu0 0.0
        %566 = vmatpush.msra.mxu0 0.0
        %567 = vmatpush.msra.mxu0 0.0
        %568 = vmatpush.msra.mxu0 0.0
        %569 = vmatpush.msra.mxu0 0.0
        %570 = vmatpush.msra.mxu0 0.0
        %571 = vmatpush.msra.mxu0 0.0
        %572 = vmatpush.msra.mxu0 0.0
        %573 = vmatpush.msra.mxu0 0.0
        %574 = vmatpush.msra.mxu0 0.0
        %575 = vmatpush.msra.mxu0 0.0
        %576 = vmatpush.msra.mxu0 0.0
        %577 = vmatpush.msra.mxu0 %v496
        %578 = vmatpush.msra.mxu0 %v465
        %579 = vmatpush.msra.mxu0 %v459
        %580 = vmatpush.msra.mxu0 %v453
        %581 = vmatmul.f32.gmra.mxu0 %v477
        %v582 = vpop.f32.mrf.mxu0
        %v583 = vadd.f32 0.0, %v582
        %584 = vmatmul.f32.gmra.mxu0 %v480
        %v585 = vpop.f32.mrf.mxu0
        %v586 = vadd.f32 0.0, %v585
        %587 = vmatmul.f32.gmra.mxu0 %v483
        %v588 = vpop.f32.mrf.mxu0
        %v589 = vadd.f32 0.0, %v588
        %590 = vmatmul.f32.gmra.mxu0 %v486
        %v591 = vpop.f32.mrf.mxu0
        %v592 = vadd.f32 0.0, %v591
        %593 = vdwg.mxu0
        %594 = vmatpush.msra.mxu0 0.0
        %595 = vmatpush.msra.mxu0 0.0
        %596 = vmatpush.msra.mxu0 0.0
        %597 = vmatpush.msra.mxu0 0.0
        %598 = vmatpush.msra.mxu0 0.0
        %599 = vmatpush.msra.mxu0 0.0
        %600 = vmatpush.msra.mxu0 0.0
        %601 = vmatpush.msra.mxu0 0.0
        %602 = vmatpush.msra.mxu0 0.0
        %603 = vmatpush.msra.mxu0 0.0
        %604 = vmatpush.msra.mxu0 0.0
        %605 = vmatpush.msra.mxu0 0.0
        %606 = vmatpush.msra.mxu0 %v499
        %607 = vmatpush.msra.mxu0 %v466
        %608 = vmatpush.msra.mxu0 %v460
        %609 = vmatpush.msra.mxu0 %v454
        %610 = vmatmul.f32.gmra.mxu0 %v477
        %v611 = vpop.f32.mrf.mxu0
        %v612 = vadd.f32 0.0, %v611
        %613 = vmatmul.f32.gmra.mxu0 %v480
        %v614 = vpop.f32.mrf.mxu0
        %v615 = vadd.f32 0.0, %v614
        %616 = vmatmul.f32.gmra.mxu0 %v483
        %v617 = vpop.f32.mrf.mxu0
        %v618 = vadd.f32 0.0, %v617
        %619 = vmatmul.f32.gmra.mxu0 %v486
        %v620 = vpop.f32.mrf.mxu0
        %v621 = vadd.f32 0.0, %v620
        %622 = vdwg.mxu0
        %623 = vmatpush.msra.mxu0 0.0
        %624 = vmatpush.msra.mxu0 0.0
        %625 = vmatpush.msra.mxu0 0.0
        %626 = vmatpush.msra.mxu0 0.0
        %627 = vmatpush.msra.mxu0 0.0
        %628 = vmatpush.msra.mxu0 0.0
        %629 = vmatpush.msra.mxu0 0.0
        %630 = vmatpush.msra.mxu0 0.0
        %631 = vmatpush.msra.mxu0 0.0
        %632 = vmatpush.msra.mxu0 0.0
        %633 = vmatpush.msra.mxu0 0.0
        %634 = vmatpush.msra.mxu0 0.0
        %635 = vmatpush.msra.mxu0 %v502
        %636 = vmatpush.msra.mxu0 %v467
        %637 = vmatpush.msra.mxu0 %v461
        %638 = vmatpush.msra.mxu0 %v455
        %639 = vmatmul.f32.gmra.mxu0 %v477
        %v640 = vpop.f32.mrf.mxu0
        %v641 = vadd.f32 0.0, %v640
        %642 = vmatmul.f32.gmra.mxu0 %v480
        %v643 = vpop.f32.mrf.mxu0
        %v644 = vadd.f32 0.0, %v643
        %645 = vmatmul.f32.gmra.mxu0 %v483
        %v646 = vpop.f32.mrf.mxu0
        %v647 = vadd.f32 0.0, %v646
        %648 = vmatmul.f32.gmra.mxu0 %v486
        %v649 = vpop.f32.mrf.mxu0
        %v650 = vadd.f32 0.0, %v649
        %651 = vdwg.mxu0
        %652 = vmatpush.msra.mxu0 0.0
        %653 = vmatpush.msra.mxu0 0.0
        %654 = vmatpush.msra.mxu0 0.0
        %655 = vmatpush.msra.mxu0 0.0
        %656 = vmatpush.msra.mxu0 0.0
        %657 = vmatpush.msra.mxu0 0.0
        %658 = vmatpush.msra.mxu0 0.0
        %659 = vmatpush.msra.mxu0 0.0
        %660 = vmatpush.msra.mxu0 0.0
        %661 = vmatpush.msra.mxu0 0.0
        %662 = vmatpush.msra.mxu0 0.0
        %663 = vmatpush.msra.mxu0 0.0
        %664 = vmatpush.msra.mxu0 %v505
        %665 = vmatpush.msra.mxu0 %v468
        %666 = vmatpush.msra.mxu0 %v462
        %667 = vmatpush.msra.mxu0 %v456
        %668 = vmatmul.f32.gmra.mxu0 %v477
        %v669 = vpop.f32.mrf.mxu0
        %v670 = vadd.f32 0.0, %v669
        %671 = vmatmul.f32.gmra.mxu0 %v480
        %v672 = vpop.f32.mrf.mxu0
        %v673 = vadd.f32 0.0, %v672
        %674 = vmatmul.f32.gmra.mxu0 %v483
        %v675 = vpop.f32.mrf.mxu0
        %v676 = vadd.f32 0.0, %v675
        %677 = vmatmul.f32.gmra.mxu0 %v486
        %v678 = vpop.f32.mrf.mxu0
        %v679 = vadd.f32 0.0, %v678
        %680 = vdwg.mxu0
        %v681 = vld [vmem:[%s2] sm:$0xff]
        %v682 = vld [vmem:[%s2 + $0x8] sm:$0xff]
        %v683 = vld [vmem:[%s2 + $0x10] sm:$0xff]
        %v684 = vld [vmem:[%s2 + $0x18] sm:$0xff]
        %v685 = vld [vmem:[%s2 + $0x20] sm:$0xff]
        %v686 = vld [vmem:[%s2 + $0x28] sm:$0xff]
        %v687 = vld [vmem:[%s2 + $0x30] sm:$0xff]
        %v688 = vld [vmem:[%s2 + $0x38] sm:$0xff]
        %v689 = vld [vmem:[%s2 + $0x40] sm:$0xff]
        %v690 = vld [vmem:[%s2 + $0x48] sm:$0xff]
        %v691 = vld [vmem:[%s2 + $0x50] sm:$0xff]
        %v692 = vld [vmem:[%s2 + $0x58] sm:$0xff]
        %v693 = vld [vmem:[%s2 + $0x60] sm:$0xff]
        %v694 = vld [vmem:[%s2 + $0x68] sm:$0xff]
        %v695 = vld [vmem:[%s2 + $0x70] sm:$0xff]
        %v696 = vld [vmem:[%s2 + $0x78] sm:$0xff]
        %v697 = vld [vmem:[%s2 + $0x80] sm:$0xff]
        %v698 = vld [vmem:[%s2 + $0x88] sm:$0xff]
        %v699 = vld [vmem:[%s2 + $0x90] sm:$0xff]
        %v700 = vld [vmem:[%s2 + $0x98] sm:$0xff]
        %v701 = vld [vmem:[%s2 + $0xa0] sm:$0xff]
        %v702 = vld [vmem:[%s2 + $0xa8] sm:$0xff]
        %v703 = vld [vmem:[%s2 + $0xb0] sm:$0xff]
        %v704 = vld [vmem:[%s2 + $0xb8] sm:$0xff]
        %v705 = vld [vmem:[%s2 + $0xc0] sm:$0xff]
        %v706 = vld [vmem:[%s2 + $0xc8] sm:$0xff]
        %v707 = vld [vmem:[%s2 + $0xd0] sm:$0xff]
        %v708 = vld [vmem:[%s2 + $0xd8] sm:$0xff]
        %v709 = vld [vmem:[%s2 + $0xe0] sm:$0xff]
        %v710 = vld [vmem:[%s2 + $0xe8] sm:$0xff]
        %v711 = vld [vmem:[%s2 + $0xf0] sm:$0xff]
        %v712 = vld [vmem:[%s2 + $0xf8] sm:$0xff]
        %v713 = vld [vmem:[%s2 + $0x100] sm:$0xff]
        %v714 = vld [vmem:[%s2 + $0x108] sm:$0xff]
        %v715 = vld [vmem:[%s2 + $0x110] sm:$0xff]
        %v716 = vld [vmem:[%s2 + $0x118] sm:$0xff]
        %v717 = vld [vmem:[%s2 + $0x120] sm:$0xff]
        %v718 = vld [vmem:[%s2 + $0x128] sm:$0xff]
        %v719 = vld [vmem:[%s2 + $0x130] sm:$0xff]
        %v720 = vld [vmem:[%s2 + $0x138] sm:$0xff]
        %v721 = vld [vmem:[%s2 + $0x140] sm:$0xff]
        %v722 = vld [vmem:[%s2 + $0x148] sm:$0xff]
        %v723 = vld [vmem:[%s2 + $0x150] sm:$0xff]
        %v724 = vld [vmem:[%s2 + $0x158] sm:$0xff]
        %v725 = vld [vmem:[%s2 + $0x160] sm:$0xff]
        %v726 = vld [vmem:[%s2 + $0x168] sm:$0xff]
        %v727 = vld [vmem:[%s2 + $0x170] sm:$0xff]
        %v728 = vld [vmem:[%s2 + $0x178] sm:$0xff]
        %v729 = vld [vmem:[%s2 + $0x180] sm:$0xff]
        %v730 = vld [vmem:[%s2 + $0x188] sm:$0xff]
        %v731 = vld [vmem:[%s2 + $0x190] sm:$0xff]
        %v732 = vld [vmem:[%s2 + $0x198] sm:$0xff]
        %v733 = vld [vmem:[%s2 + $0x1a0] sm:$0xff]
        %v734 = vld [vmem:[%s2 + $0x1a8] sm:$0xff]
        %v735 = vld [vmem:[%s2 + $0x1b0] sm:$0xff]
        %v736 = vld [vmem:[%s2 + $0x1b8] sm:$0xff]
        %v737 = vld [vmem:[%s2 + $0x1c0] sm:$0xff]
        %v738 = vld [vmem:[%s2 + $0x1c8] sm:$0xff]
        %v739 = vld [vmem:[%s2 + $0x1d0] sm:$0xff]
        %v740 = vld [vmem:[%s2 + $0x1d8] sm:$0xff]
        %v741 = vld [vmem:[%s2 + $0x1e0] sm:$0xff]
        %v742 = vld [vmem:[%s2 + $0x1e8] sm:$0xff]
        %v743 = vld [vmem:[%s2 + $0x1f0] sm:$0xff]
        %v744 = vld [vmem:[%s2 + $0x1f8] sm:$0xff]
        %v745 = vld [vmem:[%s2 + $0x200] sm:$0xff]
        %v746 = vld [vmem:[%s2 + $0x208] sm:$0xff]
        %v747 = vld [vmem:[%s2 + $0x210] sm:$0xff]
        %v748 = vld [vmem:[%s2 + $0x218] sm:$0xff]
        %v749 = vld [vmem:[%s2 + $0x220] sm:$0xff]
        %v750 = vld [vmem:[%s2 + $0x228] sm:$0xff]
        %v751 = vld [vmem:[%s2 + $0x230] sm:$0xff]
        %v752 = vld [vmem:[%s2 + $0x238] sm:$0xff]
        %v753 = vld [vmem:[%s2 + $0x240] sm:$0xff]
        %v754 = vld [vmem:[%s2 + $0x248] sm:$0xff]
        %v755 = vld [vmem:[%s2 + $0x250] sm:$0xff]
        %v756 = vld [vmem:[%s2 + $0x258] sm:$0xff]
        %v757 = vld [vmem:[%s2 + $0x260] sm:$0xff]
        %v758 = vld [vmem:[%s2 + $0x268] sm:$0xff]
        %v759 = vld [vmem:[%s2 + $0x270] sm:$0xff]
        %v760 = vld [vmem:[%s2 + $0x278] sm:$0xff]
        %v761 = vld [vmem:[%s2 + $0x280] sm:$0xff]
        %v762 = vld [vmem:[%s2 + $0x288] sm:$0xff]
        %v763 = vld [vmem:[%s2 + $0x290] sm:$0xff]
        %v764 = vld [vmem:[%s2 + $0x298] sm:$0xff]
        %v765 = vld [vmem:[%s2 + $0x2a0] sm:$0xf]
        %v767 = vsel %vm475, %v681, 0
        %v770 = vsel %vm475, %v682, 0
        %v773 = vsel %vm475, %v683, 0
        %v776 = vsel %vm475, %v684, 0
        %v779 = vsel %vm475, %v685, 0
        %v782 = vsel %vm475, %v686, 0
        %v785 = vsel %vm475, %v687, 0
        %v788 = vsel %vm475, %v688, 0
        %v791 = vsel %vm475, %v689, 0
        %v794 = vsel %vm475, %v690, 0
        %v797 = vsel %vm475, %v691, 0
        %v800 = vsel %vm475, %v692, 0
        %v803 = vsel %vm475, %v693, 0
        %v806 = vsel %vm475, %v694, 0
        %v809 = vsel %vm475, %v695, 0
        %v812 = vsel %vm475, %v696, 0
        %v815 = vsel %vm475, %v697, 0
        %v818 = vsel %vm475, %v698, 0
        %v821 = vsel %vm475, %v699, 0
        %v824 = vsel %vm475, %v700, 0
        %v827 = vsel %vm475, %v701, 0
        %v830 = vsel %vm475, %v702, 0
        %v833 = vsel %vm475, %v703, 0
        %v836 = vsel %vm475, %v704, 0
        %v839 = vsel %vm475, %v705, 0
        %v842 = vsel %vm475, %v706, 0
        %v845 = vsel %vm475, %v707, 0
        %v848 = vsel %vm475, %v708, 0
        %v851 = vsel %vm475, %v709, 0
        %v854 = vsel %vm475, %v710, 0
        %v857 = vsel %vm475, %v711, 0
        %v860 = vsel %vm475, %v712, 0
        %v863 = vsel %vm475, %v713, 0
        %v866 = vsel %vm475, %v714, 0
        %v869 = vsel %vm475, %v715, 0
        %v872 = vsel %vm475, %v716, 0
        %v875 = vsel %vm475, %v717, 0
        %v878 = vsel %vm475, %v718, 0
        %v881 = vsel %vm475, %v719, 0
        %v884 = vsel %vm475, %v720, 0
        %v887 = vsel %vm475, %v721, 0
        %v890 = vsel %vm475, %v722, 0
        %v893 = vsel %vm475, %v723, 0
        %v896 = vsel %vm475, %v724, 0
        %v899 = vsel %vm475, %v725, 0
        %v902 = vsel %vm475, %v726, 0
        %v905 = vsel %vm475, %v727, 0
        %v908 = vsel %vm475, %v728, 0
        %v911 = vsel %vm475, %v729, 0
        %v914 = vsel %vm475, %v730, 0
        %v917 = vsel %vm475, %v731, 0
        %v920 = vsel %vm475, %v732, 0
        %v923 = vsel %vm475, %v733, 0
        %v926 = vsel %vm475, %v734, 0
        %v929 = vsel %vm475, %v735, 0
        %v932 = vsel %vm475, %v736, 0
        %v935 = vsel %vm475, %v737, 0
        %v938 = vsel %vm475, %v738, 0
        %v941 = vsel %vm475, %v739, 0
        %v944 = vsel %vm475, %v740, 0
        %v947 = vsel %vm475, %v741, 0
        %v950 = vsel %vm475, %v742, 0
        %v953 = vsel %vm475, %v743, 0
        %v956 = vsel %vm475, %v744, 0
        %v959 = vsel %vm475, %v745, 0
        %v962 = vsel %vm475, %v746, 0
        %v965 = vsel %vm475, %v747, 0
        %v968 = vsel %vm475, %v748, 0
        %v971 = vsel %vm475, %v749, 0
        %v974 = vsel %vm475, %v750, 0
        %v977 = vsel %vm475, %v751, 0
        %v980 = vsel %vm475, %v752, 0
        %v983 = vsel %vm475, %v753, 0
        %v986 = vsel %vm475, %v754, 0
        %v989 = vsel %vm475, %v755, 0
        %v992 = vsel %vm475, %v756, 0
        %v995 = vsel %vm475, %v757, 0
        %v998 = vsel %vm475, %v758, 0
        %v1001 = vsel %vm475, %v759, 0
        %v1004 = vsel %vm475, %v760, 0
        %v1007 = vsel %vm475, %v761, 0
        %v1010 = vsel %vm475, %v762, 0
        %v1013 = vsel %vm475, %v763, 0
        %v1016 = vsel %vm475, %v764, 0
        %v1019 = vsel %vm475, %v765, 0
        %v1022 = vsel %vm488, %v534, 0
        %v1025 = vsel %vm488, %v563, 0
        %v1028 = vsel %vm488, %v592, 0
        %v1031 = vsel %vm488, %v621, 0
        %v1034 = vsel %vm488, %v650, 0
        %v1037 = vsel %vm488, %v679, 0
        %1039 = vmatpush.msra.mxu0 0.0
        %1040 = vmatpush.msra.mxu0 0.0
        %1041 = vmatpush.msra.mxu0 0.0
        %1042 = vmatpush.msra.mxu0 0.0
        %1043 = vmatpush.msra.mxu0 0.0
        %1044 = vmatpush.msra.mxu0 0.0
        %1045 = vmatpush.msra.mxu0 0.0
        %1046 = vmatpush.msra.mxu0 0.0
        %1047 = vmatpush.msra.mxu0 0.0
        %1048 = vmatpush.msra.mxu0 0.0
        %1049 = vmatpush.msra.mxu0 0.0
        %1050 = vmatpush.msra.mxu0 0.0
        %1051 = vmatpush.msra.mxu0 %v1022
        %1052 = vmatpush.msra.mxu0 %v531
        %1053 = vmatpush.msra.mxu0 %v528
        %1054 = vmatpush.msra.mxu0 %v525
        %1055 = vmatmul.f32.gmra.mxu0 %v767
        %v1056 = vpop.f32.mrf.mxu0
        %v1057 = vadd.f32 0.0, %v1056
        %1058 = vmatmul.f32.gmra.mxu0 %v770
        %v1059 = vpop.f32.mrf.mxu0
        %v1060 = vadd.f32 0.0, %v1059
        %1061 = vmatmul.f32.gmra.mxu0 %v773
        %v1062 = vpop.f32.mrf.mxu0
        %v1063 = vadd.f32 0.0, %v1062
        %1064 = vmatmul.f32.gmra.mxu0 %v776
        %v1065 = vpop.f32.mrf.mxu0
        %v1066 = vadd.f32 0.0, %v1065
        %1067 = vmatmul.f32.gmra.mxu0 %v779
        %v1068 = vpop.f32.mrf.mxu0
        %v1069 = vadd.f32 0.0, %v1068
        %1070 = vmatmul.f32.gmra.mxu0 %v782
        %v1071 = vpop.f32.mrf.mxu0
        %v1072 = vadd.f32 0.0, %v1071
        %1073 = vmatmul.f32.gmra.mxu0 %v785
        %v1074 = vpop.f32.mrf.mxu0
        %v1075 = vadd.f32 0.0, %v1074
        %1076 = vmatmul.f32.gmra.mxu0 %v788
        %v1077 = vpop.f32.mrf.mxu0
        %v1078 = vadd.f32 0.0, %v1077
        %1079 = vmatmul.f32.gmra.mxu0 %v791
        %v1080 = vpop.f32.mrf.mxu0
        %v1081 = vadd.f32 0.0, %v1080
        %1082 = vmatmul.f32.gmra.mxu0 %v794
        %v1083 = vpop.f32.mrf.mxu0
        %v1084 = vadd.f32 0.0, %v1083
        %1085 = vmatmul.f32.gmra.mxu0 %v797
        %v1086 = vpop.f32.mrf.mxu0
        %v1087 = vadd.f32 0.0, %v1086
        %1088 = vmatmul.f32.gmra.mxu0 %v800
        %v1089 = vpop.f32.mrf.mxu0
        %v1090 = vadd.f32 0.0, %v1089
        %1091 = vmatmul.f32.gmra.mxu0 %v803
        %v1092 = vpop.f32.mrf.mxu0
        %v1093 = vadd.f32 0.0, %v1092
        %1094 = vmatmul.f32.gmra.mxu0 %v806
        %v1095 = vpop.f32.mrf.mxu0
        %v1096 = vadd.f32 0.0, %v1095
        %1097 = vmatmul.f32.gmra.mxu0 %v809
        %v1098 = vpop.f32.mrf.mxu0
        %v1099 = vadd.f32 0.0, %v1098
        %1100 = vmatmul.f32.gmra.mxu0 %v812
        %v1101 = vpop.f32.mrf.mxu0
        %v1102 = vadd.f32 0.0, %v1101
        %1103 = vmatmul.f32.gmra.mxu0 %v815
        %v1104 = vpop.f32.mrf.mxu0
        %v1105 = vadd.f32 0.0, %v1104
        %1106 = vmatmul.f32.gmra.mxu0 %v818
        %v1107 = vpop.f32.mrf.mxu0
        %v1108 = vadd.f32 0.0, %v1107
        %1109 = vmatmul.f32.gmra.mxu0 %v821
        %v1110 = vpop.f32.mrf.mxu0
        %v1111 = vadd.f32 0.0, %v1110
        %1112 = vmatmul.f32.gmra.mxu0 %v824
        %v1113 = vpop.f32.mrf.mxu0
        %v1114 = vadd.f32 0.0, %v1113
        %1115 = vmatmul.f32.gmra.mxu0 %v827
        %v1116 = vpop.f32.mrf.mxu0
        %v1117 = vadd.f32 0.0, %v1116
        %1118 = vmatmul.f32.gmra.mxu0 %v830
        %v1119 = vpop.f32.mrf.mxu0
        %v1120 = vadd.f32 0.0, %v1119
        %1121 = vmatmul.f32.gmra.mxu0 %v833
        %v1122 = vpop.f32.mrf.mxu0
        %v1123 = vadd.f32 0.0, %v1122
        %1124 = vmatmul.f32.gmra.mxu0 %v836
        %v1125 = vpop.f32.mrf.mxu0
        %v1126 = vadd.f32 0.0, %v1125
        %1127 = vmatmul.f32.gmra.mxu0 %v839
        %v1128 = vpop.f32.mrf.mxu0
        %v1129 = vadd.f32 0.0, %v1128
        %1130 = vmatmul.f32.gmra.mxu0 %v842
        %v1131 = vpop.f32.mrf.mxu0
        %v1132 = vadd.f32 0.0, %v1131
        %1133 = vmatmul.f32.gmra.mxu0 %v845
        %v1134 = vpop.f32.mrf.mxu0
        %v1135 = vadd.f32 0.0, %v1134
        %1136 = vmatmul.f32.gmra.mxu0 %v848
        %v1137 = vpop.f32.mrf.mxu0
        %v1138 = vadd.f32 0.0, %v1137
        %1139 = vmatmul.f32.gmra.mxu0 %v851
        %v1140 = vpop.f32.mrf.mxu0
        %v1141 = vadd.f32 0.0, %v1140
        %1142 = vmatmul.f32.gmra.mxu0 %v854
        %v1143 = vpop.f32.mrf.mxu0
        %v1144 = vadd.f32 0.0, %v1143
        %1145 = vmatmul.f32.gmra.mxu0 %v857
        %v1146 = vpop.f32.mrf.mxu0
        %v1147 = vadd.f32 0.0, %v1146
        %1148 = vmatmul.f32.gmra.mxu0 %v860
        %v1149 = vpop.f32.mrf.mxu0
        %v1150 = vadd.f32 0.0, %v1149
        %1151 = vmatmul.f32.gmra.mxu0 %v863
        %v1152 = vpop.f32.mrf.mxu0
        %v1153 = vadd.f32 0.0, %v1152
        %1154 = vmatmul.f32.gmra.mxu0 %v866
        %v1155 = vpop.f32.mrf.mxu0
        %v1156 = vadd.f32 0.0, %v1155
        %1157 = vmatmul.f32.gmra.mxu0 %v869
        %v1158 = vpop.f32.mrf.mxu0
        %v1159 = vadd.f32 0.0, %v1158
        %1160 = vmatmul.f32.gmra.mxu0 %v872
        %v1161 = vpop.f32.mrf.mxu0
        %v1162 = vadd.f32 0.0, %v1161
        %1163 = vmatmul.f32.gmra.mxu0 %v875
        %v1164 = vpop.f32.mrf.mxu0
        %v1165 = vadd.f32 0.0, %v1164
        %1166 = vmatmul.f32.gmra.mxu0 %v878
        %v1167 = vpop.f32.mrf.mxu0
        %v1168 = vadd.f32 0.0, %v1167
        %1169 = vmatmul.f32.gmra.mxu0 %v881
        %v1170 = vpop.f32.mrf.mxu0
        %v1171 = vadd.f32 0.0, %v1170
        %1172 = vmatmul.f32.gmra.mxu0 %v884
        %v1173 = vpop.f32.mrf.mxu0
        %v1174 = vadd.f32 0.0, %v1173
        %1175 = vmatmul.f32.gmra.mxu0 %v887
        %v1176 = vpop.f32.mrf.mxu0
        %v1177 = vadd.f32 0.0, %v1176
        %1178 = vmatmul.f32.gmra.mxu0 %v890
        %v1179 = vpop.f32.mrf.mxu0
        %v1180 = vadd.f32 0.0, %v1179
        %1181 = vmatmul.f32.gmra.mxu0 %v893
        %v1182 = vpop.f32.mrf.mxu0
        %v1183 = vadd.f32 0.0, %v1182
        %1184 = vmatmul.f32.gmra.mxu0 %v896
        %v1185 = vpop.f32.mrf.mxu0
        %v1186 = vadd.f32 0.0, %v1185
        %1187 = vmatmul.f32.gmra.mxu0 %v899
        %v1188 = vpop.f32.mrf.mxu0
        %v1189 = vadd.f32 0.0, %v1188
        %1190 = vmatmul.f32.gmra.mxu0 %v902
        %v1191 = vpop.f32.mrf.mxu0
        %v1192 = vadd.f32 0.0, %v1191
        %1193 = vmatmul.f32.gmra.mxu0 %v905
        %v1194 = vpop.f32.mrf.mxu0
        %v1195 = vadd.f32 0.0, %v1194
        %1196 = vmatmul.f32.gmra.mxu0 %v908
        %v1197 = vpop.f32.mrf.mxu0
        %v1198 = vadd.f32 0.0, %v1197
        %1199 = vmatmul.f32.gmra.mxu0 %v911
        %v1200 = vpop.f32.mrf.mxu0
        %v1201 = vadd.f32 0.0, %v1200
        %1202 = vmatmul.f32.gmra.mxu0 %v914
        %v1203 = vpop.f32.mrf.mxu0
        %v1204 = vadd.f32 0.0, %v1203
        %1205 = vmatmul.f32.gmra.mxu0 %v917
        %v1206 = vpop.f32.mrf.mxu0
        %v1207 = vadd.f32 0.0, %v1206
        %1208 = vmatmul.f32.gmra.mxu0 %v920
        %v1209 = vpop.f32.mrf.mxu0
        %v1210 = vadd.f32 0.0, %v1209
        %1211 = vmatmul.f32.gmra.mxu0 %v923
        %v1212 = vpop.f32.mrf.mxu0
        %v1213 = vadd.f32 0.0, %v1212
        %1214 = vmatmul.f32.gmra.mxu0 %v926
        %v1215 = vpop.f32.mrf.mxu0
        %v1216 = vadd.f32 0.0, %v1215
        %1217 = vmatmul.f32.gmra.mxu0 %v929
        %v1218 = vpop.f32.mrf.mxu0
        %v1219 = vadd.f32 0.0, %v1218
        %1220 = vmatmul.f32.gmra.mxu0 %v932
        %v1221 = vpop.f32.mrf.mxu0
        %v1222 = vadd.f32 0.0, %v1221
        %1223 = vmatmul.f32.gmra.mxu0 %v935
        %v1224 = vpop.f32.mrf.mxu0
        %v1225 = vadd.f32 0.0, %v1224
        %1226 = vmatmul.f32.gmra.mxu0 %v938
        %v1227 = vpop.f32.mrf.mxu0
        %v1228 = vadd.f32 0.0, %v1227
        %1229 = vmatmul.f32.gmra.mxu0 %v941
        %v1230 = vpop.f32.mrf.mxu0
        %v1231 = vadd.f32 0.0, %v1230
        %1232 = vmatmul.f32.gmra.mxu0 %v944
        %v1233 = vpop.f32.mrf.mxu0
        %v1234 = vadd.f32 0.0, %v1233
        %1235 = vmatmul.f32.gmra.mxu0 %v947
        %v1236 = vpop.f32.mrf.mxu0
        %v1237 = vadd.f32 0.0, %v1236
        %1238 = vmatmul.f32.gmra.mxu0 %v950
        %v1239 = vpop.f32.mrf.mxu0
        %v1240 = vadd.f32 0.0, %v1239
        %1241 = vmatmul.f32.gmra.mxu0 %v953
        %v1242 = vpop.f32.mrf.mxu0
        %v1243 = vadd.f32 0.0, %v1242
        %1244 = vmatmul.f32.gmra.mxu0 %v956
        %v1245 = vpop.f32.mrf.mxu0
        %v1246 = vadd.f32 0.0, %v1245
        %1247 = vmatmul.f32.gmra.mxu0 %v959
        %v1248 = vpop.f32.mrf.mxu0
        %v1249 = vadd.f32 0.0, %v1248
        %1250 = vmatmul.f32.gmra.mxu0 %v962
        %v1251 = vpop.f32.mrf.mxu0
        %v1252 = vadd.f32 0.0, %v1251
        %1253 = vmatmul.f32.gmra.mxu0 %v965
        %v1254 = vpop.f32.mrf.mxu0
        %v1255 = vadd.f32 0.0, %v1254
        %1256 = vmatmul.f32.gmra.mxu0 %v968
        %v1257 = vpop.f32.mrf.mxu0
        %v1258 = vadd.f32 0.0, %v1257
        %1259 = vmatmul.f32.gmra.mxu0 %v971
        %v1260 = vpop.f32.mrf.mxu0
        %v1261 = vadd.f32 0.0, %v1260
        %1262 = vmatmul.f32.gmra.mxu0 %v974
        %v1263 = vpop.f32.mrf.mxu0
        %v1264 = vadd.f32 0.0, %v1263
        %1265 = vmatmul.f32.gmra.mxu0 %v977
        %v1266 = vpop.f32.mrf.mxu0
        %v1267 = vadd.f32 0.0, %v1266
        %1268 = vmatmul.f32.gmra.mxu0 %v980
        %v1269 = vpop.f32.mrf.mxu0
        %v1270 = vadd.f32 0.0, %v1269
        %1271 = vmatmul.f32.gmra.mxu0 %v983
        %v1272 = vpop.f32.mrf.mxu0
        %v1273 = vadd.f32 0.0, %v1272
        %1274 = vmatmul.f32.gmra.mxu0 %v986
        %v1275 = vpop.f32.mrf.mxu0
        %v1276 = vadd.f32 0.0, %v1275
        %1277 = vmatmul.f32.gmra.mxu0 %v989
        %v1278 = vpop.f32.mrf.mxu0
        %v1279 = vadd.f32 0.0, %v1278
        %1280 = vmatmul.f32.gmra.mxu0 %v992
        %v1281 = vpop.f32.mrf.mxu0
        %v1282 = vadd.f32 0.0, %v1281
        %1283 = vmatmul.f32.gmra.mxu0 %v995
        %v1284 = vpop.f32.mrf.mxu0
        %v1285 = vadd.f32 0.0, %v1284
        %1286 = vmatmul.f32.gmra.mxu0 %v998
        %v1287 = vpop.f32.mrf.mxu0
        %v1288 = vadd.f32 0.0, %v1287
        %1289 = vmatmul.f32.gmra.mxu0 %v1001
        %v1290 = vpop.f32.mrf.mxu0
        %v1291 = vadd.f32 0.0, %v1290
        %1292 = vmatmul.f32.gmra.mxu0 %v1004
        %v1293 = vpop.f32.mrf.mxu0
        %v1294 = vadd.f32 0.0, %v1293
        %1295 = vmatmul.f32.gmra.mxu0 %v1007
        %v1296 = vpop.f32.mrf.mxu0
        %v1297 = vadd.f32 0.0, %v1296
        %1298 = vmatmul.f32.gmra.mxu0 %v1010
        %v1299 = vpop.f32.mrf.mxu0
        %v1300 = vadd.f32 0.0, %v1299
        %1301 = vmatmul.f32.gmra.mxu0 %v1013
        %v1302 = vpop.f32.mrf.mxu0
        %v1303 = vadd.f32 0.0, %v1302
        %1304 = vmatmul.f32.gmra.mxu0 %v1016
        %v1305 = vpop.f32.mrf.mxu0
        %v1306 = vadd.f32 0.0, %v1305
        %1307 = vmatmul.f32.gmra.mxu0 %v1019
        %v1308 = vpop.f32.mrf.mxu0
        %v1309 = vadd.f32 0.0, %v1308
        %1310 = vdwg.mxu0
        %1311 = vmatpush.msra.mxu0 0.0
        %1312 = vmatpush.msra.mxu0 0.0
        %1313 = vmatpush.msra.mxu0 0.0
        %1314 = vmatpush.msra.mxu0 0.0
        %1315 = vmatpush.msra.mxu0 0.0
        %1316 = vmatpush.msra.mxu0 0.0
        %1317 = vmatpush.msra.mxu0 0.0
        %1318 = vmatpush.msra.mxu0 0.0
        %1319 = vmatpush.msra.mxu0 0.0
        %1320 = vmatpush.msra.mxu0 0.0
        %1321 = vmatpush.msra.mxu0 0.0
        %1322 = vmatpush.msra.mxu0 0.0
        %1323 = vmatpush.msra.mxu0 %v1025
        %1324 = vmatpush.msra.mxu0 %v560
        %1325 = vmatpush.msra.mxu0 %v557
        %1326 = vmatpush.msra.mxu0 %v554
        %1327 = vmatmul.f32.gmra.mxu0 %v767
        %v1328 = vpop.f32.mrf.mxu0
        %v1329 = vadd.f32 0.0, %v1328
        %1330 = vmatmul.f32.gmra.mxu0 %v770
        %v1331 = vpop.f32.mrf.mxu0
        %v1332 = vadd.f32 0.0, %v1331
        %1333 = vmatmul.f32.gmra.mxu0 %v773
        %v1334 = vpop.f32.mrf.mxu0
        %v1335 = vadd.f32 0.0, %v1334
        %1336 = vmatmul.f32.gmra.mxu0 %v776
        %v1337 = vpop.f32.mrf.mxu0
        %v1338 = vadd.f32 0.0, %v1337
        %1339 = vmatmul.f32.gmra.mxu0 %v779
        %v1340 = vpop.f32.mrf.mxu0
        %v1341 = vadd.f32 0.0, %v1340
        %1342 = vmatmul.f32.gmra.mxu0 %v782
        %v1343 = vpop.f32.mrf.mxu0
        %v1344 = vadd.f32 0.0, %v1343
        %1345 = vmatmul.f32.gmra.mxu0 %v785
        %v1346 = vpop.f32.mrf.mxu0
        %v1347 = vadd.f32 0.0, %v1346
        %1348 = vmatmul.f32.gmra.mxu0 %v788
        %v1349 = vpop.f32.mrf.mxu0
        %v1350 = vadd.f32 0.0, %v1349
        %1351 = vmatmul.f32.gmra.mxu0 %v791
        %v1352 = vpop.f32.mrf.mxu0
        %v1353 = vadd.f32 0.0, %v1352
        %1354 = vmatmul.f32.gmra.mxu0 %v794
        %v1355 = vpop.f32.mrf.mxu0
        %v1356 = vadd.f32 0.0, %v1355
        %1357 = vmatmul.f32.gmra.mxu0 %v797
        %v1358 = vpop.f32.mrf.mxu0
        %v1359 = vadd.f32 0.0, %v1358
        %1360 = vmatmul.f32.gmra.mxu0 %v800
        %v1361 = vpop.f32.mrf.mxu0
        %v1362 = vadd.f32 0.0, %v1361
        %1363 = vmatmul.f32.gmra.mxu0 %v803
        %v1364 = vpop.f32.mrf.mxu0
        %v1365 = vadd.f32 0.0, %v1364
        %1366 = vmatmul.f32.gmra.mxu0 %v806
        %v1367 = vpop.f32.mrf.mxu0
        %v1368 = vadd.f32 0.0, %v1367
        %1369 = vmatmul.f32.gmra.mxu0 %v809
        %v1370 = vpop.f32.mrf.mxu0
        %v1371 = vadd.f32 0.0, %v1370
        %1372 = vmatmul.f32.gmra.mxu0 %v812
        %v1373 = vpop.f32.mrf.mxu0
        %v1374 = vadd.f32 0.0, %v1373
        %1375 = vmatmul.f32.gmra.mxu0 %v815
        %v1376 = vpop.f32.mrf.mxu0
        %v1377 = vadd.f32 0.0, %v1376
        %1378 = vmatmul.f32.gmra.mxu0 %v818
        %v1379 = vpop.f32.mrf.mxu0
        %v1380 = vadd.f32 0.0, %v1379
        %1381 = vmatmul.f32.gmra.mxu0 %v821
        %v1382 = vpop.f32.mrf.mxu0
        %v1383 = vadd.f32 0.0, %v1382
        %1384 = vmatmul.f32.gmra.mxu0 %v824
        %v1385 = vpop.f32.mrf.mxu0
        %v1386 = vadd.f32 0.0, %v1385
        %1387 = vmatmul.f32.gmra.mxu0 %v827
        %v1388 = vpop.f32.mrf.mxu0
        %v1389 = vadd.f32 0.0, %v1388
        %1390 = vmatmul.f32.gmra.mxu0 %v830
        %v1391 = vpop.f32.mrf.mxu0
        %v1392 = vadd.f32 0.0, %v1391
        %1393 = vmatmul.f32.gmra.mxu0 %v833
        %v1394 = vpop.f32.mrf.mxu0
        %v1395 = vadd.f32 0.0, %v1394
        %1396 = vmatmul.f32.gmra.mxu0 %v836
        %v1397 = vpop.f32.mrf.mxu0
        %v1398 = vadd.f32 0.0, %v1397
        %1399 = vmatmul.f32.gmra.mxu0 %v839
        %v1400 = vpop.f32.mrf.mxu0
        %v1401 = vadd.f32 0.0, %v1400
        %1402 = vmatmul.f32.gmra.mxu0 %v842
        %v1403 = vpop.f32.mrf.mxu0
        %v1404 = vadd.f32 0.0, %v1403
        %1405 = vmatmul.f32.gmra.mxu0 %v845
        %v1406 = vpop.f32.mrf.mxu0
        %v1407 = vadd.f32 0.0, %v1406
        %1408 = vmatmul.f32.gmra.mxu0 %v848
        %v1409 = vpop.f32.mrf.mxu0
        %v1410 = vadd.f32 0.0, %v1409
        %1411 = vmatmul.f32.gmra.mxu0 %v851
        %v1412 = vpop.f32.mrf.mxu0
        %v1413 = vadd.f32 0.0, %v1412
        %1414 = vmatmul.f32.gmra.mxu0 %v854
        %v1415 = vpop.f32.mrf.mxu0
        %v1416 = vadd.f32 0.0, %v1415
        %1417 = vmatmul.f32.gmra.mxu0 %v857
        %v1418 = vpop.f32.mrf.mxu0
        %v1419 = vadd.f32 0.0, %v1418
        %1420 = vmatmul.f32.gmra.mxu0 %v860
        %v1421 = vpop.f32.mrf.mxu0
        %v1422 = vadd.f32 0.0, %v1421
        %1423 = vmatmul.f32.gmra.mxu0 %v863
        %v1424 = vpop.f32.mrf.mxu0
        %v1425 = vadd.f32 0.0, %v1424
        %1426 = vmatmul.f32.gmra.mxu0 %v866
        %v1427 = vpop.f32.mrf.mxu0
        %v1428 = vadd.f32 0.0, %v1427
        %1429 = vmatmul.f32.gmra.mxu0 %v869
        %v1430 = vpop.f32.mrf.mxu0
        %v1431 = vadd.f32 0.0, %v1430
        %1432 = vmatmul.f32.gmra.mxu0 %v872
        %v1433 = vpop.f32.mrf.mxu0
        %v1434 = vadd.f32 0.0, %v1433
        %1435 = vmatmul.f32.gmra.mxu0 %v875
        %v1436 = vpop.f32.mrf.mxu0
        %v1437 = vadd.f32 0.0, %v1436
        %1438 = vmatmul.f32.gmra.mxu0 %v878
        %v1439 = vpop.f32.mrf.mxu0
        %v1440 = vadd.f32 0.0, %v1439
        %1441 = vmatmul.f32.gmra.mxu0 %v881
        %v1442 = vpop.f32.mrf.mxu0
        %v1443 = vadd.f32 0.0, %v1442
        %1444 = vmatmul.f32.gmra.mxu0 %v884
        %v1445 = vpop.f32.mrf.mxu0
        %v1446 = vadd.f32 0.0, %v1445
        %1447 = vmatmul.f32.gmra.mxu0 %v887
        %v1448 = vpop.f32.mrf.mxu0
        %v1449 = vadd.f32 0.0, %v1448
        %1450 = vmatmul.f32.gmra.mxu0 %v890
        %v1451 = vpop.f32.mrf.mxu0
        %v1452 = vadd.f32 0.0, %v1451
        %1453 = vmatmul.f32.gmra.mxu0 %v893
        %v1454 = vpop.f32.mrf.mxu0
        %v1455 = vadd.f32 0.0, %v1454
        %1456 = vmatmul.f32.gmra.mxu0 %v896
        %v1457 = vpop.f32.mrf.mxu0
        %v1458 = vadd.f32 0.0, %v1457
        %1459 = vmatmul.f32.gmra.mxu0 %v899
        %v1460 = vpop.f32.mrf.mxu0
        %v1461 = vadd.f32 0.0, %v1460
        %1462 = vmatmul.f32.gmra.mxu0 %v902
        %v1463 = vpop.f32.mrf.mxu0
        %v1464 = vadd.f32 0.0, %v1463
        %1465 = vmatmul.f32.gmra.mxu0 %v905
        %v1466 = vpop.f32.mrf.mxu0
        %v1467 = vadd.f32 0.0, %v1466
        %1468 = vmatmul.f32.gmra.mxu0 %v908
        %v1469 = vpop.f32.mrf.mxu0
        %v1470 = vadd.f32 0.0, %v1469
        %1471 = vmatmul.f32.gmra.mxu0 %v911
        %v1472 = vpop.f32.mrf.mxu0
        %v1473 = vadd.f32 0.0, %v1472
        %1474 = vmatmul.f32.gmra.mxu0 %v914
        %v1475 = vpop.f32.mrf.mxu0
        %v1476 = vadd.f32 0.0, %v1475
        %1477 = vmatmul.f32.gmra.mxu0 %v917
        %v1478 = vpop.f32.mrf.mxu0
        %v1479 = vadd.f32 0.0, %v1478
        %1480 = vmatmul.f32.gmra.mxu0 %v920
        %v1481 = vpop.f32.mrf.mxu0
        %v1482 = vadd.f32 0.0, %v1481
        %1483 = vmatmul.f32.gmra.mxu0 %v923
        %v1484 = vpop.f32.mrf.mxu0
        %v1485 = vadd.f32 0.0, %v1484
        %1486 = vmatmul.f32.gmra.mxu0 %v926
        %v1487 = vpop.f32.mrf.mxu0
        %v1488 = vadd.f32 0.0, %v1487
        %1489 = vmatmul.f32.gmra.mxu0 %v929
        %v1490 = vpop.f32.mrf.mxu0
        %v1491 = vadd.f32 0.0, %v1490
        %1492 = vmatmul.f32.gmra.mxu0 %v932
        %v1493 = vpop.f32.mrf.mxu0
        %v1494 = vadd.f32 0.0, %v1493
        %1495 = vmatmul.f32.gmra.mxu0 %v935
        %v1496 = vpop.f32.mrf.mxu0
        %v1497 = vadd.f32 0.0, %v1496
        %1498 = vmatmul.f32.gmra.mxu0 %v938
        %v1499 = vpop.f32.mrf.mxu0
        %v1500 = vadd.f32 0.0, %v1499
        %1501 = vmatmul.f32.gmra.mxu0 %v941
        %v1502 = vpop.f32.mrf.mxu0
        %v1503 = vadd.f32 0.0, %v1502
        %1504 = vmatmul.f32.gmra.mxu0 %v944
        %v1505 = vpop.f32.mrf.mxu0
        %v1506 = vadd.f32 0.0, %v1505
        %1507 = vmatmul.f32.gmra.mxu0 %v947
        %v1508 = vpop.f32.mrf.mxu0
        %v1509 = vadd.f32 0.0, %v1508
        %1510 = vmatmul.f32.gmra.mxu0 %v950
        %v1511 = vpop.f32.mrf.mxu0
        %v1512 = vadd.f32 0.0, %v1511
        %1513 = vmatmul.f32.gmra.mxu0 %v953
        %v1514 = vpop.f32.mrf.mxu0
        %v1515 = vadd.f32 0.0, %v1514
        %1516 = vmatmul.f32.gmra.mxu0 %v956
        %v1517 = vpop.f32.mrf.mxu0
        %v1518 = vadd.f32 0.0, %v1517
        %1519 = vmatmul.f32.gmra.mxu0 %v959
        %v1520 = vpop.f32.mrf.mxu0
        %v1521 = vadd.f32 0.0, %v1520
        %1522 = vmatmul.f32.gmra.mxu0 %v962
        %v1523 = vpop.f32.mrf.mxu0
        %v1524 = vadd.f32 0.0, %v1523
        %1525 = vmatmul.f32.gmra.mxu0 %v965
        %v1526 = vpop.f32.mrf.mxu0
        %v1527 = vadd.f32 0.0, %v1526
        %1528 = vmatmul.f32.gmra.mxu0 %v968
        %v1529 = vpop.f32.mrf.mxu0
        %v1530 = vadd.f32 0.0, %v1529
        %1531 = vmatmul.f32.gmra.mxu0 %v971
        %v1532 = vpop.f32.mrf.mxu0
        %v1533 = vadd.f32 0.0, %v1532
        %1534 = vmatmul.f32.gmra.mxu0 %v974
        %v1535 = vpop.f32.mrf.mxu0
        %v1536 = vadd.f32 0.0, %v1535
        %1537 = vmatmul.f32.gmra.mxu0 %v977
        %v1538 = vpop.f32.mrf.mxu0
        %v1539 = vadd.f32 0.0, %v1538
        %1540 = vmatmul.f32.gmra.mxu0 %v980
        %v1541 = vpop.f32.mrf.mxu0
        %v1542 = vadd.f32 0.0, %v1541
        %1543 = vmatmul.f32.gmra.mxu0 %v983
        %v1544 = vpop.f32.mrf.mxu0
        %v1545 = vadd.f32 0.0, %v1544
        %1546 = vmatmul.f32.gmra.mxu0 %v986
        %v1547 = vpop.f32.mrf.mxu0
        %v1548 = vadd.f32 0.0, %v1547
        %1549 = vmatmul.f32.gmra.mxu0 %v989
        %v1550 = vpop.f32.mrf.mxu0
        %v1551 = vadd.f32 0.0, %v1550
        %1552 = vmatmul.f32.gmra.mxu0 %v992
        %v1553 = vpop.f32.mrf.mxu0
        %v1554 = vadd.f32 0.0, %v1553
        %1555 = vmatmul.f32.gmra.mxu0 %v995
        %v1556 = vpop.f32.mrf.mxu0
        %v1557 = vadd.f32 0.0, %v1556
        %1558 = vmatmul.f32.gmra.mxu0 %v998
        %v1559 = vpop.f32.mrf.mxu0
        %v1560 = vadd.f32 0.0, %v1559
        %1561 = vmatmul.f32.gmra.mxu0 %v1001
        %v1562 = vpop.f32.mrf.mxu0
        %v1563 = vadd.f32 0.0, %v1562
        %1564 = vmatmul.f32.gmra.mxu0 %v1004
        %v1565 = vpop.f32.mrf.mxu0
        %v1566 = vadd.f32 0.0, %v1565
        %1567 = vmatmul.f32.gmra.mxu0 %v1007
        %v1568 = vpop.f32.mrf.mxu0
        %v1569 = vadd.f32 0.0, %v1568
        %1570 = vmatmul.f32.gmra.mxu0 %v1010
        %v1571 = vpop.f32.mrf.mxu0
        %v1572 = vadd.f32 0.0, %v1571
        %1573 = vmatmul.f32.gmra.mxu0 %v1013
        %v1574 = vpop.f32.mrf.mxu0
        %v1575 = vadd.f32 0.0, %v1574
        %1576 = vmatmul.f32.gmra.mxu0 %v1016
        %v1577 = vpop.f32.mrf.mxu0
        %v1578 = vadd.f32 0.0, %v1577
        %1579 = vmatmul.f32.gmra.mxu0 %v1019
        %v1580 = vpop.f32.mrf.mxu0
        %v1581 = vadd.f32 0.0, %v1580
        %1582 = vdwg.mxu0
        %1583 = vmatpush.msra.mxu0 0.0
        %1584 = vmatpush.msra.mxu0 0.0
        %1585 = vmatpush.msra.mxu0 0.0
        %1586 = vmatpush.msra.mxu0 0.0
        %1587 = vmatpush.msra.mxu0 0.0
        %1588 = vmatpush.msra.mxu0 0.0
        %1589 = vmatpush.msra.mxu0 0.0
        %1590 = vmatpush.msra.mxu0 0.0
        %1591 = vmatpush.msra.mxu0 0.0
        %1592 = vmatpush.msra.mxu0 0.0
        %1593 = vmatpush.msra.mxu0 0.0
        %1594 = vmatpush.msra.mxu0 0.0
        %1595 = vmatpush.msra.mxu0 %v1028
        %1596 = vmatpush.msra.mxu0 %v589
        %1597 = vmatpush.msra.mxu0 %v586
        %1598 = vmatpush.msra.mxu0 %v583
        %1599 = vmatmul.f32.gmra.mxu0 %v767
        %v1600 = vpop.f32.mrf.mxu0
        %v1601 = vadd.f32 0.0, %v1600
        %1602 = vmatmul.f32.gmra.mxu0 %v770
        %v1603 = vpop.f32.mrf.mxu0
        %v1604 = vadd.f32 0.0, %v1603
        %1605 = vmatmul.f32.gmra.mxu0 %v773
        %v1606 = vpop.f32.mrf.mxu0
        %v1607 = vadd.f32 0.0, %v1606
        %1608 = vmatmul.f32.gmra.mxu0 %v776
        %v1609 = vpop.f32.mrf.mxu0
        %v1610 = vadd.f32 0.0, %v1609
        %1611 = vmatmul.f32.gmra.mxu0 %v779
        %v1612 = vpop.f32.mrf.mxu0
        %v1613 = vadd.f32 0.0, %v1612
        %1614 = vmatmul.f32.gmra.mxu0 %v782
        %v1615 = vpop.f32.mrf.mxu0
        %v1616 = vadd.f32 0.0, %v1615
        %1617 = vmatmul.f32.gmra.mxu0 %v785
        %v1618 = vpop.f32.mrf.mxu0
        %v1619 = vadd.f32 0.0, %v1618
        %1620 = vmatmul.f32.gmra.mxu0 %v788
        %v1621 = vpop.f32.mrf.mxu0
        %v1622 = vadd.f32 0.0, %v1621
        %1623 = vmatmul.f32.gmra.mxu0 %v791
        %v1624 = vpop.f32.mrf.mxu0
        %v1625 = vadd.f32 0.0, %v1624
        %1626 = vmatmul.f32.gmra.mxu0 %v794
        %v1627 = vpop.f32.mrf.mxu0
        %v1628 = vadd.f32 0.0, %v1627
        %1629 = vmatmul.f32.gmra.mxu0 %v797
        %v1630 = vpop.f32.mrf.mxu0
        %v1631 = vadd.f32 0.0, %v1630
        %1632 = vmatmul.f32.gmra.mxu0 %v800
        %v1633 = vpop.f32.mrf.mxu0
        %v1634 = vadd.f32 0.0, %v1633
        %1635 = vmatmul.f32.gmra.mxu0 %v803
        %v1636 = vpop.f32.mrf.mxu0
        %v1637 = vadd.f32 0.0, %v1636
        %1638 = vmatmul.f32.gmra.mxu0 %v806
        %v1639 = vpop.f32.mrf.mxu0
        %v1640 = vadd.f32 0.0, %v1639
        %1641 = vmatmul.f32.gmra.mxu0 %v809
        %v1642 = vpop.f32.mrf.mxu0
        %v1643 = vadd.f32 0.0, %v1642
        %1644 = vmatmul.f32.gmra.mxu0 %v812
        %v1645 = vpop.f32.mrf.mxu0
        %v1646 = vadd.f32 0.0, %v1645
        %1647 = vmatmul.f32.gmra.mxu0 %v815
        %v1648 = vpop.f32.mrf.mxu0
        %v1649 = vadd.f32 0.0, %v1648
        %1650 = vmatmul.f32.gmra.mxu0 %v818
        %v1651 = vpop.f32.mrf.mxu0
        %v1652 = vadd.f32 0.0, %v1651
        %1653 = vmatmul.f32.gmra.mxu0 %v821
        %v1654 = vpop.f32.mrf.mxu0
        %v1655 = vadd.f32 0.0, %v1654
        %1656 = vmatmul.f32.gmra.mxu0 %v824
        %v1657 = vpop.f32.mrf.mxu0
        %v1658 = vadd.f32 0.0, %v1657
        %1659 = vmatmul.f32.gmra.mxu0 %v827
        %v1660 = vpop.f32.mrf.mxu0
        %v1661 = vadd.f32 0.0, %v1660
        %1662 = vmatmul.f32.gmra.mxu0 %v830
        %v1663 = vpop.f32.mrf.mxu0
        %v1664 = vadd.f32 0.0, %v1663
        %1665 = vmatmul.f32.gmra.mxu0 %v833
        %v1666 = vpop.f32.mrf.mxu0
        %v1667 = vadd.f32 0.0, %v1666
        %1668 = vmatmul.f32.gmra.mxu0 %v836
        %v1669 = vpop.f32.mrf.mxu0
        %v1670 = vadd.f32 0.0, %v1669
        %1671 = vmatmul.f32.gmra.mxu0 %v839
        %v1672 = vpop.f32.mrf.mxu0
        %v1673 = vadd.f32 0.0, %v1672
        %1674 = vmatmul.f32.gmra.mxu0 %v842
        %v1675 = vpop.f32.mrf.mxu0
        %v1676 = vadd.f32 0.0, %v1675
        %1677 = vmatmul.f32.gmra.mxu0 %v845
        %v1678 = vpop.f32.mrf.mxu0
        %v1679 = vadd.f32 0.0, %v1678
        %1680 = vmatmul.f32.gmra.mxu0 %v848
        %v1681 = vpop.f32.mrf.mxu0
        %v1682 = vadd.f32 0.0, %v1681
        %1683 = vmatmul.f32.gmra.mxu0 %v851
        %v1684 = vpop.f32.mrf.mxu0
        %v1685 = vadd.f32 0.0, %v1684
        %1686 = vmatmul.f32.gmra.mxu0 %v854
        %v1687 = vpop.f32.mrf.mxu0
        %v1688 = vadd.f32 0.0, %v1687
        %1689 = vmatmul.f32.gmra.mxu0 %v857
        %v1690 = vpop.f32.mrf.mxu0
        %v1691 = vadd.f32 0.0, %v1690
        %1692 = vmatmul.f32.gmra.mxu0 %v860
        %v1693 = vpop.f32.mrf.mxu0
        %v1694 = vadd.f32 0.0, %v1693
        %1695 = vmatmul.f32.gmra.mxu0 %v863
        %v1696 = vpop.f32.mrf.mxu0
        %v1697 = vadd.f32 0.0, %v1696
        %1698 = vmatmul.f32.gmra.mxu0 %v866
        %v1699 = vpop.f32.mrf.mxu0
        %v1700 = vadd.f32 0.0, %v1699
        %1701 = vmatmul.f32.gmra.mxu0 %v869
        %v1702 = vpop.f32.mrf.mxu0
        %v1703 = vadd.f32 0.0, %v1702
        %1704 = vmatmul.f32.gmra.mxu0 %v872
        %v1705 = vpop.f32.mrf.mxu0
        %v1706 = vadd.f32 0.0, %v1705
        %1707 = vmatmul.f32.gmra.mxu0 %v875
        %v1708 = vpop.f32.mrf.mxu0
        %v1709 = vadd.f32 0.0, %v1708
        %1710 = vmatmul.f32.gmra.mxu0 %v878
        %v1711 = vpop.f32.mrf.mxu0
        %v1712 = vadd.f32 0.0, %v1711
        %1713 = vmatmul.f32.gmra.mxu0 %v881
        %v1714 = vpop.f32.mrf.mxu0
        %v1715 = vadd.f32 0.0, %v1714
        %1716 = vmatmul.f32.gmra.mxu0 %v884
        %v1717 = vpop.f32.mrf.mxu0
        %v1718 = vadd.f32 0.0, %v1717
        %1719 = vmatmul.f32.gmra.mxu0 %v887
        %v1720 = vpop.f32.mrf.mxu0
        %v1721 = vadd.f32 0.0, %v1720
        %1722 = vmatmul.f32.gmra.mxu0 %v890
        %v1723 = vpop.f32.mrf.mxu0
        %v1724 = vadd.f32 0.0, %v1723
        %1725 = vmatmul.f32.gmra.mxu0 %v893
        %v1726 = vpop.f32.mrf.mxu0
        %v1727 = vadd.f32 0.0, %v1726
        %1728 = vmatmul.f32.gmra.mxu0 %v896
        %v1729 = vpop.f32.mrf.mxu0
        %v1730 = vadd.f32 0.0, %v1729
        %1731 = vmatmul.f32.gmra.mxu0 %v899
        %v1732 = vpop.f32.mrf.mxu0
        %v1733 = vadd.f32 0.0, %v1732
        %1734 = vmatmul.f32.gmra.mxu0 %v902
        %v1735 = vpop.f32.mrf.mxu0
        %v1736 = vadd.f32 0.0, %v1735
        %1737 = vmatmul.f32.gmra.mxu0 %v905
        %v1738 = vpop.f32.mrf.mxu0
        %v1739 = vadd.f32 0.0, %v1738
        %1740 = vmatmul.f32.gmra.mxu0 %v908
        %v1741 = vpop.f32.mrf.mxu0
        %v1742 = vadd.f32 0.0, %v1741
        %1743 = vmatmul.f32.gmra.mxu0 %v911
        %v1744 = vpop.f32.mrf.mxu0
        %v1745 = vadd.f32 0.0, %v1744
        %1746 = vmatmul.f32.gmra.mxu0 %v914
        %v1747 = vpop.f32.mrf.mxu0
        %v1748 = vadd.f32 0.0, %v1747
        %1749 = vmatmul.f32.gmra.mxu0 %v917
        %v1750 = vpop.f32.mrf.mxu0
        %v1751 = vadd.f32 0.0, %v1750
        %1752 = vmatmul.f32.gmra.mxu0 %v920
        %v1753 = vpop.f32.mrf.mxu0
        %v1754 = vadd.f32 0.0, %v1753
        %1755 = vmatmul.f32.gmra.mxu0 %v923
        %v1756 = vpop.f32.mrf.mxu0
        %v1757 = vadd.f32 0.0, %v1756
        %1758 = vmatmul.f32.gmra.mxu0 %v926
        %v1759 = vpop.f32.mrf.mxu0
        %v1760 = vadd.f32 0.0, %v1759
        %1761 = vmatmul.f32.gmra.mxu0 %v929
        %v1762 = vpop.f32.mrf.mxu0
        %v1763 = vadd.f32 0.0, %v1762
        %1764 = vmatmul.f32.gmra.mxu0 %v932
        %v1765 = vpop.f32.mrf.mxu0
        %v1766 = vadd.f32 0.0, %v1765
        %1767 = vmatmul.f32.gmra.mxu0 %v935
        %v1768 = vpop.f32.mrf.mxu0
        %v1769 = vadd.f32 0.0, %v1768
        %1770 = vmatmul.f32.gmra.mxu0 %v938
        %v1771 = vpop.f32.mrf.mxu0
        %v1772 = vadd.f32 0.0, %v1771
        %1773 = vmatmul.f32.gmra.mxu0 %v941
        %v1774 = vpop.f32.mrf.mxu0
        %v1775 = vadd.f32 0.0, %v1774
        %1776 = vmatmul.f32.gmra.mxu0 %v944
        %v1777 = vpop.f32.mrf.mxu0
        %v1778 = vadd.f32 0.0, %v1777
        %1779 = vmatmul.f32.gmra.mxu0 %v947
        %v1780 = vpop.f32.mrf.mxu0
        %v1781 = vadd.f32 0.0, %v1780
        %1782 = vmatmul.f32.gmra.mxu0 %v950
        %v1783 = vpop.f32.mrf.mxu0
        %v1784 = vadd.f32 0.0, %v1783
        %1785 = vmatmul.f32.gmra.mxu0 %v953
        %v1786 = vpop.f32.mrf.mxu0
        %v1787 = vadd.f32 0.0, %v1786
        %1788 = vmatmul.f32.gmra.mxu0 %v956
        %v1789 = vpop.f32.mrf.mxu0
        %v1790 = vadd.f32 0.0, %v1789
        %1791 = vmatmul.f32.gmra.mxu0 %v959
        %v1792 = vpop.f32.mrf.mxu0
        %v1793 = vadd.f32 0.0, %v1792
        %1794 = vmatmul.f32.gmra.mxu0 %v962
        %v1795 = vpop.f32.mrf.mxu0
        %v1796 = vadd.f32 0.0, %v1795
        %1797 = vmatmul.f32.gmra.mxu0 %v965
        %v1798 = vpop.f32.mrf.mxu0
        %v1799 = vadd.f32 0.0, %v1798
        %1800 = vmatmul.f32.gmra.mxu0 %v968
        %v1801 = vpop.f32.mrf.mxu0
        %v1802 = vadd.f32 0.0, %v1801
        %1803 = vmatmul.f32.gmra.mxu0 %v971
        %v1804 = vpop.f32.mrf.mxu0
        %v1805 = vadd.f32 0.0, %v1804
        %1806 = vmatmul.f32.gmra.mxu0 %v974
        %v1807 = vpop.f32.mrf.mxu0
        %v1808 = vadd.f32 0.0, %v1807
        %1809 = vmatmul.f32.gmra.mxu0 %v977
        %v1810 = vpop.f32.mrf.mxu0
        %v1811 = vadd.f32 0.0, %v1810
        %1812 = vmatmul.f32.gmra.mxu0 %v980
        %v1813 = vpop.f32.mrf.mxu0
        %v1814 = vadd.f32 0.0, %v1813
        %1815 = vmatmul.f32.gmra.mxu0 %v983
        %v1816 = vpop.f32.mrf.mxu0
        %v1817 = vadd.f32 0.0, %v1816
        %1818 = vmatmul.f32.gmra.mxu0 %v986
        %v1819 = vpop.f32.mrf.mxu0
        %v1820 = vadd.f32 0.0, %v1819
        %1821 = vmatmul.f32.gmra.mxu0 %v989
        %v1822 = vpop.f32.mrf.mxu0
        %v1823 = vadd.f32 0.0, %v1822
        %1824 = vmatmul.f32.gmra.mxu0 %v992
        %v1825 = vpop.f32.mrf.mxu0
        %v1826 = vadd.f32 0.0, %v1825
        %1827 = vmatmul.f32.gmra.mxu0 %v995
        %v1828 = vpop.f32.mrf.mxu0
        %v1829 = vadd.f32 0.0, %v1828
        %1830 = vmatmul.f32.gmra.mxu0 %v998
        %v1831 = vpop.f32.mrf.mxu0
        %v1832 = vadd.f32 0.0, %v1831
        %1833 = vmatmul.f32.gmra.mxu0 %v1001
        %v1834 = vpop.f32.mrf.mxu0
        %v1835 = vadd.f32 0.0, %v1834
        %1836 = vmatmul.f32.gmra.mxu0 %v1004
        %v1837 = vpop.f32.mrf.mxu0
        %v1838 = vadd.f32 0.0, %v1837
        %1839 = vmatmul.f32.gmra.mxu0 %v1007
        %v1840 = vpop.f32.mrf.mxu0
        %v1841 = vadd.f32 0.0, %v1840
        %1842 = vmatmul.f32.gmra.mxu0 %v1010
        %v1843 = vpop.f32.mrf.mxu0
        %v1844 = vadd.f32 0.0, %v1843
        %1845 = vmatmul.f32.gmra.mxu0 %v1013
        %v1846 = vpop.f32.mrf.mxu0
        %v1847 = vadd.f32 0.0, %v1846
        %1848 = vmatmul.f32.gmra.mxu0 %v1016
        %v1849 = vpop.f32.mrf.mxu0
        %v1850 = vadd.f32 0.0, %v1849
        %1851 = vmatmul.f32.gmra.mxu0 %v1019
        %v1852 = vpop.f32.mrf.mxu0
        %v1853 = vadd.f32 0.0, %v1852
        %1854 = vdwg.mxu0
        %1855 = vmatpush.msra.mxu0 0.0
        %1856 = vmatpush.msra.mxu0 0.0
        %1857 = vmatpush.msra.mxu0 0.0
        %1858 = vmatpush.msra.mxu0 0.0
        %1859 = vmatpush.msra.mxu0 0.0
        %1860 = vmatpush.msra.mxu0 0.0
        %1861 = vmatpush.msra.mxu0 0.0
        %1862 = vmatpush.msra.mxu0 0.0
        %1863 = vmatpush.msra.mxu0 0.0
        %1864 = vmatpush.msra.mxu0 0.0
        %1865 = vmatpush.msra.mxu0 0.0
        %1866 = vmatpush.msra.mxu0 0.0
        %1867 = vmatpush.msra.mxu0 %v1031
        %1868 = vmatpush.msra.mxu0 %v618
        %1869 = vmatpush.msra.mxu0 %v615
        %1870 = vmatpush.msra.mxu0 %v612
        %1871 = vmatmul.f32.gmra.mxu0 %v767
        %v1872 = vpop.f32.mrf.mxu0
        %v1873 = vadd.f32 0.0, %v1872
        %1874 = vmatmul.f32.gmra.mxu0 %v770
        %v1875 = vpop.f32.mrf.mxu0
        %v1876 = vadd.f32 0.0, %v1875
        %1877 = vmatmul.f32.gmra.mxu0 %v773
        %v1878 = vpop.f32.mrf.mxu0
        %v1879 = vadd.f32 0.0, %v1878
        %1880 = vmatmul.f32.gmra.mxu0 %v776
        %v1881 = vpop.f32.mrf.mxu0
        %v1882 = vadd.f32 0.0, %v1881
        %1883 = vmatmul.f32.gmra.mxu0 %v779
        %v1884 = vpop.f32.mrf.mxu0
        %v1885 = vadd.f32 0.0, %v1884
        %1886 = vmatmul.f32.gmra.mxu0 %v782
        %v1887 = vpop.f32.mrf.mxu0
        %v1888 = vadd.f32 0.0, %v1887
        %1889 = vmatmul.f32.gmra.mxu0 %v785
        %v1890 = vpop.f32.mrf.mxu0
        %v1891 = vadd.f32 0.0, %v1890
        %1892 = vmatmul.f32.gmra.mxu0 %v788
        %v1893 = vpop.f32.mrf.mxu0
        %v1894 = vadd.f32 0.0, %v1893
        %1895 = vmatmul.f32.gmra.mxu0 %v791
        %v1896 = vpop.f32.mrf.mxu0
        %v1897 = vadd.f32 0.0, %v1896
        %1898 = vmatmul.f32.gmra.mxu0 %v794
        %v1899 = vpop.f32.mrf.mxu0
        %v1900 = vadd.f32 0.0, %v1899
        %1901 = vmatmul.f32.gmra.mxu0 %v797
        %v1902 = vpop.f32.mrf.mxu0
        %v1903 = vadd.f32 0.0, %v1902
        %1904 = vmatmul.f32.gmra.mxu0 %v800
        %v1905 = vpop.f32.mrf.mxu0
        %v1906 = vadd.f32 0.0, %v1905
        %1907 = vmatmul.f32.gmra.mxu0 %v803
        %v1908 = vpop.f32.mrf.mxu0
        %v1909 = vadd.f32 0.0, %v1908
        %1910 = vmatmul.f32.gmra.mxu0 %v806
        %v1911 = vpop.f32.mrf.mxu0
        %v1912 = vadd.f32 0.0, %v1911
        %1913 = vmatmul.f32.gmra.mxu0 %v809
        %v1914 = vpop.f32.mrf.mxu0
        %v1915 = vadd.f32 0.0, %v1914
        %1916 = vmatmul.f32.gmra.mxu0 %v812
        %v1917 = vpop.f32.mrf.mxu0
        %v1918 = vadd.f32 0.0, %v1917
        %1919 = vmatmul.f32.gmra.mxu0 %v815
        %v1920 = vpop.f32.mrf.mxu0
        %v1921 = vadd.f32 0.0, %v1920
        %1922 = vmatmul.f32.gmra.mxu0 %v818
        %v1923 = vpop.f32.mrf.mxu0
        %v1924 = vadd.f32 0.0, %v1923
        %1925 = vmatmul.f32.gmra.mxu0 %v821
        %v1926 = vpop.f32.mrf.mxu0
        %v1927 = vadd.f32 0.0, %v1926
        %1928 = vmatmul.f32.gmra.mxu0 %v824
        %v1929 = vpop.f32.mrf.mxu0
        %v1930 = vadd.f32 0.0, %v1929
        %1931 = vmatmul.f32.gmra.mxu0 %v827
        %v1932 = vpop.f32.mrf.mxu0
        %v1933 = vadd.f32 0.0, %v1932
        %1934 = vmatmul.f32.gmra.mxu0 %v830
        %v1935 = vpop.f32.mrf.mxu0
        %v1936 = vadd.f32 0.0, %v1935
        %1937 = vmatmul.f32.gmra.mxu0 %v833
        %v1938 = vpop.f32.mrf.mxu0
        %v1939 = vadd.f32 0.0, %v1938
        %1940 = vmatmul.f32.gmra.mxu0 %v836
        %v1941 = vpop.f32.mrf.mxu0
        %v1942 = vadd.f32 0.0, %v1941
        %1943 = vmatmul.f32.gmra.mxu0 %v839
        %v1944 = vpop.f32.mrf.mxu0
        %v1945 = vadd.f32 0.0, %v1944
        %1946 = vmatmul.f32.gmra.mxu0 %v842
        %v1947 = vpop.f32.mrf.mxu0
        %v1948 = vadd.f32 0.0, %v1947
        %1949 = vmatmul.f32.gmra.mxu0 %v845
        %v1950 = vpop.f32.mrf.mxu0
        %v1951 = vadd.f32 0.0, %v1950
        %1952 = vmatmul.f32.gmra.mxu0 %v848
        %v1953 = vpop.f32.mrf.mxu0
        %v1954 = vadd.f32 0.0, %v1953
        %1955 = vmatmul.f32.gmra.mxu0 %v851
        %v1956 = vpop.f32.mrf.mxu0
        %v1957 = vadd.f32 0.0, %v1956
        %1958 = vmatmul.f32.gmra.mxu0 %v854
        %v1959 = vpop.f32.mrf.mxu0
        %v1960 = vadd.f32 0.0, %v1959
        %1961 = vmatmul.f32.gmra.mxu0 %v857
        %v1962 = vpop.f32.mrf.mxu0
        %v1963 = vadd.f32 0.0, %v1962
        %1964 = vmatmul.f32.gmra.mxu0 %v860
        %v1965 = vpop.f32.mrf.mxu0
        %v1966 = vadd.f32 0.0, %v1965
        %1967 = vmatmul.f32.gmra.mxu0 %v863
        %v1968 = vpop.f32.mrf.mxu0
        %v1969 = vadd.f32 0.0, %v1968
        %1970 = vmatmul.f32.gmra.mxu0 %v866
        %v1971 = vpop.f32.mrf.mxu0
        %v1972 = vadd.f32 0.0, %v1971
        %1973 = vmatmul.f32.gmra.mxu0 %v869
        %v1974 = vpop.f32.mrf.mxu0
        %v1975 = vadd.f32 0.0, %v1974
        %1976 = vmatmul.f32.gmra.mxu0 %v872
        %v1977 = vpop.f32.mrf.mxu0
        %v1978 = vadd.f32 0.0, %v1977
        %1979 = vmatmul.f32.gmra.mxu0 %v875
        %v1980 = vpop.f32.mrf.mxu0
        %v1981 = vadd.f32 0.0, %v1980
        %1982 = vmatmul.f32.gmra.mxu0 %v878
        %v1983 = vpop.f32.mrf.mxu0
        %v1984 = vadd.f32 0.0, %v1983
        %1985 = vmatmul.f32.gmra.mxu0 %v881
        %v1986 = vpop.f32.mrf.mxu0
        %v1987 = vadd.f32 0.0, %v1986
        %1988 = vmatmul.f32.gmra.mxu0 %v884
        %v1989 = vpop.f32.mrf.mxu0
        %v1990 = vadd.f32 0.0, %v1989
        %1991 = vmatmul.f32.gmra.mxu0 %v887
        %v1992 = vpop.f32.mrf.mxu0
        %v1993 = vadd.f32 0.0, %v1992
        %1994 = vmatmul.f32.gmra.mxu0 %v890
        %v1995 = vpop.f32.mrf.mxu0
        %v1996 = vadd.f32 0.0, %v1995
        %1997 = vmatmul.f32.gmra.mxu0 %v893
        %v1998 = vpop.f32.mrf.mxu0
        %v1999 = vadd.f32 0.0, %v1998
        %2000 = vmatmul.f32.gmra.mxu0 %v896
        %v2001 = vpop.f32.mrf.mxu0
        %v2002 = vadd.f32 0.0, %v2001
        %2003 = vmatmul.f32.gmra.mxu0 %v899
        %v2004 = vpop.f32.mrf.mxu0
        %v2005 = vadd.f32 0.0, %v2004
        %2006 = vmatmul.f32.gmra.mxu0 %v902
        %v2007 = vpop.f32.mrf.mxu0
        %v2008 = vadd.f32 0.0, %v2007
        %2009 = vmatmul.f32.gmra.mxu0 %v905
        %v2010 = vpop.f32.mrf.mxu0
        %v2011 = vadd.f32 0.0, %v2010
        %2012 = vmatmul.f32.gmra.mxu0 %v908
        %v2013 = vpop.f32.mrf.mxu0
        %v2014 = vadd.f32 0.0, %v2013
        %2015 = vmatmul.f32.gmra.mxu0 %v911
        %v2016 = vpop.f32.mrf.mxu0
        %v2017 = vadd.f32 0.0, %v2016
        %2018 = vmatmul.f32.gmra.mxu0 %v914
        %v2019 = vpop.f32.mrf.mxu0
        %v2020 = vadd.f32 0.0, %v2019
        %2021 = vmatmul.f32.gmra.mxu0 %v917
        %v2022 = vpop.f32.mrf.mxu0
        %v2023 = vadd.f32 0.0, %v2022
        %2024 = vmatmul.f32.gmra.mxu0 %v920
        %v2025 = vpop.f32.mrf.mxu0
        %v2026 = vadd.f32 0.0, %v2025
        %2027 = vmatmul.f32.gmra.mxu0 %v923
        %v2028 = vpop.f32.mrf.mxu0
        %v2029 = vadd.f32 0.0, %v2028
        %2030 = vmatmul.f32.gmra.mxu0 %v926
        %v2031 = vpop.f32.mrf.mxu0
        %v2032 = vadd.f32 0.0, %v2031
        %2033 = vmatmul.f32.gmra.mxu0 %v929
        %v2034 = vpop.f32.mrf.mxu0
        %v2035 = vadd.f32 0.0, %v2034
        %2036 = vmatmul.f32.gmra.mxu0 %v932
        %v2037 = vpop.f32.mrf.mxu0
        %v2038 = vadd.f32 0.0, %v2037
        %2039 = vmatmul.f32.gmra.mxu0 %v935
        %v2040 = vpop.f32.mrf.mxu0
        %v2041 = vadd.f32 0.0, %v2040
        %2042 = vmatmul.f32.gmra.mxu0 %v938
        %v2043 = vpop.f32.mrf.mxu0
        %v2044 = vadd.f32 0.0, %v2043
        %2045 = vmatmul.f32.gmra.mxu0 %v941
        %v2046 = vpop.f32.mrf.mxu0
        %v2047 = vadd.f32 0.0, %v2046
        %2048 = vmatmul.f32.gmra.mxu0 %v944
        %v2049 = vpop.f32.mrf.mxu0
        %v2050 = vadd.f32 0.0, %v2049
        %2051 = vmatmul.f32.gmra.mxu0 %v947
        %v2052 = vpop.f32.mrf.mxu0
        %v2053 = vadd.f32 0.0, %v2052
        %2054 = vmatmul.f32.gmra.mxu0 %v950
        %v2055 = vpop.f32.mrf.mxu0
        %v2056 = vadd.f32 0.0, %v2055
        %2057 = vmatmul.f32.gmra.mxu0 %v953
        %v2058 = vpop.f32.mrf.mxu0
        %v2059 = vadd.f32 0.0, %v2058
        %2060 = vmatmul.f32.gmra.mxu0 %v956
        %v2061 = vpop.f32.mrf.mxu0
        %v2062 = vadd.f32 0.0, %v2061
        %2063 = vmatmul.f32.gmra.mxu0 %v959
        %v2064 = vpop.f32.mrf.mxu0
        %v2065 = vadd.f32 0.0, %v2064
        %2066 = vmatmul.f32.gmra.mxu0 %v962
        %v2067 = vpop.f32.mrf.mxu0
        %v2068 = vadd.f32 0.0, %v2067
        %2069 = vmatmul.f32.gmra.mxu0 %v965
        %v2070 = vpop.f32.mrf.mxu0
        %v2071 = vadd.f32 0.0, %v2070
        %2072 = vmatmul.f32.gmra.mxu0 %v968
        %v2073 = vpop.f32.mrf.mxu0
        %v2074 = vadd.f32 0.0, %v2073
        %2075 = vmatmul.f32.gmra.mxu0 %v971
        %v2076 = vpop.f32.mrf.mxu0
        %v2077 = vadd.f32 0.0, %v2076
        %2078 = vmatmul.f32.gmra.mxu0 %v974
        %v2079 = vpop.f32.mrf.mxu0
        %v2080 = vadd.f32 0.0, %v2079
        %2081 = vmatmul.f32.gmra.mxu0 %v977
        %v2082 = vpop.f32.mrf.mxu0
        %v2083 = vadd.f32 0.0, %v2082
        %2084 = vmatmul.f32.gmra.mxu0 %v980
        %v2085 = vpop.f32.mrf.mxu0
        %v2086 = vadd.f32 0.0, %v2085
        %2087 = vmatmul.f32.gmra.mxu0 %v983
        %v2088 = vpop.f32.mrf.mxu0
        %v2089 = vadd.f32 0.0, %v2088
        %2090 = vmatmul.f32.gmra.mxu0 %v986
        %v2091 = vpop.f32.mrf.mxu0
        %v2092 = vadd.f32 0.0, %v2091
        %2093 = vmatmul.f32.gmra.mxu0 %v989
        %v2094 = vpop.f32.mrf.mxu0
        %v2095 = vadd.f32 0.0, %v2094
        %2096 = vmatmul.f32.gmra.mxu0 %v992
        %v2097 = vpop.f32.mrf.mxu0
        %v2098 = vadd.f32 0.0, %v2097
        %2099 = vmatmul.f32.gmra.mxu0 %v995
        %v2100 = vpop.f32.mrf.mxu0
        %v2101 = vadd.f32 0.0, %v2100
        %2102 = vmatmul.f32.gmra.mxu0 %v998
        %v2103 = vpop.f32.mrf.mxu0
        %v2104 = vadd.f32 0.0, %v2103
        %2105 = vmatmul.f32.gmra.mxu0 %v1001
        %v2106 = vpop.f32.mrf.mxu0
        %v2107 = vadd.f32 0.0, %v2106
        %2108 = vmatmul.f32.gmra.mxu0 %v1004
        %v2109 = vpop.f32.mrf.mxu0
        %v2110 = vadd.f32 0.0, %v2109
        %2111 = vmatmul.f32.gmra.mxu0 %v1007
        %v2112 = vpop.f32.mrf.mxu0
        %v2113 = vadd.f32 0.0, %v2112
        %2114 = vmatmul.f32.gmra.mxu0 %v1010
        %v2115 = vpop.f32.mrf.mxu0
        %v2116 = vadd.f32 0.0, %v2115
        %2117 = vmatmul.f32.gmra.mxu0 %v1013
        %v2118 = vpop.f32.mrf.mxu0
        %v2119 = vadd.f32 0.0, %v2118
        %2120 = vmatmul.f32.gmra.mxu0 %v1016
        %v2121 = vpop.f32.mrf.mxu0
        %v2122 = vadd.f32 0.0, %v2121
        %2123 = vmatmul.f32.gmra.mxu0 %v1019
        %v2124 = vpop.f32.mrf.mxu0
        %v2125 = vadd.f32 0.0, %v2124
        %2126 = vdwg.mxu0
        %2127 = vmatpush.msra.mxu0 0.0
        %2128 = vmatpush.msra.mxu0 0.0
        %2129 = vmatpush.msra.mxu0 0.0
        %2130 = vmatpush.msra.mxu0 0.0
        %2131 = vmatpush.msra.mxu0 0.0
        %2132 = vmatpush.msra.mxu0 0.0
        %2133 = vmatpush.msra.mxu0 0.0
        %2134 = vmatpush.msra.mxu0 0.0
        %2135 = vmatpush.msra.mxu0 0.0
        %2136 = vmatpush.msra.mxu0 0.0
        %2137 = vmatpush.msra.mxu0 0.0
        %2138 = vmatpush.msra.mxu0 0.0
        %2139 = vmatpush.msra.mxu0 %v1034
        %2140 = vmatpush.msra.mxu0 %v647
        %2141 = vmatpush.msra.mxu0 %v644
        %2142 = vmatpush.msra.mxu0 %v641
        %2143 = vmatmul.f32.gmra.mxu0 %v767
        %v2144 = vpop.f32.mrf.mxu0
        %v2145 = vadd.f32 0.0, %v2144
        %2146 = vmatmul.f32.gmra.mxu0 %v770
        %v2147 = vpop.f32.mrf.mxu0
        %v2148 = vadd.f32 0.0, %v2147
        %2149 = vmatmul.f32.gmra.mxu0 %v773
        %v2150 = vpop.f32.mrf.mxu0
        %v2151 = vadd.f32 0.0, %v2150
        %2152 = vmatmul.f32.gmra.mxu0 %v776
        %v2153 = vpop.f32.mrf.mxu0
        %v2154 = vadd.f32 0.0, %v2153
        %2155 = vmatmul.f32.gmra.mxu0 %v779
        %v2156 = vpop.f32.mrf.mxu0
        %v2157 = vadd.f32 0.0, %v2156
        %2158 = vmatmul.f32.gmra.mxu0 %v782
        %v2159 = vpop.f32.mrf.mxu0
        %v2160 = vadd.f32 0.0, %v2159
        %2161 = vmatmul.f32.gmra.mxu0 %v785
        %v2162 = vpop.f32.mrf.mxu0
        %v2163 = vadd.f32 0.0, %v2162
        %2164 = vmatmul.f32.gmra.mxu0 %v788
        %v2165 = vpop.f32.mrf.mxu0
        %v2166 = vadd.f32 0.0, %v2165
        %2167 = vmatmul.f32.gmra.mxu0 %v791
        %v2168 = vpop.f32.mrf.mxu0
        %v2169 = vadd.f32 0.0, %v2168
        %2170 = vmatmul.f32.gmra.mxu0 %v794
        %v2171 = vpop.f32.mrf.mxu0
        %v2172 = vadd.f32 0.0, %v2171
        %2173 = vmatmul.f32.gmra.mxu0 %v797
        %v2174 = vpop.f32.mrf.mxu0
        %v2175 = vadd.f32 0.0, %v2174
        %2176 = vmatmul.f32.gmra.mxu0 %v800
        %v2177 = vpop.f32.mrf.mxu0
        %v2178 = vadd.f32 0.0, %v2177
        %2179 = vmatmul.f32.gmra.mxu0 %v803
        %v2180 = vpop.f32.mrf.mxu0
        %v2181 = vadd.f32 0.0, %v2180
        %2182 = vmatmul.f32.gmra.mxu0 %v806
        %v2183 = vpop.f32.mrf.mxu0
        %v2184 = vadd.f32 0.0, %v2183
        %2185 = vmatmul.f32.gmra.mxu0 %v809
        %v2186 = vpop.f32.mrf.mxu0
        %v2187 = vadd.f32 0.0, %v2186
        %2188 = vmatmul.f32.gmra.mxu0 %v812
        %v2189 = vpop.f32.mrf.mxu0
        %v2190 = vadd.f32 0.0, %v2189
        %2191 = vmatmul.f32.gmra.mxu0 %v815
        %v2192 = vpop.f32.mrf.mxu0
        %v2193 = vadd.f32 0.0, %v2192
        %2194 = vmatmul.f32.gmra.mxu0 %v818
        %v2195 = vpop.f32.mrf.mxu0
        %v2196 = vadd.f32 0.0, %v2195
        %2197 = vmatmul.f32.gmra.mxu0 %v821
        %v2198 = vpop.f32.mrf.mxu0
        %v2199 = vadd.f32 0.0, %v2198
        %2200 = vmatmul.f32.gmra.mxu0 %v824
        %v2201 = vpop.f32.mrf.mxu0
        %v2202 = vadd.f32 0.0, %v2201
        %2203 = vmatmul.f32.gmra.mxu0 %v827
        %v2204 = vpop.f32.mrf.mxu0
        %v2205 = vadd.f32 0.0, %v2204
        %2206 = vmatmul.f32.gmra.mxu0 %v830
        %v2207 = vpop.f32.mrf.mxu0
        %v2208 = vadd.f32 0.0, %v2207
        %2209 = vmatmul.f32.gmra.mxu0 %v833
        %v2210 = vpop.f32.mrf.mxu0
        %v2211 = vadd.f32 0.0, %v2210
        %2212 = vmatmul.f32.gmra.mxu0 %v836
        %v2213 = vpop.f32.mrf.mxu0
        %v2214 = vadd.f32 0.0, %v2213
        %2215 = vmatmul.f32.gmra.mxu0 %v839
        %v2216 = vpop.f32.mrf.mxu0
        %v2217 = vadd.f32 0.0, %v2216
        %2218 = vmatmul.f32.gmra.mxu0 %v842
        %v2219 = vpop.f32.mrf.mxu0
        %v2220 = vadd.f32 0.0, %v2219
        %2221 = vmatmul.f32.gmra.mxu0 %v845
        %v2222 = vpop.f32.mrf.mxu0
        %v2223 = vadd.f32 0.0, %v2222
        %2224 = vmatmul.f32.gmra.mxu0 %v848
        %v2225 = vpop.f32.mrf.mxu0
        %v2226 = vadd.f32 0.0, %v2225
        %2227 = vmatmul.f32.gmra.mxu0 %v851
        %v2228 = vpop.f32.mrf.mxu0
        %v2229 = vadd.f32 0.0, %v2228
        %2230 = vmatmul.f32.gmra.mxu0 %v854
        %v2231 = vpop.f32.mrf.mxu0
        %v2232 = vadd.f32 0.0, %v2231
        %2233 = vmatmul.f32.gmra.mxu0 %v857
        %v2234 = vpop.f32.mrf.mxu0
        %v2235 = vadd.f32 0.0, %v2234
        %2236 = vmatmul.f32.gmra.mxu0 %v860
        %v2237 = vpop.f32.mrf.mxu0
        %v2238 = vadd.f32 0.0, %v2237
        %2239 = vmatmul.f32.gmra.mxu0 %v863
        %v2240 = vpop.f32.mrf.mxu0
        %v2241 = vadd.f32 0.0, %v2240
        %2242 = vmatmul.f32.gmra.mxu0 %v866
        %v2243 = vpop.f32.mrf.mxu0
        %v2244 = vadd.f32 0.0, %v2243
        %2245 = vmatmul.f32.gmra.mxu0 %v869
        %v2246 = vpop.f32.mrf.mxu0
        %v2247 = vadd.f32 0.0, %v2246
        %2248 = vmatmul.f32.gmra.mxu0 %v872
        %v2249 = vpop.f32.mrf.mxu0
        %v2250 = vadd.f32 0.0, %v2249
        %2251 = vmatmul.f32.gmra.mxu0 %v875
        %v2252 = vpop.f32.mrf.mxu0
        %v2253 = vadd.f32 0.0, %v2252
        %2254 = vmatmul.f32.gmra.mxu0 %v878
        %v2255 = vpop.f32.mrf.mxu0
        %v2256 = vadd.f32 0.0, %v2255
        %2257 = vmatmul.f32.gmra.mxu0 %v881
        %v2258 = vpop.f32.mrf.mxu0
        %v2259 = vadd.f32 0.0, %v2258
        %2260 = vmatmul.f32.gmra.mxu0 %v884
        %v2261 = vpop.f32.mrf.mxu0
        %v2262 = vadd.f32 0.0, %v2261
        %2263 = vmatmul.f32.gmra.mxu0 %v887
        %v2264 = vpop.f32.mrf.mxu0
        %v2265 = vadd.f32 0.0, %v2264
        %2266 = vmatmul.f32.gmra.mxu0 %v890
        %v2267 = vpop.f32.mrf.mxu0
        %v2268 = vadd.f32 0.0, %v2267
        %2269 = vmatmul.f32.gmra.mxu0 %v893
        %v2270 = vpop.f32.mrf.mxu0
        %v2271 = vadd.f32 0.0, %v2270
        %2272 = vmatmul.f32.gmra.mxu0 %v896
        %v2273 = vpop.f32.mrf.mxu0
        %v2274 = vadd.f32 0.0, %v2273
        %2275 = vmatmul.f32.gmra.mxu0 %v899
        %v2276 = vpop.f32.mrf.mxu0
        %v2277 = vadd.f32 0.0, %v2276
        %2278 = vmatmul.f32.gmra.mxu0 %v902
        %v2279 = vpop.f32.mrf.mxu0
        %v2280 = vadd.f32 0.0, %v2279
        %2281 = vmatmul.f32.gmra.mxu0 %v905
        %v2282 = vpop.f32.mrf.mxu0
        %v2283 = vadd.f32 0.0, %v2282
        %2284 = vmatmul.f32.gmra.mxu0 %v908
        %v2285 = vpop.f32.mrf.mxu0
        %v2286 = vadd.f32 0.0, %v2285
        %2287 = vmatmul.f32.gmra.mxu0 %v911
        %v2288 = vpop.f32.mrf.mxu0
        %v2289 = vadd.f32 0.0, %v2288
        %2290 = vmatmul.f32.gmra.mxu0 %v914
        %v2291 = vpop.f32.mrf.mxu0
        %v2292 = vadd.f32 0.0, %v2291
        %2293 = vmatmul.f32.gmra.mxu0 %v917
        %v2294 = vpop.f32.mrf.mxu0
        %v2295 = vadd.f32 0.0, %v2294
        %2296 = vmatmul.f32.gmra.mxu0 %v920
        %v2297 = vpop.f32.mrf.mxu0
        %v2298 = vadd.f32 0.0, %v2297
        %2299 = vmatmul.f32.gmra.mxu0 %v923
        %v2300 = vpop.f32.mrf.mxu0
        %v2301 = vadd.f32 0.0, %v2300
        %2302 = vmatmul.f32.gmra.mxu0 %v926
        %v2303 = vpop.f32.mrf.mxu0
        %v2304 = vadd.f32 0.0, %v2303
        %2305 = vmatmul.f32.gmra.mxu0 %v929
        %v2306 = vpop.f32.mrf.mxu0
        %v2307 = vadd.f32 0.0, %v2306
        %2308 = vmatmul.f32.gmra.mxu0 %v932
        %v2309 = vpop.f32.mrf.mxu0
        %v2310 = vadd.f32 0.0, %v2309
        %2311 = vmatmul.f32.gmra.mxu0 %v935
        %v2312 = vpop.f32.mrf.mxu0
        %v2313 = vadd.f32 0.0, %v2312
        %2314 = vmatmul.f32.gmra.mxu0 %v938
        %v2315 = vpop.f32.mrf.mxu0
        %v2316 = vadd.f32 0.0, %v2315
        %2317 = vmatmul.f32.gmra.mxu0 %v941
        %v2318 = vpop.f32.mrf.mxu0
        %v2319 = vadd.f32 0.0, %v2318
        %2320 = vmatmul.f32.gmra.mxu0 %v944
        %v2321 = vpop.f32.mrf.mxu0
        %v2322 = vadd.f32 0.0, %v2321
        %2323 = vmatmul.f32.gmra.mxu0 %v947
        %v2324 = vpop.f32.mrf.mxu0
        %v2325 = vadd.f32 0.0, %v2324
        %2326 = vmatmul.f32.gmra.mxu0 %v950
        %v2327 = vpop.f32.mrf.mxu0
        %v2328 = vadd.f32 0.0, %v2327
        %2329 = vmatmul.f32.gmra.mxu0 %v953
        %v2330 = vpop.f32.mrf.mxu0
        %v2331 = vadd.f32 0.0, %v2330
        %2332 = vmatmul.f32.gmra.mxu0 %v956
        %v2333 = vpop.f32.mrf.mxu0
        %v2334 = vadd.f32 0.0, %v2333
        %2335 = vmatmul.f32.gmra.mxu0 %v959
        %v2336 = vpop.f32.mrf.mxu0
        %v2337 = vadd.f32 0.0, %v2336
        %2338 = vmatmul.f32.gmra.mxu0 %v962
        %v2339 = vpop.f32.mrf.mxu0
        %v2340 = vadd.f32 0.0, %v2339
        %2341 = vmatmul.f32.gmra.mxu0 %v965
        %v2342 = vpop.f32.mrf.mxu0
        %v2343 = vadd.f32 0.0, %v2342
        %2344 = vmatmul.f32.gmra.mxu0 %v968
        %v2345 = vpop.f32.mrf.mxu0
        %v2346 = vadd.f32 0.0, %v2345
        %2347 = vmatmul.f32.gmra.mxu0 %v971
        %v2348 = vpop.f32.mrf.mxu0
        %v2349 = vadd.f32 0.0, %v2348
        %2350 = vmatmul.f32.gmra.mxu0 %v974
        %v2351 = vpop.f32.mrf.mxu0
        %v2352 = vadd.f32 0.0, %v2351
        %2353 = vmatmul.f32.gmra.mxu0 %v977
        %v2354 = vpop.f32.mrf.mxu0
        %v2355 = vadd.f32 0.0, %v2354
        %2356 = vmatmul.f32.gmra.mxu0 %v980
        %v2357 = vpop.f32.mrf.mxu0
        %v2358 = vadd.f32 0.0, %v2357
        %2359 = vmatmul.f32.gmra.mxu0 %v983
        %v2360 = vpop.f32.mrf.mxu0
        %v2361 = vadd.f32 0.0, %v2360
        %2362 = vmatmul.f32.gmra.mxu0 %v986
        %v2363 = vpop.f32.mrf.mxu0
        %v2364 = vadd.f32 0.0, %v2363
        %2365 = vmatmul.f32.gmra.mxu0 %v989
        %v2366 = vpop.f32.mrf.mxu0
        %v2367 = vadd.f32 0.0, %v2366
        %2368 = vmatmul.f32.gmra.mxu0 %v992
        %v2369 = vpop.f32.mrf.mxu0
        %v2370 = vadd.f32 0.0, %v2369
        %2371 = vmatmul.f32.gmra.mxu0 %v995
        %v2372 = vpop.f32.mrf.mxu0
        %v2373 = vadd.f32 0.0, %v2372
        %2374 = vmatmul.f32.gmra.mxu0 %v998
        %v2375 = vpop.f32.mrf.mxu0
        %v2376 = vadd.f32 0.0, %v2375
        %2377 = vmatmul.f32.gmra.mxu0 %v1001
        %v2378 = vpop.f32.mrf.mxu0
        %v2379 = vadd.f32 0.0, %v2378
        %2380 = vmatmul.f32.gmra.mxu0 %v1004
        %v2381 = vpop.f32.mrf.mxu0
        %v2382 = vadd.f32 0.0, %v2381
        %2383 = vmatmul.f32.gmra.mxu0 %v1007
        %v2384 = vpop.f32.mrf.mxu0
        %v2385 = vadd.f32 0.0, %v2384
        %2386 = vmatmul.f32.gmra.mxu0 %v1010
        %v2387 = vpop.f32.mrf.mxu0
        %v2388 = vadd.f32 0.0, %v2387
        %2389 = vmatmul.f32.gmra.mxu0 %v1013
        %v2390 = vpop.f32.mrf.mxu0
        %v2391 = vadd.f32 0.0, %v2390
        %2392 = vmatmul.f32.gmra.mxu0 %v1016
        %v2393 = vpop.f32.mrf.mxu0
        %v2394 = vadd.f32 0.0, %v2393
        %2395 = vmatmul.f32.gmra.mxu0 %v1019
        %v2396 = vpop.f32.mrf.mxu0
        %v2397 = vadd.f32 0.0, %v2396
        %2398 = vdwg.mxu0
        %2399 = vmatpush.msra.mxu0 0.0
        %2400 = vmatpush.msra.mxu0 0.0
        %2401 = vmatpush.msra.mxu0 0.0
        %2402 = vmatpush.msra.mxu0 0.0
        %2403 = vmatpush.msra.mxu0 0.0
        %2404 = vmatpush.msra.mxu0 0.0
        %2405 = vmatpush.msra.mxu0 0.0
        %2406 = vmatpush.msra.mxu0 0.0
        %2407 = vmatpush.msra.mxu0 0.0
        %2408 = vmatpush.msra.mxu0 0.0
        %2409 = vmatpush.msra.mxu0 0.0
        %2410 = vmatpush.msra.mxu0 0.0
        %2411 = vmatpush.msra.mxu0 %v1037
        %2412 = vmatpush.msra.mxu0 %v676
        %2413 = vmatpush.msra.mxu0 %v673
        %2414 = vmatpush.msra.mxu0 %v670
        %2415 = vmatmul.f32.gmra.mxu0 %v767
        %v2416 = vpop.f32.mrf.mxu0
        %v2417 = vadd.f32 0.0, %v2416
        %2418 = vmatmul.f32.gmra.mxu0 %v770
        %v2419 = vpop.f32.mrf.mxu0
        %v2420 = vadd.f32 0.0, %v2419
        %2421 = vmatmul.f32.gmra.mxu0 %v773
        %v2422 = vpop.f32.mrf.mxu0
        %v2423 = vadd.f32 0.0, %v2422
        %2424 = vmatmul.f32.gmra.mxu0 %v776
        %v2425 = vpop.f32.mrf.mxu0
        %v2426 = vadd.f32 0.0, %v2425
        %2427 = vmatmul.f32.gmra.mxu0 %v779
        %v2428 = vpop.f32.mrf.mxu0
        %v2429 = vadd.f32 0.0, %v2428
        %2430 = vmatmul.f32.gmra.mxu0 %v782
        %v2431 = vpop.f32.mrf.mxu0
        %v2432 = vadd.f32 0.0, %v2431
        %2433 = vmatmul.f32.gmra.mxu0 %v785
        %v2434 = vpop.f32.mrf.mxu0
        %v2435 = vadd.f32 0.0, %v2434
        %2436 = vmatmul.f32.gmra.mxu0 %v788
        %v2437 = vpop.f32.mrf.mxu0
        %v2438 = vadd.f32 0.0, %v2437
        %2439 = vmatmul.f32.gmra.mxu0 %v791
        %v2440 = vpop.f32.mrf.mxu0
        %v2441 = vadd.f32 0.0, %v2440
        %2442 = vmatmul.f32.gmra.mxu0 %v794
        %v2443 = vpop.f32.mrf.mxu0
        %v2444 = vadd.f32 0.0, %v2443
        %2445 = vmatmul.f32.gmra.mxu0 %v797
        %v2446 = vpop.f32.mrf.mxu0
        %v2447 = vadd.f32 0.0, %v2446
        %2448 = vmatmul.f32.gmra.mxu0 %v800
        %v2449 = vpop.f32.mrf.mxu0
        %v2450 = vadd.f32 0.0, %v2449
        %2451 = vmatmul.f32.gmra.mxu0 %v803
        %v2452 = vpop.f32.mrf.mxu0
        %v2453 = vadd.f32 0.0, %v2452
        %2454 = vmatmul.f32.gmra.mxu0 %v806
        %v2455 = vpop.f32.mrf.mxu0
        %v2456 = vadd.f32 0.0, %v2455
        %2457 = vmatmul.f32.gmra.mxu0 %v809
        %v2458 = vpop.f32.mrf.mxu0
        %v2459 = vadd.f32 0.0, %v2458
        %2460 = vmatmul.f32.gmra.mxu0 %v812
        %v2461 = vpop.f32.mrf.mxu0
        %v2462 = vadd.f32 0.0, %v2461
        %2463 = vmatmul.f32.gmra.mxu0 %v815
        %v2464 = vpop.f32.mrf.mxu0
        %v2465 = vadd.f32 0.0, %v2464
        %2466 = vmatmul.f32.gmra.mxu0 %v818
        %v2467 = vpop.f32.mrf.mxu0
        %v2468 = vadd.f32 0.0, %v2467
        %2469 = vmatmul.f32.gmra.mxu0 %v821
        %v2470 = vpop.f32.mrf.mxu0
        %v2471 = vadd.f32 0.0, %v2470
        %2472 = vmatmul.f32.gmra.mxu0 %v824
        %v2473 = vpop.f32.mrf.mxu0
        %v2474 = vadd.f32 0.0, %v2473
        %2475 = vmatmul.f32.gmra.mxu0 %v827
        %v2476 = vpop.f32.mrf.mxu0
        %v2477 = vadd.f32 0.0, %v2476
        %2478 = vmatmul.f32.gmra.mxu0 %v830
        %v2479 = vpop.f32.mrf.mxu0
        %v2480 = vadd.f32 0.0, %v2479
        %2481 = vmatmul.f32.gmra.mxu0 %v833
        %v2482 = vpop.f32.mrf.mxu0
        %v2483 = vadd.f32 0.0, %v2482
        %2484 = vmatmul.f32.gmra.mxu0 %v836
        %v2485 = vpop.f32.mrf.mxu0
        %v2486 = vadd.f32 0.0, %v2485
        %2487 = vmatmul.f32.gmra.mxu0 %v839
        %v2488 = vpop.f32.mrf.mxu0
        %v2489 = vadd.f32 0.0, %v2488
        %2490 = vmatmul.f32.gmra.mxu0 %v842
        %v2491 = vpop.f32.mrf.mxu0
        %v2492 = vadd.f32 0.0, %v2491
        %2493 = vmatmul.f32.gmra.mxu0 %v845
        %v2494 = vpop.f32.mrf.mxu0
        %v2495 = vadd.f32 0.0, %v2494
        %2496 = vmatmul.f32.gmra.mxu0 %v848
        %v2497 = vpop.f32.mrf.mxu0
        %v2498 = vadd.f32 0.0, %v2497
        %2499 = vmatmul.f32.gmra.mxu0 %v851
        %v2500 = vpop.f32.mrf.mxu0
        %v2501 = vadd.f32 0.0, %v2500
        %2502 = vmatmul.f32.gmra.mxu0 %v854
        %v2503 = vpop.f32.mrf.mxu0
        %v2504 = vadd.f32 0.0, %v2503
        %2505 = vmatmul.f32.gmra.mxu0 %v857
        %v2506 = vpop.f32.mrf.mxu0
        %v2507 = vadd.f32 0.0, %v2506
        %2508 = vmatmul.f32.gmra.mxu0 %v860
        %v2509 = vpop.f32.mrf.mxu0
        %v2510 = vadd.f32 0.0, %v2509
        %2511 = vmatmul.f32.gmra.mxu0 %v863
        %v2512 = vpop.f32.mrf.mxu0
        %v2513 = vadd.f32 0.0, %v2512
        %2514 = vmatmul.f32.gmra.mxu0 %v866
        %v2515 = vpop.f32.mrf.mxu0
        %v2516 = vadd.f32 0.0, %v2515
        %2517 = vmatmul.f32.gmra.mxu0 %v869
        %v2518 = vpop.f32.mrf.mxu0
        %v2519 = vadd.f32 0.0, %v2518
        %2520 = vmatmul.f32.gmra.mxu0 %v872
        %v2521 = vpop.f32.mrf.mxu0
        %v2522 = vadd.f32 0.0, %v2521
        %2523 = vmatmul.f32.gmra.mxu0 %v875
        %v2524 = vpop.f32.mrf.mxu0
        %v2525 = vadd.f32 0.0, %v2524
        %2526 = vmatmul.f32.gmra.mxu0 %v878
        %v2527 = vpop.f32.mrf.mxu0
        %v2528 = vadd.f32 0.0, %v2527
        %2529 = vmatmul.f32.gmra.mxu0 %v881
        %v2530 = vpop.f32.mrf.mxu0
        %v2531 = vadd.f32 0.0, %v2530
        %2532 = vmatmul.f32.gmra.mxu0 %v884
        %v2533 = vpop.f32.mrf.mxu0
        %v2534 = vadd.f32 0.0, %v2533
        %2535 = vmatmul.f32.gmra.mxu0 %v887
        %v2536 = vpop.f32.mrf.mxu0
        %v2537 = vadd.f32 0.0, %v2536
        %2538 = vmatmul.f32.gmra.mxu0 %v890
        %v2539 = vpop.f32.mrf.mxu0
        %v2540 = vadd.f32 0.0, %v2539
        %2541 = vmatmul.f32.gmra.mxu0 %v893
        %v2542 = vpop.f32.mrf.mxu0
        %v2543 = vadd.f32 0.0, %v2542
        %2544 = vmatmul.f32.gmra.mxu0 %v896
        %v2545 = vpop.f32.mrf.mxu0
        %v2546 = vadd.f32 0.0, %v2545
        %2547 = vmatmul.f32.gmra.mxu0 %v899
        %v2548 = vpop.f32.mrf.mxu0
        %v2549 = vadd.f32 0.0, %v2548
        %2550 = vmatmul.f32.gmra.mxu0 %v902
        %v2551 = vpop.f32.mrf.mxu0
        %v2552 = vadd.f32 0.0, %v2551
        %2553 = vmatmul.f32.gmra.mxu0 %v905
        %v2554 = vpop.f32.mrf.mxu0
        %v2555 = vadd.f32 0.0, %v2554
        %2556 = vmatmul.f32.gmra.mxu0 %v908
        %v2557 = vpop.f32.mrf.mxu0
        %v2558 = vadd.f32 0.0, %v2557
        %2559 = vmatmul.f32.gmra.mxu0 %v911
        %v2560 = vpop.f32.mrf.mxu0
        %v2561 = vadd.f32 0.0, %v2560
        %2562 = vmatmul.f32.gmra.mxu0 %v914
        %v2563 = vpop.f32.mrf.mxu0
        %v2564 = vadd.f32 0.0, %v2563
        %2565 = vmatmul.f32.gmra.mxu0 %v917
        %v2566 = vpop.f32.mrf.mxu0
        %v2567 = vadd.f32 0.0, %v2566
        %2568 = vmatmul.f32.gmra.mxu0 %v920
        %v2569 = vpop.f32.mrf.mxu0
        %v2570 = vadd.f32 0.0, %v2569
        %2571 = vmatmul.f32.gmra.mxu0 %v923
        %v2572 = vpop.f32.mrf.mxu0
        %v2573 = vadd.f32 0.0, %v2572
        %2574 = vmatmul.f32.gmra.mxu0 %v926
        %v2575 = vpop.f32.mrf.mxu0
        %v2576 = vadd.f32 0.0, %v2575
        %2577 = vmatmul.f32.gmra.mxu0 %v929
        %v2578 = vpop.f32.mrf.mxu0
        %v2579 = vadd.f32 0.0, %v2578
        %2580 = vmatmul.f32.gmra.mxu0 %v932
        %v2581 = vpop.f32.mrf.mxu0
        %v2582 = vadd.f32 0.0, %v2581
        %2583 = vmatmul.f32.gmra.mxu0 %v935
        %v2584 = vpop.f32.mrf.mxu0
        %v2585 = vadd.f32 0.0, %v2584
        %2586 = vmatmul.f32.gmra.mxu0 %v938
        %v2587 = vpop.f32.mrf.mxu0
        %v2588 = vadd.f32 0.0, %v2587
        %2589 = vmatmul.f32.gmra.mxu0 %v941
        %v2590 = vpop.f32.mrf.mxu0
        %v2591 = vadd.f32 0.0, %v2590
        %2592 = vmatmul.f32.gmra.mxu0 %v944
        %v2593 = vpop.f32.mrf.mxu0
        %v2594 = vadd.f32 0.0, %v2593
        %2595 = vmatmul.f32.gmra.mxu0 %v947
        %v2596 = vpop.f32.mrf.mxu0
        %v2597 = vadd.f32 0.0, %v2596
        %2598 = vmatmul.f32.gmra.mxu0 %v950
        %v2599 = vpop.f32.mrf.mxu0
        %v2600 = vadd.f32 0.0, %v2599
        %2601 = vmatmul.f32.gmra.mxu0 %v953
        %v2602 = vpop.f32.mrf.mxu0
        %v2603 = vadd.f32 0.0, %v2602
        %2604 = vmatmul.f32.gmra.mxu0 %v956
        %v2605 = vpop.f32.mrf.mxu0
        %v2606 = vadd.f32 0.0, %v2605
        %2607 = vmatmul.f32.gmra.mxu0 %v959
        %v2608 = vpop.f32.mrf.mxu0
        %v2609 = vadd.f32 0.0, %v2608
        %2610 = vmatmul.f32.gmra.mxu0 %v962
        %v2611 = vpop.f32.mrf.mxu0
        %v2612 = vadd.f32 0.0, %v2611
        %2613 = vmatmul.f32.gmra.mxu0 %v965
        %v2614 = vpop.f32.mrf.mxu0
        %v2615 = vadd.f32 0.0, %v2614
        %2616 = vmatmul.f32.gmra.mxu0 %v968
        %v2617 = vpop.f32.mrf.mxu0
        %v2618 = vadd.f32 0.0, %v2617
        %2619 = vmatmul.f32.gmra.mxu0 %v971
        %v2620 = vpop.f32.mrf.mxu0
        %v2621 = vadd.f32 0.0, %v2620
        %2622 = vmatmul.f32.gmra.mxu0 %v974
        %v2623 = vpop.f32.mrf.mxu0
        %v2624 = vadd.f32 0.0, %v2623
        %2625 = vmatmul.f32.gmra.mxu0 %v977
        %v2626 = vpop.f32.mrf.mxu0
        %v2627 = vadd.f32 0.0, %v2626
        %2628 = vmatmul.f32.gmra.mxu0 %v980
        %v2629 = vpop.f32.mrf.mxu0
        %v2630 = vadd.f32 0.0, %v2629
        %2631 = vmatmul.f32.gmra.mxu0 %v983
        %v2632 = vpop.f32.mrf.mxu0
        %v2633 = vadd.f32 0.0, %v2632
        %2634 = vmatmul.f32.gmra.mxu0 %v986
        %v2635 = vpop.f32.mrf.mxu0
        %v2636 = vadd.f32 0.0, %v2635
        %2637 = vmatmul.f32.gmra.mxu0 %v989
        %v2638 = vpop.f32.mrf.mxu0
        %v2639 = vadd.f32 0.0, %v2638
        %2640 = vmatmul.f32.gmra.mxu0 %v992
        %v2641 = vpop.f32.mrf.mxu0
        %v2642 = vadd.f32 0.0, %v2641
        %2643 = vmatmul.f32.gmra.mxu0 %v995
        %v2644 = vpop.f32.mrf.mxu0
        %v2645 = vadd.f32 0.0, %v2644
        %2646 = vmatmul.f32.gmra.mxu0 %v998
        %v2647 = vpop.f32.mrf.mxu0
        %v2648 = vadd.f32 0.0, %v2647
        %2649 = vmatmul.f32.gmra.mxu0 %v1001
        %v2650 = vpop.f32.mrf.mxu0
        %v2651 = vadd.f32 0.0, %v2650
        %2652 = vmatmul.f32.gmra.mxu0 %v1004
        %v2653 = vpop.f32.mrf.mxu0
        %v2654 = vadd.f32 0.0, %v2653
        %2655 = vmatmul.f32.gmra.mxu0 %v1007
        %v2656 = vpop.f32.mrf.mxu0
        %v2657 = vadd.f32 0.0, %v2656
        %2658 = vmatmul.f32.gmra.mxu0 %v1010
        %v2659 = vpop.f32.mrf.mxu0
        %v2660 = vadd.f32 0.0, %v2659
        %2661 = vmatmul.f32.gmra.mxu0 %v1013
        %v2662 = vpop.f32.mrf.mxu0
        %v2663 = vadd.f32 0.0, %v2662
        %2664 = vmatmul.f32.gmra.mxu0 %v1016
        %v2665 = vpop.f32.mrf.mxu0
        %v2666 = vadd.f32 0.0, %v2665
        %2667 = vmatmul.f32.gmra.mxu0 %v1019
        %v2668 = vpop.f32.mrf.mxu0
        %v2669 = vadd.f32 0.0, %v2668
        %2670 = vdwg.mxu0
        %2671 = vst [vmem:[%s191] sm:$0xff] %v1057
        %2672 = vst [vmem:[%s191 + $0x8] sm:$0xff] %v1329
        %2673 = vst [vmem:[%s191 + $0x10] sm:$0xff] %v1601
        %2674 = vst [vmem:[%s191 + $0x18] sm:$0xff] %v1873
        %2675 = vst [vmem:[%s191 + $0x20] sm:$0xff] %v2145
        %vm2676 = vcmask 293888
        %2677 = vst.msk [vmem:[%s191 + $0x28] sm:$0xff] %vm2676, %v2417
        %2678 = vst [vmem:[%s191 + $0x30] sm:$0xff] %v1060
        %2679 = vst [vmem:[%s191 + $0x38] sm:$0xff] %v1332
        %2680 = vst [vmem:[%s191 + $0x40] sm:$0xff] %v1604
        %2681 = vst [vmem:[%s191 + $0x48] sm:$0xff] %v1876
        %2682 = vst [vmem:[%s191 + $0x50] sm:$0xff] %v2148
        %2683 = vst.msk [vmem:[%s191 + $0x58] sm:$0xff] %vm2676, %v2420
        %2684 = vst [vmem:[%s191 + $0x60] sm:$0xff] %v1063
        %2685 = vst [vmem:[%s191 + $0x68] sm:$0xff] %v1335
        %2686 = vst [vmem:[%s191 + $0x70] sm:$0xff] %v1607
        %2687 = vst [vmem:[%s191 + $0x78] sm:$0xff] %v1879
        %2688 = vst [vmem:[%s191 + $0x80] sm:$0xff] %v2151
        %2689 = vst.msk [vmem:[%s191 + $0x88] sm:$0xff] %vm2676, %v2423
        %2690 = vst [vmem:[%s191 + $0x90] sm:$0xff] %v1066
        %2691 = vst [vmem:[%s191 + $0x98] sm:$0xff] %v1338
        %2692 = vst [vmem:[%s191 + $0xa0] sm:$0xff] %v1610
        %2693 = vst [vmem:[%s191 + $0xa8] sm:$0xff] %v1882
        %2694 = vst [vmem:[%s191 + $0xb0] sm:$0xff] %v2154
        %2695 = vst.msk [vmem:[%s191 + $0xb8] sm:$0xff] %vm2676, %v2426
        %2696 = vst [vmem:[%s191 + $0xc0] sm:$0xff] %v1069
        %2697 = vst [vmem:[%s191 + $0xc8] sm:$0xff] %v1341
        %2698 = vst [vmem:[%s191 + $0xd0] sm:$0xff] %v1613
        %2699 = vst [vmem:[%s191 + $0xd8] sm:$0xff] %v1885
        %2700 = vst [vmem:[%s191 + $0xe0] sm:$0xff] %v2157
        %2701 = vst.msk [vmem:[%s191 + $0xe8] sm:$0xff] %vm2676, %v2429
        %2702 = vst [vmem:[%s191 + $0xf0] sm:$0xff] %v1072
        %2703 = vst [vmem:[%s191 + $0xf8] sm:$0xff] %v1344
        %2704 = vst [vmem:[%s191 + $0x100] sm:$0xff] %v1616
        %2705 = vst [vmem:[%s191 + $0x108] sm:$0xff] %v1888
        %2706 = vst [vmem:[%s191 + $0x110] sm:$0xff] %v2160
        %2707 = vst.msk [vmem:[%s191 + $0x118] sm:$0xff] %vm2676, %v2432
        %2708 = vst [vmem:[%s191 + $0x120] sm:$0xff] %v1075
        %2709 = vst [vmem:[%s191 + $0x128] sm:$0xff] %v1347
        %2710 = vst [vmem:[%s191 + $0x130] sm:$0xff] %v1619
        %2711 = vst [vmem:[%s191 + $0x138] sm:$0xff] %v1891
        %2712 = vst [vmem:[%s191 + $0x140] sm:$0xff] %v2163
        %2713 = vst.msk [vmem:[%s191 + $0x148] sm:$0xff] %vm2676, %v2435
        %2714 = vst [vmem:[%s191 + $0x150] sm:$0xff] %v1078
        %2715 = vst [vmem:[%s191 + $0x158] sm:$0xff] %v1350
        %2716 = vst [vmem:[%s191 + $0x160] sm:$0xff] %v1622
        %2717 = vst [vmem:[%s191 + $0x168] sm:$0xff] %v1894
        %2718 = vst [vmem:[%s191 + $0x170] sm:$0xff] %v2166
        %2719 = vst.msk [vmem:[%s191 + $0x178] sm:$0xff] %vm2676, %v2438
        %2720 = vst [vmem:[%s191 + $0x180] sm:$0xff] %v1081
        %2721 = vst [vmem:[%s191 + $0x188] sm:$0xff] %v1353
        %2722 = vst [vmem:[%s191 + $0x190] sm:$0xff] %v1625
        %2723 = vst [vmem:[%s191 + $0x198] sm:$0xff] %v1897
        %2724 = vst [vmem:[%s191 + $0x1a0] sm:$0xff] %v2169
        %2725 = vst.msk [vmem:[%s191 + $0x1a8] sm:$0xff] %vm2676, %v2441
        %2726 = vst [vmem:[%s191 + $0x1b0] sm:$0xff] %v1084
        %2727 = vst [vmem:[%s191 + $0x1b8] sm:$0xff] %v1356
        %2728 = vst [vmem:[%s191 + $0x1c0] sm:$0xff] %v1628
        %2729 = vst [vmem:[%s191 + $0x1c8] sm:$0xff] %v1900
        %2730 = vst [vmem:[%s191 + $0x1d0] sm:$0xff] %v2172
        %2731 = vst.msk [vmem:[%s191 + $0x1d8] sm:$0xff] %vm2676, %v2444
        %2732 = vst [vmem:[%s191 + $0x1e0] sm:$0xff] %v1087
        %2733 = vst [vmem:[%s191 + $0x1e8] sm:$0xff] %v1359
        %2734 = vst [vmem:[%s191 + $0x1f0] sm:$0xff] %v1631
        %2735 = vst [vmem:[%s191 + $0x1f8] sm:$0xff] %v1903
        %2736 = vst [vmem:[%s191 + $0x200] sm:$0xff] %v2175
        %2737 = vst.msk [vmem:[%s191 + $0x208] sm:$0xff] %vm2676, %v2447
        %2738 = vst [vmem:[%s191 + $0x210] sm:$0xff] %v1090
        %2739 = vst [vmem:[%s191 + $0x218] sm:$0xff] %v1362
        %2740 = vst [vmem:[%s191 + $0x220] sm:$0xff] %v1634
        %2741 = vst [vmem:[%s191 + $0x228] sm:$0xff] %v1906
        %2742 = vst [vmem:[%s191 + $0x230] sm:$0xff] %v2178
        %2743 = vst.msk [vmem:[%s191 + $0x238] sm:$0xff] %vm2676, %v2450
        %2744 = vst [vmem:[%s191 + $0x240] sm:$0xff] %v1093
        %2745 = vst [vmem:[%s191 + $0x248] sm:$0xff] %v1365
        %2746 = vst [vmem:[%s191 + $0x250] sm:$0xff] %v1637
        %2747 = vst [vmem:[%s191 + $0x258] sm:$0xff] %v1909
        %2748 = vst [vmem:[%s191 + $0x260] sm:$0xff] %v2181
        %2749 = vst.msk [vmem:[%s191 + $0x268] sm:$0xff] %vm2676, %v2453
        %2750 = vst [vmem:[%s191 + $0x270] sm:$0xff] %v1096
        %2751 = vst [vmem:[%s191 + $0x278] sm:$0xff] %v1368
        %2752 = vst [vmem:[%s191 + $0x280] sm:$0xff] %v1640
        %2753 = vst [vmem:[%s191 + $0x288] sm:$0xff] %v1912
        %2754 = vst [vmem:[%s191 + $0x290] sm:$0xff] %v2184
        %2755 = vst.msk [vmem:[%s191 + $0x298] sm:$0xff] %vm2676, %v2456
        %2756 = vst [vmem:[%s191 + $0x2a0] sm:$0xff] %v1099
        %2757 = vst [vmem:[%s191 + $0x2a8] sm:$0xff] %v1371
        %2758 = vst [vmem:[%s191 + $0x2b0] sm:$0xff] %v1643
        %2759 = vst [vmem:[%s191 + $0x2b8] sm:$0xff] %v1915
        %2760 = vst [vmem:[%s191 + $0x2c0] sm:$0xff] %v2187
        %2761 = vst.msk [vmem:[%s191 + $0x2c8] sm:$0xff] %vm2676, %v2459
        %2762 = vst [vmem:[%s191 + $0x2d0] sm:$0xff] %v1102
        %2763 = vst [vmem:[%s191 + $0x2d8] sm:$0xff] %v1374
        %2764 = vst [vmem:[%s191 + $0x2e0] sm:$0xff] %v1646
        %2765 = vst [vmem:[%s191 + $0x2e8] sm:$0xff] %v1918
        %2766 = vst [vmem:[%s191 + $0x2f0] sm:$0xff] %v2190
        %2767 = vst.msk [vmem:[%s191 + $0x2f8] sm:$0xff] %vm2676, %v2462
        %2768 = vst [vmem:[%s191 + $0x300] sm:$0xff] %v1105
        %2769 = vst [vmem:[%s191 + $0x308] sm:$0xff] %v1377
        %2770 = vst [vmem:[%s191 + $0x310] sm:$0xff] %v1649
        %2771 = vst [vmem:[%s191 + $0x318] sm:$0xff] %v1921
        %2772 = vst [vmem:[%s191 + $0x320] sm:$0xff] %v2193
        %2773 = vst.msk [vmem:[%s191 + $0x328] sm:$0xff] %vm2676, %v2465
        %2774 = vst [vmem:[%s191 + $0x330] sm:$0xff] %v1108
        %2775 = vst [vmem:[%s191 + $0x338] sm:$0xff] %v1380
        %2776 = vst [vmem:[%s191 + $0x340] sm:$0xff] %v1652
        %2777 = vst [vmem:[%s191 + $0x348] sm:$0xff] %v1924
        %2778 = vst [vmem:[%s191 + $0x350] sm:$0xff] %v2196
        %2779 = vst.msk [vmem:[%s191 + $0x358] sm:$0xff] %vm2676, %v2468
        %2780 = vst [vmem:[%s191 + $0x360] sm:$0xff] %v1111
        %2781 = vst [vmem:[%s191 + $0x368] sm:$0xff] %v1383
        %2782 = vst [vmem:[%s191 + $0x370] sm:$0xff] %v1655
        %2783 = vst [vmem:[%s191 + $0x378] sm:$0xff] %v1927
        %2784 = vst [vmem:[%s191 + $0x380] sm:$0xff] %v2199
        %2785 = vst.msk [vmem:[%s191 + $0x388] sm:$0xff] %vm2676, %v2471
        %2786 = vst [vmem:[%s191 + $0x390] sm:$0xff] %v1114
        %2787 = vst [vmem:[%s191 + $0x398] sm:$0xff] %v1386
        %2788 = vst [vmem:[%s191 + $0x3a0] sm:$0xff] %v1658
        %2789 = vst [vmem:[%s191 + $0x3a8] sm:$0xff] %v1930
        %2790 = vst [vmem:[%s191 + $0x3b0] sm:$0xff] %v2202
        %2791 = vst.msk [vmem:[%s191 + $0x3b8] sm:$0xff] %vm2676, %v2474
        %2792 = vst [vmem:[%s191 + $0x3c0] sm:$0xff] %v1117
        %2793 = vst [vmem:[%s191 + $0x3c8] sm:$0xff] %v1389
        %2794 = vst [vmem:[%s191 + $0x3d0] sm:$0xff] %v1661
        %2795 = vst [vmem:[%s191 + $0x3d8] sm:$0xff] %v1933
        %2796 = vst [vmem:[%s191 + $0x3e0] sm:$0xff] %v2205
        %2797 = vst.msk [vmem:[%s191 + $0x3e8] sm:$0xff] %vm2676, %v2477
        %2798 = vst [vmem:[%s191 + $0x3f0] sm:$0xff] %v1120
        %2799 = vst [vmem:[%s191 + $0x3f8] sm:$0xff] %v1392
        %2800 = vst [vmem:[%s191 + $0x400] sm:$0xff] %v1664
        %2801 = vst [vmem:[%s191 + $0x408] sm:$0xff] %v1936
        %2802 = vst [vmem:[%s191 + $0x410] sm:$0xff] %v2208
        %2803 = vst.msk [vmem:[%s191 + $0x418] sm:$0xff] %vm2676, %v2480
        %2804 = vst [vmem:[%s191 + $0x420] sm:$0xff] %v1123
        %2805 = vst [vmem:[%s191 + $0x428] sm:$0xff] %v1395
        %2806 = vst [vmem:[%s191 + $0x430] sm:$0xff] %v1667
        %2807 = vst [vmem:[%s191 + $0x438] sm:$0xff] %v1939
        %2808 = vst [vmem:[%s191 + $0x440] sm:$0xff] %v2211
        %2809 = vst.msk [vmem:[%s191 + $0x448] sm:$0xff] %vm2676, %v2483
        %2810 = vst [vmem:[%s191 + $0x450] sm:$0xff] %v1126
        %2811 = vst [vmem:[%s191 + $0x458] sm:$0xff] %v1398
        %2812 = vst [vmem:[%s191 + $0x460] sm:$0xff] %v1670
        %2813 = vst [vmem:[%s191 + $0x468] sm:$0xff] %v1942
        %2814 = vst [vmem:[%s191 + $0x470] sm:$0xff] %v2214
        %2815 = vst.msk [vmem:[%s191 + $0x478] sm:$0xff] %vm2676, %v2486
        %2816 = vst [vmem:[%s191 + $0x480] sm:$0xff] %v1129
        %2817 = vst [vmem:[%s191 + $0x488] sm:$0xff] %v1401
        %2818 = vst [vmem:[%s191 + $0x490] sm:$0xff] %v1673
        %2819 = vst [vmem:[%s191 + $0x498] sm:$0xff] %v1945
        %2820 = vst [vmem:[%s191 + $0x4a0] sm:$0xff] %v2217
        %2821 = vst.msk [vmem:[%s191 + $0x4a8] sm:$0xff] %vm2676, %v2489
        %2822 = vst [vmem:[%s191 + $0x4b0] sm:$0xff] %v1132
        %2823 = vst [vmem:[%s191 + $0x4b8] sm:$0xff] %v1404
        %2824 = vst [vmem:[%s191 + $0x4c0] sm:$0xff] %v1676
        %2825 = vst [vmem:[%s191 + $0x4c8] sm:$0xff] %v1948
        %2826 = vst [vmem:[%s191 + $0x4d0] sm:$0xff] %v2220
        %2827 = vst.msk [vmem:[%s191 + $0x4d8] sm:$0xff] %vm2676, %v2492
        %2828 = vst [vmem:[%s191 + $0x4e0] sm:$0xff] %v1135
        %2829 = vst [vmem:[%s191 + $0x4e8] sm:$0xff] %v1407
        %2830 = vst [vmem:[%s191 + $0x4f0] sm:$0xff] %v1679
        %2831 = vst [vmem:[%s191 + $0x4f8] sm:$0xff] %v1951
        %2832 = vst [vmem:[%s191 + $0x500] sm:$0xff] %v2223
        %2833 = vst.msk [vmem:[%s191 + $0x508] sm:$0xff] %vm2676, %v2495
        %2834 = vst [vmem:[%s191 + $0x510] sm:$0xff] %v1138
        %2835 = vst [vmem:[%s191 + $0x518] sm:$0xff] %v1410
        %2836 = vst [vmem:[%s191 + $0x520] sm:$0xff] %v1682
        %2837 = vst [vmem:[%s191 + $0x528] sm:$0xff] %v1954
        %2838 = vst [vmem:[%s191 + $0x530] sm:$0xff] %v2226
        %2839 = vst.msk [vmem:[%s191 + $0x538] sm:$0xff] %vm2676, %v2498
        %2840 = vst [vmem:[%s191 + $0x540] sm:$0xff] %v1141
        %2841 = vst [vmem:[%s191 + $0x548] sm:$0xff] %v1413
        %2842 = vst [vmem:[%s191 + $0x550] sm:$0xff] %v1685
        %2843 = vst [vmem:[%s191 + $0x558] sm:$0xff] %v1957
        %2844 = vst [vmem:[%s191 + $0x560] sm:$0xff] %v2229
        %2845 = vst.msk [vmem:[%s191 + $0x568] sm:$0xff] %vm2676, %v2501
        %2846 = vst [vmem:[%s191 + $0x570] sm:$0xff] %v1144
        %2847 = vst [vmem:[%s191 + $0x578] sm:$0xff] %v1416
        %2848 = vst [vmem:[%s191 + $0x580] sm:$0xff] %v1688
        %2849 = vst [vmem:[%s191 + $0x588] sm:$0xff] %v1960
        %2850 = vst [vmem:[%s191 + $0x590] sm:$0xff] %v2232
        %2851 = vst.msk [vmem:[%s191 + $0x598] sm:$0xff] %vm2676, %v2504
        %2852 = vst [vmem:[%s191 + $0x5a0] sm:$0xff] %v1147
        %2853 = vst [vmem:[%s191 + $0x5a8] sm:$0xff] %v1419
        %2854 = vst [vmem:[%s191 + $0x5b0] sm:$0xff] %v1691
        %2855 = vst [vmem:[%s191 + $0x5b8] sm:$0xff] %v1963
        %2856 = vst [vmem:[%s191 + $0x5c0] sm:$0xff] %v2235
        %2857 = vst.msk [vmem:[%s191 + $0x5c8] sm:$0xff] %vm2676, %v2507
        %2858 = vst [vmem:[%s191 + $0x5d0] sm:$0xff] %v1150
        %2859 = vst [vmem:[%s191 + $0x5d8] sm:$0xff] %v1422
        %2860 = vst [vmem:[%s191 + $0x5e0] sm:$0xff] %v1694
        %2861 = vst [vmem:[%s191 + $0x5e8] sm:$0xff] %v1966
        %2862 = vst [vmem:[%s191 + $0x5f0] sm:$0xff] %v2238
        %2863 = vst.msk [vmem:[%s191 + $0x5f8] sm:$0xff] %vm2676, %v2510
        %2864 = vst [vmem:[%s191 + $0x600] sm:$0xff] %v1153
        %2865 = vst [vmem:[%s191 + $0x608] sm:$0xff] %v1425
        %2866 = vst [vmem:[%s191 + $0x610] sm:$0xff] %v1697
        %2867 = vst [vmem:[%s191 + $0x618] sm:$0xff] %v1969
        %2868 = vst [vmem:[%s191 + $0x620] sm:$0xff] %v2241
        %2869 = vst.msk [vmem:[%s191 + $0x628] sm:$0xff] %vm2676, %v2513
        %2870 = vst [vmem:[%s191 + $0x630] sm:$0xff] %v1156
        %2871 = vst [vmem:[%s191 + $0x638] sm:$0xff] %v1428
        %2872 = vst [vmem:[%s191 + $0x640] sm:$0xff] %v1700
        %2873 = vst [vmem:[%s191 + $0x648] sm:$0xff] %v1972
        %2874 = vst [vmem:[%s191 + $0x650] sm:$0xff] %v2244
        %2875 = vst.msk [vmem:[%s191 + $0x658] sm:$0xff] %vm2676, %v2516
        %2876 = vst [vmem:[%s191 + $0x660] sm:$0xff] %v1159
        %2877 = vst [vmem:[%s191 + $0x668] sm:$0xff] %v1431
        %2878 = vst [vmem:[%s191 + $0x670] sm:$0xff] %v1703
        %2879 = vst [vmem:[%s191 + $0x678] sm:$0xff] %v1975
        %2880 = vst [vmem:[%s191 + $0x680] sm:$0xff] %v2247
        %2881 = vst.msk [vmem:[%s191 + $0x688] sm:$0xff] %vm2676, %v2519
        %2882 = vst [vmem:[%s191 + $0x690] sm:$0xff] %v1162
        %2883 = vst [vmem:[%s191 + $0x698] sm:$0xff] %v1434
        %2884 = vst [vmem:[%s191 + $0x6a0] sm:$0xff] %v1706
        %2885 = vst [vmem:[%s191 + $0x6a8] sm:$0xff] %v1978
        %2886 = vst [vmem:[%s191 + $0x6b0] sm:$0xff] %v2250
        %2887 = vst.msk [vmem:[%s191 + $0x6b8] sm:$0xff] %vm2676, %v2522
        %2888 = vst [vmem:[%s191 + $0x6c0] sm:$0xff] %v1165
        %2889 = vst [vmem:[%s191 + $0x6c8] sm:$0xff] %v1437
        %2890 = vst [vmem:[%s191 + $0x6d0] sm:$0xff] %v1709
        %2891 = vst [vmem:[%s191 + $0x6d8] sm:$0xff] %v1981
        %2892 = vst [vmem:[%s191 + $0x6e0] sm:$0xff] %v2253
        %2893 = vst.msk [vmem:[%s191 + $0x6e8] sm:$0xff] %vm2676, %v2525
        %2894 = vst [vmem:[%s191 + $0x6f0] sm:$0xff] %v1168
        %2895 = vst [vmem:[%s191 + $0x6f8] sm:$0xff] %v1440
        %2896 = vst [vmem:[%s191 + $0x700] sm:$0xff] %v1712
        %2897 = vst [vmem:[%s191 + $0x708] sm:$0xff] %v1984
        %2898 = vst [vmem:[%s191 + $0x710] sm:$0xff] %v2256
        %2899 = vst.msk [vmem:[%s191 + $0x718] sm:$0xff] %vm2676, %v2528
        %2900 = vst [vmem:[%s191 + $0x720] sm:$0xff] %v1171
        %2901 = vst [vmem:[%s191 + $0x728] sm:$0xff] %v1443
        %2902 = vst [vmem:[%s191 + $0x730] sm:$0xff] %v1715
        %2903 = vst [vmem:[%s191 + $0x738] sm:$0xff] %v1987
        %2904 = vst [vmem:[%s191 + $0x740] sm:$0xff] %v2259
        %2905 = vst.msk [vmem:[%s191 + $0x748] sm:$0xff] %vm2676, %v2531
        %2906 = vst [vmem:[%s191 + $0x750] sm:$0xff] %v1174
        %2907 = vst [vmem:[%s191 + $0x758] sm:$0xff] %v1446
        %2908 = vst [vmem:[%s191 + $0x760] sm:$0xff] %v1718
        %2909 = vst [vmem:[%s191 + $0x768] sm:$0xff] %v1990
        %2910 = vst [vmem:[%s191 + $0x770] sm:$0xff] %v2262
        %2911 = vst.msk [vmem:[%s191 + $0x778] sm:$0xff] %vm2676, %v2534
        %2912 = vst [vmem:[%s191 + $0x780] sm:$0xff] %v1177
        %2913 = vst [vmem:[%s191 + $0x788] sm:$0xff] %v1449
        %2914 = vst [vmem:[%s191 + $0x790] sm:$0xff] %v1721
        %2915 = vst [vmem:[%s191 + $0x798] sm:$0xff] %v1993
        %2916 = vst [vmem:[%s191 + $0x7a0] sm:$0xff] %v2265
        %2917 = vst.msk [vmem:[%s191 + $0x7a8] sm:$0xff] %vm2676, %v2537
        %2918 = vst [vmem:[%s191 + $0x7b0] sm:$0xff] %v1180
        %2919 = vst [vmem:[%s191 + $0x7b8] sm:$0xff] %v1452
        %2920 = vst [vmem:[%s191 + $0x7c0] sm:$0xff] %v1724
        %2921 = vst [vmem:[%s191 + $0x7c8] sm:$0xff] %v1996
        %2922 = vst [vmem:[%s191 + $0x7d0] sm:$0xff] %v2268
        %2923 = vst.msk [vmem:[%s191 + $0x7d8] sm:$0xff] %vm2676, %v2540
        %2924 = vst [vmem:[%s191 + $0x7e0] sm:$0xff] %v1183
        %2925 = vst [vmem:[%s191 + $0x7e8] sm:$0xff] %v1455
        %2926 = vst [vmem:[%s191 + $0x7f0] sm:$0xff] %v1727
        %2927 = vst [vmem:[%s191 + $0x7f8] sm:$0xff] %v1999
        %2928 = vst [vmem:[%s191 + $0x800] sm:$0xff] %v2271
        %2929 = vst.msk [vmem:[%s191 + $0x808] sm:$0xff] %vm2676, %v2543
        %2930 = vst [vmem:[%s191 + $0x810] sm:$0xff] %v1186
        %2931 = vst [vmem:[%s191 + $0x818] sm:$0xff] %v1458
        %2932 = vst [vmem:[%s191 + $0x820] sm:$0xff] %v1730
        %2933 = vst [vmem:[%s191 + $0x828] sm:$0xff] %v2002
        %2934 = vst [vmem:[%s191 + $0x830] sm:$0xff] %v2274
        %2935 = vst.msk [vmem:[%s191 + $0x838] sm:$0xff] %vm2676, %v2546
        %2936 = vst [vmem:[%s191 + $0x840] sm:$0xff] %v1189
        %2937 = vst [vmem:[%s191 + $0x848] sm:$0xff] %v1461
        %2938 = vst [vmem:[%s191 + $0x850] sm:$0xff] %v1733
        %2939 = vst [vmem:[%s191 + $0x858] sm:$0xff] %v2005
        %2940 = vst [vmem:[%s191 + $0x860] sm:$0xff] %v2277
        %2941 = vst.msk [vmem:[%s191 + $0x868] sm:$0xff] %vm2676, %v2549
        %2942 = vst [vmem:[%s191 + $0x870] sm:$0xff] %v1192
        %2943 = vst [vmem:[%s191 + $0x878] sm:$0xff] %v1464
        %2944 = vst [vmem:[%s191 + $0x880] sm:$0xff] %v1736
        %2945 = vst [vmem:[%s191 + $0x888] sm:$0xff] %v2008
        %2946 = vst [vmem:[%s191 + $0x890] sm:$0xff] %v2280
        %2947 = vst.msk [vmem:[%s191 + $0x898] sm:$0xff] %vm2676, %v2552
        %2948 = vst [vmem:[%s191 + $0x8a0] sm:$0xff] %v1195
        %2949 = vst [vmem:[%s191 + $0x8a8] sm:$0xff] %v1467
        %2950 = vst [vmem:[%s191 + $0x8b0] sm:$0xff] %v1739
        %2951 = vst [vmem:[%s191 + $0x8b8] sm:$0xff] %v2011
        %2952 = vst [vmem:[%s191 + $0x8c0] sm:$0xff] %v2283
        %2953 = vst.msk [vmem:[%s191 + $0x8c8] sm:$0xff] %vm2676, %v2555
        %2954 = vst [vmem:[%s191 + $0x8d0] sm:$0xff] %v1198
        %2955 = vst [vmem:[%s191 + $0x8d8] sm:$0xff] %v1470
        %2956 = vst [vmem:[%s191 + $0x8e0] sm:$0xff] %v1742
        %2957 = vst [vmem:[%s191 + $0x8e8] sm:$0xff] %v2014
        %2958 = vst [vmem:[%s191 + $0x8f0] sm:$0xff] %v2286
        %2959 = vst.msk [vmem:[%s191 + $0x8f8] sm:$0xff] %vm2676, %v2558
        %2960 = vst [vmem:[%s191 + $0x900] sm:$0xff] %v1201
        %2961 = vst [vmem:[%s191 + $0x908] sm:$0xff] %v1473
        %2962 = vst [vmem:[%s191 + $0x910] sm:$0xff] %v1745
        %2963 = vst [vmem:[%s191 + $0x918] sm:$0xff] %v2017
        %2964 = vst [vmem:[%s191 + $0x920] sm:$0xff] %v2289
        %2965 = vst.msk [vmem:[%s191 + $0x928] sm:$0xff] %vm2676, %v2561
        %2966 = vst [vmem:[%s191 + $0x930] sm:$0xff] %v1204
        %2967 = vst [vmem:[%s191 + $0x938] sm:$0xff] %v1476
        %2968 = vst [vmem:[%s191 + $0x940] sm:$0xff] %v1748
        %2969 = vst [vmem:[%s191 + $0x948] sm:$0xff] %v2020
        %2970 = vst [vmem:[%s191 + $0x950] sm:$0xff] %v2292
        %2971 = vst.msk [vmem:[%s191 + $0x958] sm:$0xff] %vm2676, %v2564
        %2972 = vst [vmem:[%s191 + $0x960] sm:$0xff] %v1207
        %2973 = vst [vmem:[%s191 + $0x968] sm:$0xff] %v1479
        %2974 = vst [vmem:[%s191 + $0x970] sm:$0xff] %v1751
        %2975 = vst [vmem:[%s191 + $0x978] sm:$0xff] %v2023
        %2976 = vst [vmem:[%s191 + $0x980] sm:$0xff] %v2295
        %2977 = vst.msk [vmem:[%s191 + $0x988] sm:$0xff] %vm2676, %v2567
        %2978 = vst [vmem:[%s191 + $0x990] sm:$0xff] %v1210
        %2979 = vst [vmem:[%s191 + $0x998] sm:$0xff] %v1482
        %2980 = vst [vmem:[%s191 + $0x9a0] sm:$0xff] %v1754
        %2981 = vst [vmem:[%s191 + $0x9a8] sm:$0xff] %v2026
        %2982 = vst [vmem:[%s191 + $0x9b0] sm:$0xff] %v2298
        %2983 = vst.msk [vmem:[%s191 + $0x9b8] sm:$0xff] %vm2676, %v2570
        %2984 = vst [vmem:[%s191 + $0x9c0] sm:$0xff] %v1213
        %2985 = vst [vmem:[%s191 + $0x9c8] sm:$0xff] %v1485
        %2986 = vst [vmem:[%s191 + $0x9d0] sm:$0xff] %v1757
        %2987 = vst [vmem:[%s191 + $0x9d8] sm:$0xff] %v2029
        %2988 = vst [vmem:[%s191 + $0x9e0] sm:$0xff] %v2301
        %2989 = vst.msk [vmem:[%s191 + $0x9e8] sm:$0xff] %vm2676, %v2573
        %2990 = vst [vmem:[%s191 + $0x9f0] sm:$0xff] %v1216
        %2991 = vst [vmem:[%s191 + $0x9f8] sm:$0xff] %v1488
        %2992 = vst [vmem:[%s191 + $0xa00] sm:$0xff] %v1760
        %2993 = vst [vmem:[%s191 + $0xa08] sm:$0xff] %v2032
        %2994 = vst [vmem:[%s191 + $0xa10] sm:$0xff] %v2304
        %2995 = vst.msk [vmem:[%s191 + $0xa18] sm:$0xff] %vm2676, %v2576
        %2996 = vst [vmem:[%s191 + $0xa20] sm:$0xff] %v1219
        %2997 = vst [vmem:[%s191 + $0xa28] sm:$0xff] %v1491
        %2998 = vst [vmem:[%s191 + $0xa30] sm:$0xff] %v1763
        %2999 = vst [vmem:[%s191 + $0xa38] sm:$0xff] %v2035
        %3000 = vst [vmem:[%s191 + $0xa40] sm:$0xff] %v2307
        %3001 = vst.msk [vmem:[%s191 + $0xa48] sm:$0xff] %vm2676, %v2579
        %3002 = vst [vmem:[%s191 + $0xa50] sm:$0xff] %v1222
        %3003 = vst [vmem:[%s191 + $0xa58] sm:$0xff] %v1494
        %3004 = vst [vmem:[%s191 + $0xa60] sm:$0xff] %v1766
        %3005 = vst [vmem:[%s191 + $0xa68] sm:$0xff] %v2038
        %3006 = vst [vmem:[%s191 + $0xa70] sm:$0xff] %v2310
        %3007 = vst.msk [vmem:[%s191 + $0xa78] sm:$0xff] %vm2676, %v2582
        %3008 = vst [vmem:[%s191 + $0xa80] sm:$0xff] %v1225
        %3009 = vst [vmem:[%s191 + $0xa88] sm:$0xff] %v1497
        %3010 = vst [vmem:[%s191 + $0xa90] sm:$0xff] %v1769
        %3011 = vst [vmem:[%s191 + $0xa98] sm:$0xff] %v2041
        %3012 = vst [vmem:[%s191 + $0xaa0] sm:$0xff] %v2313
        %3013 = vst.msk [vmem:[%s191 + $0xaa8] sm:$0xff] %vm2676, %v2585
        %3014 = vst [vmem:[%s191 + $0xab0] sm:$0xff] %v1228
        %3015 = vst [vmem:[%s191 + $0xab8] sm:$0xff] %v1500
        %3016 = vst [vmem:[%s191 + $0xac0] sm:$0xff] %v1772
        %3017 = vst [vmem:[%s191 + $0xac8] sm:$0xff] %v2044
        %3018 = vst [vmem:[%s191 + $0xad0] sm:$0xff] %v2316
        %3019 = vst.msk [vmem:[%s191 + $0xad8] sm:$0xff] %vm2676, %v2588
        %3020 = vst [vmem:[%s191 + $0xae0] sm:$0xff] %v1231
        %3021 = vst [vmem:[%s191 + $0xae8] sm:$0xff] %v1503
        %3022 = vst [vmem:[%s191 + $0xaf0] sm:$0xff] %v1775
        %3023 = vst [vmem:[%s191 + $0xaf8] sm:$0xff] %v2047
        %3024 = vst [vmem:[%s191 + $0xb00] sm:$0xff] %v2319
        %3025 = vst.msk [vmem:[%s191 + $0xb08] sm:$0xff] %vm2676, %v2591
        %3026 = vst [vmem:[%s191 + $0xb10] sm:$0xff] %v1234
        %3027 = vst [vmem:[%s191 + $0xb18] sm:$0xff] %v1506
        %3028 = vst [vmem:[%s191 + $0xb20] sm:$0xff] %v1778
        %3029 = vst [vmem:[%s191 + $0xb28] sm:$0xff] %v2050
        %3030 = vst [vmem:[%s191 + $0xb30] sm:$0xff] %v2322
        %3031 = vst.msk [vmem:[%s191 + $0xb38] sm:$0xff] %vm2676, %v2594
        %3032 = vst [vmem:[%s191 + $0xb40] sm:$0xff] %v1237
        %3033 = vst [vmem:[%s191 + $0xb48] sm:$0xff] %v1509
        %3034 = vst [vmem:[%s191 + $0xb50] sm:$0xff] %v1781
        %3035 = vst [vmem:[%s191 + $0xb58] sm:$0xff] %v2053
        %3036 = vst [vmem:[%s191 + $0xb60] sm:$0xff] %v2325
        %3037 = vst.msk [vmem:[%s191 + $0xb68] sm:$0xff] %vm2676, %v2597
        %3038 = vst [vmem:[%s191 + $0xb70] sm:$0xff] %v1240
        %3039 = vst [vmem:[%s191 + $0xb78] sm:$0xff] %v1512
        %3040 = vst [vmem:[%s191 + $0xb80] sm:$0xff] %v1784
        %3041 = vst [vmem:[%s191 + $0xb88] sm:$0xff] %v2056
        %3042 = vst [vmem:[%s191 + $0xb90] sm:$0xff] %v2328
        %3043 = vst.msk [vmem:[%s191 + $0xb98] sm:$0xff] %vm2676, %v2600
        %3044 = vst [vmem:[%s191 + $0xba0] sm:$0xff] %v1243
        %3045 = vst [vmem:[%s191 + $0xba8] sm:$0xff] %v1515
        %3046 = vst [vmem:[%s191 + $0xbb0] sm:$0xff] %v1787
        %3047 = vst [vmem:[%s191 + $0xbb8] sm:$0xff] %v2059
        %3048 = vst [vmem:[%s191 + $0xbc0] sm:$0xff] %v2331
        %3049 = vst.msk [vmem:[%s191 + $0xbc8] sm:$0xff] %vm2676, %v2603
        %3050 = vst [vmem:[%s191 + $0xbd0] sm:$0xff] %v1246
        %3051 = vst [vmem:[%s191 + $0xbd8] sm:$0xff] %v1518
        %3052 = vst [vmem:[%s191 + $0xbe0] sm:$0xff] %v1790
        %3053 = vst [vmem:[%s191 + $0xbe8] sm:$0xff] %v2062
        %3054 = vst [vmem:[%s191 + $0xbf0] sm:$0xff] %v2334
        %3055 = vst.msk [vmem:[%s191 + $0xbf8] sm:$0xff] %vm2676, %v2606
        %3056 = vst [vmem:[%s191 + $0xc00] sm:$0xff] %v1249
        %3057 = vst [vmem:[%s191 + $0xc08] sm:$0xff] %v1521
        %3058 = vst [vmem:[%s191 + $0xc10] sm:$0xff] %v1793
        %3059 = vst [vmem:[%s191 + $0xc18] sm:$0xff] %v2065
        %3060 = vst [vmem:[%s191 + $0xc20] sm:$0xff] %v2337
        %3061 = vst.msk [vmem:[%s191 + $0xc28] sm:$0xff] %vm2676, %v2609
        %3062 = vst [vmem:[%s191 + $0xc30] sm:$0xff] %v1252
        %3063 = vst [vmem:[%s191 + $0xc38] sm:$0xff] %v1524
        %3064 = vst [vmem:[%s191 + $0xc40] sm:$0xff] %v1796
        %3065 = vst [vmem:[%s191 + $0xc48] sm:$0xff] %v2068
        %3066 = vst [vmem:[%s191 + $0xc50] sm:$0xff] %v2340
        %3067 = vst.msk [vmem:[%s191 + $0xc58] sm:$0xff] %vm2676, %v2612
        %3068 = vst [vmem:[%s191 + $0xc60] sm:$0xff] %v1255
        %3069 = vst [vmem:[%s191 + $0xc68] sm:$0xff] %v1527
        %3070 = vst [vmem:[%s191 + $0xc70] sm:$0xff] %v1799
        %3071 = vst [vmem:[%s191 + $0xc78] sm:$0xff] %v2071
        %3072 = vst [vmem:[%s191 + $0xc80] sm:$0xff] %v2343
        %3073 = vst.msk [vmem:[%s191 + $0xc88] sm:$0xff] %vm2676, %v2615
        %3074 = vst [vmem:[%s191 + $0xc90] sm:$0xff] %v1258
        %3075 = vst [vmem:[%s191 + $0xc98] sm:$0xff] %v1530
        %3076 = vst [vmem:[%s191 + $0xca0] sm:$0xff] %v1802
        %3077 = vst [vmem:[%s191 + $0xca8] sm:$0xff] %v2074
        %3078 = vst [vmem:[%s191 + $0xcb0] sm:$0xff] %v2346
        %3079 = vst.msk [vmem:[%s191 + $0xcb8] sm:$0xff] %vm2676, %v2618
        %3080 = vst [vmem:[%s191 + $0xcc0] sm:$0xff] %v1261
        %3081 = vst [vmem:[%s191 + $0xcc8] sm:$0xff] %v1533
        %3082 = vst [vmem:[%s191 + $0xcd0] sm:$0xff] %v1805
        %3083 = vst [vmem:[%s191 + $0xcd8] sm:$0xff] %v2077
        %3084 = vst [vmem:[%s191 + $0xce0] sm:$0xff] %v2349
        %3085 = vst.msk [vmem:[%s191 + $0xce8] sm:$0xff] %vm2676, %v2621
        %3086 = vst [vmem:[%s191 + $0xcf0] sm:$0xff] %v1264
        %3087 = vst [vmem:[%s191 + $0xcf8] sm:$0xff] %v1536
        %3088 = vst [vmem:[%s191 + $0xd00] sm:$0xff] %v1808
        %3089 = vst [vmem:[%s191 + $0xd08] sm:$0xff] %v2080
        %3090 = vst [vmem:[%s191 + $0xd10] sm:$0xff] %v2352
        %3091 = vst.msk [vmem:[%s191 + $0xd18] sm:$0xff] %vm2676, %v2624
        %3092 = vst [vmem:[%s191 + $0xd20] sm:$0xff] %v1267
        %3093 = vst [vmem:[%s191 + $0xd28] sm:$0xff] %v1539
        %3094 = vst [vmem:[%s191 + $0xd30] sm:$0xff] %v1811
        %3095 = vst [vmem:[%s191 + $0xd38] sm:$0xff] %v2083
        %3096 = vst [vmem:[%s191 + $0xd40] sm:$0xff] %v2355
        %3097 = vst.msk [vmem:[%s191 + $0xd48] sm:$0xff] %vm2676, %v2627
        %3098 = vst [vmem:[%s191 + $0xd50] sm:$0xff] %v1270
        %3099 = vst [vmem:[%s191 + $0xd58] sm:$0xff] %v1542
        %3100 = vst [vmem:[%s191 + $0xd60] sm:$0xff] %v1814
        %3101 = vst [vmem:[%s191 + $0xd68] sm:$0xff] %v2086
        %3102 = vst [vmem:[%s191 + $0xd70] sm:$0xff] %v2358
        %3103 = vst.msk [vmem:[%s191 + $0xd78] sm:$0xff] %vm2676, %v2630
        %3104 = vst [vmem:[%s191 + $0xd80] sm:$0xff] %v1273
        %3105 = vst [vmem:[%s191 + $0xd88] sm:$0xff] %v1545
        %3106 = vst [vmem:[%s191 + $0xd90] sm:$0xff] %v1817
        %3107 = vst [vmem:[%s191 + $0xd98] sm:$0xff] %v2089
        %3108 = vst [vmem:[%s191 + $0xda0] sm:$0xff] %v2361
        %3109 = vst.msk [vmem:[%s191 + $0xda8] sm:$0xff] %vm2676, %v2633
        %3110 = vst [vmem:[%s191 + $0xdb0] sm:$0xff] %v1276
        %3111 = vst [vmem:[%s191 + $0xdb8] sm:$0xff] %v1548
        %3112 = vst [vmem:[%s191 + $0xdc0] sm:$0xff] %v1820
        %3113 = vst [vmem:[%s191 + $0xdc8] sm:$0xff] %v2092
        %3114 = vst [vmem:[%s191 + $0xdd0] sm:$0xff] %v2364
        %3115 = vst.msk [vmem:[%s191 + $0xdd8] sm:$0xff] %vm2676, %v2636
        %3116 = vst [vmem:[%s191 + $0xde0] sm:$0xff] %v1279
        %3117 = vst [vmem:[%s191 + $0xde8] sm:$0xff] %v1551
        %3118 = vst [vmem:[%s191 + $0xdf0] sm:$0xff] %v1823
        %3119 = vst [vmem:[%s191 + $0xdf8] sm:$0xff] %v2095
        %3120 = vst [vmem:[%s191 + $0xe00] sm:$0xff] %v2367
        %3121 = vst.msk [vmem:[%s191 + $0xe08] sm:$0xff] %vm2676, %v2639
        %3122 = vst [vmem:[%s191 + $0xe10] sm:$0xff] %v1282
        %3123 = vst [vmem:[%s191 + $0xe18] sm:$0xff] %v1554
        %3124 = vst [vmem:[%s191 + $0xe20] sm:$0xff] %v1826
        %3125 = vst [vmem:[%s191 + $0xe28] sm:$0xff] %v2098
        %3126 = vst [vmem:[%s191 + $0xe30] sm:$0xff] %v2370
        %3127 = vst.msk [vmem:[%s191 + $0xe38] sm:$0xff] %vm2676, %v2642
        %3128 = vst [vmem:[%s191 + $0xe40] sm:$0xff] %v1285
        %3129 = vst [vmem:[%s191 + $0xe48] sm:$0xff] %v1557
        %3130 = vst [vmem:[%s191 + $0xe50] sm:$0xff] %v1829
        %3131 = vst [vmem:[%s191 + $0xe58] sm:$0xff] %v2101
        %3132 = vst [vmem:[%s191 + $0xe60] sm:$0xff] %v2373
        %3133 = vst.msk [vmem:[%s191 + $0xe68] sm:$0xff] %vm2676, %v2645
        %3134 = vst [vmem:[%s191 + $0xe70] sm:$0xff] %v1288
        %3135 = vst [vmem:[%s191 + $0xe78] sm:$0xff] %v1560
        %3136 = vst [vmem:[%s191 + $0xe80] sm:$0xff] %v1832
        %3137 = vst [vmem:[%s191 + $0xe88] sm:$0xff] %v2104
        %3138 = vst [vmem:[%s191 + $0xe90] sm:$0xff] %v2376
        %3139 = vst.msk [vmem:[%s191 + $0xe98] sm:$0xff] %vm2676, %v2648
        %3140 = vst [vmem:[%s191 + $0xea0] sm:$0xff] %v1291
        %3141 = vst [vmem:[%s191 + $0xea8] sm:$0xff] %v1563
        %3142 = vst [vmem:[%s191 + $0xeb0] sm:$0xff] %v1835
        %3143 = vst [vmem:[%s191 + $0xeb8] sm:$0xff] %v2107
        %3144 = vst [vmem:[%s191 + $0xec0] sm:$0xff] %v2379
        %3145 = vst.msk [vmem:[%s191 + $0xec8] sm:$0xff] %vm2676, %v2651
        %3146 = vst [vmem:[%s191 + $0xed0] sm:$0xff] %v1294
        %3147 = vst [vmem:[%s191 + $0xed8] sm:$0xff] %v1566
        %3148 = vst [vmem:[%s191 + $0xee0] sm:$0xff] %v1838
        %3149 = vst [vmem:[%s191 + $0xee8] sm:$0xff] %v2110
        %3150 = vst [vmem:[%s191 + $0xef0] sm:$0xff] %v2382
        %3151 = vst.msk [vmem:[%s191 + $0xef8] sm:$0xff] %vm2676, %v2654
        %3152 = vst [vmem:[%s191 + $0xf00] sm:$0xff] %v1297
        %3153 = vst [vmem:[%s191 + $0xf08] sm:$0xff] %v1569
        %3154 = vst [vmem:[%s191 + $0xf10] sm:$0xff] %v1841
        %3155 = vst [vmem:[%s191 + $0xf18] sm:$0xff] %v2113
        %3156 = vst [vmem:[%s191 + $0xf20] sm:$0xff] %v2385
        %3157 = vst.msk [vmem:[%s191 + $0xf28] sm:$0xff] %vm2676, %v2657
        %3158 = vst [vmem:[%s191 + $0xf30] sm:$0xff] %v1300
        %3159 = vst [vmem:[%s191 + $0xf38] sm:$0xff] %v1572
        %3160 = vst [vmem:[%s191 + $0xf40] sm:$0xff] %v1844
        %3161 = vst [vmem:[%s191 + $0xf48] sm:$0xff] %v2116
        %3162 = vst [vmem:[%s191 + $0xf50] sm:$0xff] %v2388
        %3163 = vst.msk [vmem:[%s191 + $0xf58] sm:$0xff] %vm2676, %v2660
        %3164 = vst [vmem:[%s191 + $0xf60] sm:$0xff] %v1303
        %3165 = vst [vmem:[%s191 + $0xf68] sm:$0xff] %v1575
        %3166 = vst [vmem:[%s191 + $0xf70] sm:$0xff] %v1847
        %3167 = vst [vmem:[%s191 + $0xf78] sm:$0xff] %v2119
        %3168 = vst [vmem:[%s191 + $0xf80] sm:$0xff] %v2391
        %3169 = vst.msk [vmem:[%s191 + $0xf88] sm:$0xff] %vm2676, %v2663
        %3170 = vst [vmem:[%s191 + $0xf90] sm:$0xff] %v1306
        %3171 = vst [vmem:[%s191 + $0xf98] sm:$0xff] %v1578
        %3172 = vst [vmem:[%s191 + $0xfa0] sm:$0xff] %v1850
        %3173 = vst [vmem:[%s191 + $0xfa8] sm:$0xff] %v2122
        %3174 = vst [vmem:[%s191 + $0xfb0] sm:$0xff] %v2394
        %3175 = vst.msk [vmem:[%s191 + $0xfb8] sm:$0xff] %vm2676, %v2666
        %3176 = vst [vmem:[%s191 + $0xfc0] sm:$0xf] %v1309
        %3177 = vst [vmem:[%s191 + $0xfc8] sm:$0xf] %v1581
        %3178 = vst [vmem:[%s191 + $0xfd0] sm:$0xf] %v1853
        %3179 = vst [vmem:[%s191 + $0xfd8] sm:$0xf] %v2125
        %3180 = vst [vmem:[%s191 + $0xfe0] sm:$0xf] %v2397
        %vm3181 = vcmask 289792
        %3182 = vst.msk [vmem:[%s191 + $0xfe8] sm:$0xf] %vm3181, %v2669
        %p3183 = scmp.lt.s32.totalorder %s16, 1
        %s3184 = scalar_select %p3183, %s16, 1
        %s3185 = smul.addr %s3184, 510
        %s3186 = smul.addr %s3185, 8
        %s3187 = scalar_lea.vmem %s4, %s3186
        // Predicated region
        $region41: #{conv_transpose_tanh.1} parent=35 // pred_check
          %p3188 = pneg %p118
        $region42: #{conv_transpose_tanh.1} parent=35 // pred_check_branch
          %3190 = sbr.rel (%p3188) target = $region44
        $region43: #{conv_transpose_tanh.1} parent=35 // pred_region
          _
        $region44: #{conv_transpose_tanh.1} parent=35 // pred_fallthru
          _
      $region36: #{conv_transpose_tanh.1} parent=5 // pred_fallthru
        _
      %p3191 = scmp.le.s32.totalorder 2, %s11
      // Predicated region
      $region45: #{conv_transpose_tanh.1} parent=5 // pred_check
        %p3192 = pneg %p3191
      $region46: #{conv_transpose_tanh.1} parent=5 // pred_check_branch
        %3194 = sbr.rel (%p3192) target = $region48
      $region47: #{conv_transpose_tanh.1} parent=5 // pred_region
        %s3195 = ssub.s32 %s11, 2
        // Predicated region
        $region49: #{conv_transpose_tanh.1} parent=47 // pred_check
          %p3196 = pneg %p124
        $region50: #{conv_transpose_tanh.1} parent=47 // pred_check_branch
          %3198 = sbr.rel (%p3196) target = $region52
        $region51: #{conv_transpose_tanh.1} parent=47 // pred_region
          %p3199 = scmp.lt.s32.totalorder %s17, 1
          %s3200 = scalar_select %p3199, %s17, 1
          %s3201 = smul.addr %s3200, 510
          %s3202 = smul.addr %s3201, 8
          %s3203 = scalar_lea.vmem %s4, %s3202
        $region52: #{conv_transpose_tanh.1} parent=47 // pred_fallthru
          _
      $region48: #{conv_transpose_tanh.1} parent=5 // pred_fallthru
        _
    $region6: #{conv_transpose_tanh.1} parent=1 // loop_footer
      %s15 = sadd.s32 1, %s11
    $region7: #{conv_transpose_tanh.1} parent=1 // loop_footer_branch
      %10 = sbr.rel target = $region3
    $region8: #{conv_transpose_tanh.1} parent=1 // loop_exit
      _
    %3204 = vsyncpa [#allocation3], 1
    %s3205 = scalar_lea.sflag [#allocation3], 1
    %3206 = vsyncpa %s3205, 1

</llo_original>
